<compile_context>
chip_gen: v6e
topology: v6e:2x2x1
jax: 0.10.0
libtpu: 0.0.40
codegen_flags: <defaults>
</compile_context>

<pallas_src>
import functools

import jax
import jax.numpy as jnp
from jax.experimental import pallas as pl
from jax.experimental.pallas import tpu as pltpu


def _round_up(x, m):
    return (x + m - 1) // m * m


# ------------------------------------------------------------------ kernel ---

def _fused_decoder_kernel(lat_ref, w_ref, b_ref,
                          d1_ref, d2_ref, d3_ref,
                          s2_ref, s3_ref, *, k1, k2):
    """Whole FullDecoder forward in one kernel.

    w_ref: (13,128,128) bf16 padded weights, b_ref: (13,1,128) f32 biases.
      0..2  dec1 SRD fc1/fc2/fc3        3 dec1 feats proj   4 dec1 wd (tiled)
      5..7  dec2 SRD fc1/fc2/fc3        8 dec2 feats proj   9 dec2 wd (tiled)
      10..12 dec3 SRD fc1/fc2/fc3
    """
    f32 = jnp.float32
    bf16 = jnp.bfloat16

    def relu(v):
        return jnp.maximum(v, 0.0)

    def lin(x, i):
        # bf16 MXU matmul, f32 accumulate, f32 bias-add.
        return (jnp.dot(x.astype(bf16), w_ref[i], preferred_element_type=f32)
                + b_ref[i])

    def middle_fc(d_flat, fproj, wd_idx, k):
        """relu([decoded | feats] @ Wfc + b) for all k offsets.

        Result row layout: row kk*R + r  <->  (source row r, offset kk).
        fproj (feats @ Wfc[3:] + b) is identical for every kk -> tiled on the
        VPU.  The decoded part selects d_flat[:, 3kk:3kk+3] per row block with
        an iota lane-mask, then one matmul against wd tiled down the
        contraction dim (no block-diagonal / lane-tiled weights).
        """
        r = d_flat.shape[0]
        dexp = jnp.broadcast_to(d_flat.astype(bf16)[None], (k, r, 128))
        blk = jax.lax.broadcasted_iota(jnp.int32, (k, r, 128), 0)
        col = jax.lax.broadcasted_iota(jnp.int32, (k, r, 128), 2)
        keep = (col >= 3 * blk) & (col < 3 * blk + 3)
        dm = jnp.where(keep, dexp, jnp.zeros_like(dexp)).reshape(k * r, 128)
        dproj = jnp.dot(dm, w_ref[wd_idx], preferred_element_type=f32)
        fexp = jnp.broadcast_to(fproj[None], (k, r, 128)).reshape(k * r, 128)
        return relu(dproj + fexp)

    # ---------------- stage 1: dec1 (MiddleLayerDecoder) -------------------
    x = lat_ref[...]                       # cols 0..19 neighb, 20..99 feats
    h = relu(lin(x, 0))
    h = relu(lin(h, 1))
    d1 = jnp.tanh(lin(h, 2))               # 3*k1 valid lanes
    d1_ref[...] = d1
    s2_ref[...] = middle_fc(d1, lin(x, 3), 4, k1)    # (k1*mp,128), 50 valid lanes

    # ---------------- stage 2: dec2 (MiddleLayerDecoder) -------------------
    s2 = s2_ref[...]                       # cols 0..19 neighb, 20..49 feats
    h = relu(lin(s2, 5))
    h = relu(lin(h, 6))
    d2 = jnp.tanh(lin(h, 7))               # 3*k2 valid lanes
    d2_ref[...] = d2
    s3_ref[...] = middle_fc(d2, lin(s2, 8), 9, k2)   # (k2*k1*mp,128), 20 valid

    # ---------------- stage 3: dec3 (SimpleRelativeDecoder) ----------------
    s3 = s3_ref[...]
    h = relu(lin(s3, 10))
    h = relu(lin(h, 11))
    d3_ref[...] = jnp.tanh(lin(h, 12))     # 3*k3 valid lanes


# -------------------------------------------------------------- parameters ---

def init_linear(key, fan_in, fan_out):
    # PyTorch nn.Linear default init: U(-1/sqrt(fan_in), 1/sqrt(fan_in)).
    kw, kb = jax.random.split(key)
    bound = 1.0 / (fan_in ** 0.5)
    w = jax.random.uniform(kw, (fan_in, fan_out), jnp.float32, -bound, bound)
    b = jax.random.uniform(kb, (fan_out,), jnp.float32, -bound, bound)
    return w, b


def _pad_w(w, row_off=0):
    fi, fo = w.shape
    assert row_off + fi <= 128 and fo <= 128
    return jnp.zeros((128, 128), jnp.float32).at[row_off:row_off + fi, :fo].set(w)


def _pad_b(b):
    assert b.shape[0] <= 128
    return jnp.zeros((1, 128), jnp.float32).at[0, :b.shape[0]].set(b)


def init_full_decoder(key, nb_feats1=20, nb_feats2=30, nb_feats3=80,
                      nb_neighs1=9, nb_neighs2=16, nb_neighs3=25):
    ks = jax.random.split(key, 11)
    d1_srd = (init_linear(ks[0], nb_feats1, 40),
              init_linear(ks[1], 40, 80),
              init_linear(ks[2], 80, 3 * nb_neighs1))
    d1_fc = init_linear(ks[3], 3 + nb_feats3, nb_feats1 + nb_feats2)
    d2_srd = (init_linear(ks[4], nb_feats1, 40),
              init_linear(ks[5], 40, 80),
              init_linear(ks[6], 80, 3 * nb_neighs2))
    d2_fc = init_linear(ks[7], 3 + nb_feats2, nb_feats1)
    d3_srd = (init_linear(ks[8], nb_feats1, 40),
              init_linear(ks[9], 40, 80),
              init_linear(ks[10], 80, 3 * nb_neighs3))

    zero_b = jnp.zeros((1, 128), jnp.float32)

    def mld_fold(fc, k):
        wf, bf = fc
        wd, wfe = wf[:3, :], wf[3:, :]
        # feats-projection slot (rows shifted by 20 = neighb width of the
        # stage input, so the column split is folded into the weight) and the
        # wd slot tiled down the contraction dim (3k rows, f_out cols).
        return (_pad_w(wfe, row_off=nb_feats1), _pad_b(bf),
                _pad_w(jnp.tile(wd, (k, 1))), zero_b)

    wfe1, bfe1, wds1, bds1 = mld_fold(d1_fc, nb_neighs1)
    wfe2, bfe2, wds2, bds2 = mld_fold(d2_fc, nb_neighs2)

    def srd_pads(srd):
        return ([_pad_w(w) for (w, _) in srd], [_pad_b(b) for (_, b) in srd])

    w1s, b1s = srd_pads(d1_srd)
    w2s, b2s = srd_pads(d2_srd)
    w3s, b3s = srd_pads(d3_srd)

    w_stack = jnp.stack(w1s + [wfe1, wds1] + w2s + [wfe2, wds2] + w3s
                        ).astype(jnp.bfloat16)                   # (13,128,128)
    b_stack = jnp.stack(b1s + [bfe1, bds1] + b2s + [bfe2, bds2] + b3s)

    return {
        "w_stack": w_stack, "b_stack": b_stack,
        "k1": nb_neighs1, "k2": nb_neighs2, "k3": nb_neighs3,
        "feats1": nb_feats1,
        "raw": {"dec1": {"srd": d1_srd, "fc": d1_fc},
                "dec2": {"srd": d2_srd, "fc": d2_fc},
                "dec3": d3_srd},
    }


# ------------------------------------------------------------------ forward ---

def full_decoder_forward(params, latent):
    m, lat_w = latent.shape
    k1, k2, k3 = params["k1"], params["k2"], params["k3"]
    mp = _round_up(max(m, 1), 8)
    m2p, m3p = k1 * mp, k2 * k1 * mp

    latp = jnp.zeros((mp, 128), jnp.float32).at[:m, :lat_w].set(
        latent.astype(jnp.float32))

    vmem = pl.BlockSpec(memory_space=pltpu.MemorySpace.VMEM)
    d1, d2, d3 = pl.pallas_call(
        functools.partial(_fused_decoder_kernel, k1=k1, k2=k2),
        out_shape=(jax.ShapeDtypeStruct((mp, 128), jnp.float32),
                   jax.ShapeDtypeStruct((m2p, 128), jnp.float32),
                   jax.ShapeDtypeStruct((m3p, 128), jnp.float32)),
        in_specs=[vmem, vmem, vmem],
        out_specs=(vmem, vmem, vmem),
        scratch_shapes=[pltpu.VMEM((m2p, 128), jnp.float32),
                        pltpu.VMEM((m3p, 128), jnp.float32)],
        compiler_params=pltpu.CompilerParams(
            vmem_limit_bytes=32 * 1024 * 1024),
    )(latp, params["w_stack"], params["b_stack"])

    # Kernel rows are "offset-major" ((kk, i) / (kk2, kk1, i)); tiny XLA
    # reshapes/transposes restore the canonical row order and drop padding.
    decoded1 = d1[:m, :3 * k1].reshape(m, k1, 3)
    decoded2 = jnp.transpose(
        d2[:, :3 * k2].reshape(k1, mp, 3 * k2)[:, :m], (1, 0, 2)
    ).reshape(m * k1, k2, 3)
    decoded3 = jnp.transpose(
        d3[:, :3 * k3].reshape(k2, k1, mp, 3 * k3)[:, :, :m], (2, 1, 0, 3)
    ).reshape(m * k1 * k2, k3, 3)
    return decoded1, decoded2, decoded3


# ---------------------------------------------- pure-JAX reference (check) ---

def _ref_srd(srd, x, k):
    (w1, b1), (w2, b2), (w3, b3) = srd
    h = jnp.maximum(x @ w1 + b1, 0.0)
    h = jnp.maximum(h @ w2 + b2, 0.0)
    return jnp.tanh(h @ w3 + b3).reshape(-1, k, 3)


def _ref_mld(mld, neighb, feats, k):
    d = _ref_srd(mld["srd"], neighb, k)
    n = feats.shape[0]
    rep = jnp.broadcast_to(feats[:, None, :], (n, k, feats.shape[1]))
    cat = jnp.concatenate([d, rep], axis=-1).reshape(n * k, -1)
    wf, bf = mld["fc"]
    return d, jnp.maximum(cat @ wf + bf, 0.0)


def _ref_full_decoder(params, latent):
    f1 = params["feats1"]
    raw = params["raw"]
    d1, c = _ref_mld(raw["dec1"], latent[:, :f1], latent[:, f1:], params["k1"])
    d2, f2 = _ref_mld(raw["dec2"], c[:, :f1], c[:, f1:], params["k2"])
    d3 = _ref_srd(raw["dec3"], f2, params["k3"])
    return d1, d2, d3


# --------------------------------------------------------------------- main ---

if __name__ == "__main__":
    key = jax.random.PRNGKey(0)
    k_param, k_in = jax.random.split(key)

    nb_feats1, nb_feats2, nb_feats3 = 20, 30, 80
    nb_neighs1, nb_neighs2, nb_neighs3 = 9, 16, 25
    params = init_full_decoder(k_param, nb_feats1, nb_feats2, nb_feats3,
                               nb_neighs1, nb_neighs2, nb_neighs3)

    batch = 2
    latent = jax.random.normal(
        k_in, (batch, nb_feats1 + nb_feats3), jnp.float32)        # (2, 100)

    fwd = jax.jit(functools.partial(full_decoder_forward, params))
    decoded, decoded2, decoded3 = fwd(latent)
    jax.block_until_ready((decoded, decoded2, decoded3))

    assert decoded.shape == (batch, nb_neighs1, 3)
    assert decoded2.shape == (batch * nb_neighs1, nb_neighs2, 3)
    assert decoded3.shape == (batch * nb_neighs1 * nb_neighs2, nb_neighs3, 3)

    # Validate the fused/folded kernel against a plain f32 reference of the
    # original broadcast+concat+Linear formulation.  Tolerance accounts for
    # bf16 MXU inputs (f32 accumulation).
    ref = _ref_full_decoder(params, latent)
    for got, want in zip((decoded, decoded2, decoded3), ref):
        assert got.shape == want.shape
        err = float(jnp.max(jnp.abs(got - want)))
        assert err < 5e-2, f"mismatch vs reference: max abs err {err}"

    print("KERNEL_OK")
</pallas_src>

<mosaic_0001>
module attributes {stable_mosaic.version = 11 : i64} {
  func.func @_fused_decoder_kernel(%arg0: memref<8x128xf32, #tpu.memory_space<vmem>>, %arg1: memref<13x128x128xbf16, #tpu.memory_space<vmem>>, %arg2: memref<13x1x128xf32, #tpu.memory_space<vmem>>, %arg3: memref<8x128xf32, #tpu.memory_space<vmem>>, %arg4: memref<72x128xf32, #tpu.memory_space<vmem>>, %arg5: memref<1152x128xf32, #tpu.memory_space<vmem>>, %arg6: memref<72x128xf32, #tpu.memory_space<vmem>>, %arg7: memref<1152x128xf32, #tpu.memory_space<vmem>>) attributes {dimension_semantics = [], scalar_prefetch = 0 : i64, scratch_operands = 2 : i64, tpu.core_type = #tpu.core_type<tc>} {
    %c0 = arith.constant 0 : index
    %c0_0 = arith.constant 0 : index
    %0 = vector.load %arg0[%c0, %c0_0] : memref<8x128xf32, #tpu.memory_space<vmem>>, vector<8x128xf32>
    %1 = arith.truncf %0 : vector<8x128xf32> to vector<8x128xbf16>
    %c0_1 = arith.constant 0 : index
    %c0_2 = arith.constant 0 : index
    %c0_3 = arith.constant 0 : index
    %2 = vector.load %arg1[%c0_1, %c0_2, %c0_3] : memref<13x128x128xbf16, #tpu.memory_space<vmem>>, vector<1x128x128xbf16>
    %3 = vector.shape_cast %2 : vector<1x128x128xbf16> to vector<128x128xbf16>
    %cst = arith.constant dense<0.000000e+00> : vector<8x128xf32>
    %4 = tpu.matmul %1, %3, %cst {dimension_numbers = #tpu.dot_dimension_numbers<[1], [0], [0], [1], [0, 0, 1, 1], [], []>} : vector<8x128xbf16>, vector<128x128xbf16>, vector<8x128xf32> -> vector<8x128xf32>
    %c0_4 = arith.constant 0 : index
    %c0_5 = arith.constant 0 : index
    %c0_6 = arith.constant 0 : index
    %5 = vector.load %arg2[%c0_4, %c0_5, %c0_6] : memref<13x1x128xf32, #tpu.memory_space<vmem>>, vector<1x1x128xf32>
    %6 = vector.shape_cast %5 : vector<1x1x128xf32> to vector<1x128xf32>
    %7 = vector.broadcast %6 : vector<1x128xf32> to vector<8x128xf32>
    %8 = arith.addf %4, %7 : vector<8x128xf32>
    %cst_7 = arith.constant 0.000000e+00 : f32
    %9 = vector.broadcast %cst_7 : f32 to vector<8x128xf32>
    %10 = arith.maximumf %8, %9 : vector<8x128xf32>
    %11 = arith.truncf %10 : vector<8x128xf32> to vector<8x128xbf16>
    %c1 = arith.constant 1 : index
    %c0_8 = arith.constant 0 : index
    %c0_9 = arith.constant 0 : index
    %12 = vector.load %arg1[%c1, %c0_8, %c0_9] : memref<13x128x128xbf16, #tpu.memory_space<vmem>>, vector<1x128x128xbf16>
    %13 = vector.shape_cast %12 : vector<1x128x128xbf16> to vector<128x128xbf16>
    %cst_10 = arith.constant dense<0.000000e+00> : vector<8x128xf32>
    %14 = tpu.matmul %11, %13, %cst_10 {dimension_numbers = #tpu.dot_dimension_numbers<[1], [0], [0], [1], [0, 0, 1, 1], [], []>} : vector<8x128xbf16>, vector<128x128xbf16>, vector<8x128xf32> -> vector<8x128xf32>
    %c1_11 = arith.constant 1 : index
    %c0_12 = arith.constant 0 : index
    %c0_13 = arith.constant 0 : index
    %15 = vector.load %arg2[%c1_11, %c0_12, %c0_13] : memref<13x1x128xf32, #tpu.memory_space<vmem>>, vector<1x1x128xf32>
    %16 = vector.shape_cast %15 : vector<1x1x128xf32> to vector<1x128xf32>
    %17 = vector.broadcast %16 : vector<1x128xf32> to vector<8x128xf32>
    %18 = arith.addf %14, %17 : vector<8x128xf32>
    %cst_14 = arith.constant 0.000000e+00 : f32
    %19 = vector.broadcast %cst_14 : f32 to vector<8x128xf32>
    %20 = arith.maximumf %18, %19 : vector<8x128xf32>
    %21 = arith.truncf %20 : vector<8x128xf32> to vector<8x128xbf16>
    %c2 = arith.constant 2 : index
    %c0_15 = arith.constant 0 : index
    %c0_16 = arith.constant 0 : index
    %22 = vector.load %arg1[%c2, %c0_15, %c0_16] : memref<13x128x128xbf16, #tpu.memory_space<vmem>>, vector<1x128x128xbf16>
    %23 = vector.shape_cast %22 : vector<1x128x128xbf16> to vector<128x128xbf16>
    %cst_17 = arith.constant dense<0.000000e+00> : vector<8x128xf32>
    %24 = tpu.matmul %21, %23, %cst_17 {dimension_numbers = #tpu.dot_dimension_numbers<[1], [0], [0], [1], [0, 0, 1, 1], [], []>} : vector<8x128xbf16>, vector<128x128xbf16>, vector<8x128xf32> -> vector<8x128xf32>
    %c2_18 = arith.constant 2 : index
    %c0_19 = arith.constant 0 : index
    %c0_20 = arith.constant 0 : index
    %25 = vector.load %arg2[%c2_18, %c0_19, %c0_20] : memref<13x1x128xf32, #tpu.memory_space<vmem>>, vector<1x1x128xf32>
    %26 = vector.shape_cast %25 : vector<1x1x128xf32> to vector<1x128xf32>
    %27 = vector.broadcast %26 : vector<1x128xf32> to vector<8x128xf32>
    %28 = arith.addf %24, %27 : vector<8x128xf32>
    %29 = math.tanh %28 : vector<8x128xf32>
    %c0_21 = arith.constant 0 : index
    %c0_22 = arith.constant 0 : index
    %30 = vector.load %arg3[%c0_21, %c0_22] : memref<8x128xf32, #tpu.memory_space<vmem>>, vector<8x128xf32>
    tpu.vector_store %arg3[%c0_21, %c0_22], %29 {strides = array<i32>} : memref<8x128xf32, #tpu.memory_space<vmem>>, vector<8x128xf32>,
    %31 = arith.truncf %0 : vector<8x128xf32> to vector<8x128xbf16>
    %c3 = arith.constant 3 : index
    %c0_23 = arith.constant 0 : index
    %c0_24 = arith.constant 0 : index
    %32 = vector.load %arg1[%c3, %c0_23, %c0_24] : memref<13x128x128xbf16, #tpu.memory_space<vmem>>, vector<1x128x128xbf16>
    %33 = vector.shape_cast %32 : vector<1x128x128xbf16> to vector<128x128xbf16>
    %cst_25 = arith.constant dense<0.000000e+00> : vector<8x128xf32>
    %34 = tpu.matmul %31, %33, %cst_25 {dimension_numbers = #tpu.dot_dimension_numbers<[1], [0], [0], [1], [0, 0, 1, 1], [], []>} : vector<8x128xbf16>, vector<128x128xbf16>, vector<8x128xf32> -> vector<8x128xf32>
    %c3_26 = arith.constant 3 : index
    %c0_27 = arith.constant 0 : index
    %c0_28 = arith.constant 0 : index
    %35 = vector.load %arg2[%c3_26, %c0_27, %c0_28] : memref<13x1x128xf32, #tpu.memory_space<vmem>>, vector<1x1x128xf32>
    %36 = vector.shape_cast %35 : vector<1x1x128xf32> to vector<1x128xf32>
    %37 = vector.broadcast %36 : vector<1x128xf32> to vector<8x128xf32>
    %38 = arith.addf %34, %37 : vector<8x128xf32>
    %39 = arith.truncf %29 : vector<8x128xf32> to vector<8x128xbf16>
    %40 = vector.shape_cast %39 : vector<8x128xbf16> to vector<1x8x128xbf16>
    %41 = vector.shape_cast %40 : vector<1x8x128xbf16> to vector<1x8x128xbf16>
    %42 = vector.broadcast %41 : vector<1x8x128xbf16> to vector<9x8x128xbf16>
    %43 = tpu.iota {dimensions = array<i32: 0>} : vector<9x8x128xi32>
    %44 = tpu.iota {dimensions = array<i32: 2>} : vector<9x8x128xi32>
    %c3_i32 = arith.constant 3 : i32
    %45 = vector.broadcast %c3_i32 : i32 to vector<9x8x128xi32>
    %46 = arith.muli %45, %43 : vector<9x8x128xi32>
    %47 = arith.cmpi sge, %44, %46 : vector<9x8x128xi32>
    %c3_i32_29 = arith.constant 3 : i32
    %48 = vector.broadcast %c3_i32_29 : i32 to vector<9x8x128xi32>
    %49 = arith.muli %48, %43 : vector<9x8x128xi32>
    %c3_i32_30 = arith.constant 3 : i32
    %50 = vector.broadcast %c3_i32_30 : i32 to vector<9x8x128xi32>
    %51 = arith.addi %49, %50 : vector<9x8x128xi32>
    %52 = arith.cmpi slt, %44, %51 : vector<9x8x128xi32>
    %53 = arith.andi %47, %52 : vector<9x8x128xi1>
    %cst_31 = arith.constant 0.000000e+00 : bf16
    %54 = vector.broadcast %cst_31 : bf16 to vector<9x8x128xbf16>
    %55 = arith.select %53, %42, %54 : vector<9x8x128xi1>, vector<9x8x128xbf16>
    %56 = vector.shape_cast %55 : vector<9x8x128xbf16> to vector<72x128xbf16>
    %c4 = arith.constant 4 : index
    %c0_32 = arith.constant 0 : index
    %c0_33 = arith.constant 0 : index
    %57 = vector.load %arg1[%c4, %c0_32, %c0_33] : memref<13x128x128xbf16, #tpu.memory_space<vmem>>, vector<1x128x128xbf16>
    %58 = vector.shape_cast %57 : vector<1x128x128xbf16> to vector<128x128xbf16>
    %cst_34 = arith.constant dense<0.000000e+00> : vector<72x128xf32>
    %59 = tpu.matmul %56, %58, %cst_34 {dimension_numbers = #tpu.dot_dimension_numbers<[1], [0], [0], [1], [0, 0, 1, 1], [], []>} : vector<72x128xbf16>, vector<128x128xbf16>, vector<72x128xf32> -> vector<72x128xf32>
    %60 = vector.shape_cast %38 : vector<8x128xf32> to vector<1x8x128xf32>
    %61 = vector.shape_cast %60 : vector<1x8x128xf32> to vector<1x8x128xf32>
    %62 = vector.broadcast %61 : vector<1x8x128xf32> to vector<9x8x128xf32>
    %63 = vector.shape_cast %62 : vector<9x8x128xf32> to vector<72x128xf32>
    %64 = arith.addf %59, %63 : vector<72x128xf32>
    %cst_35 = arith.constant 0.000000e+00 : f32
    %65 = vector.broadcast %cst_35 : f32 to vector<72x128xf32>
    %66 = arith.maximumf %64, %65 : vector<72x128xf32>
    %c0_36 = arith.constant 0 : index
    %c0_37 = arith.constant 0 : index
    %67 = vector.load %arg6[%c0_36, %c0_37] : memref<72x128xf32, #tpu.memory_space<vmem>>, vector<72x128xf32>
    tpu.vector_store %arg6[%c0_36, %c0_37], %66 {strides = array<i32>} : memref<72x128xf32, #tpu.memory_space<vmem>>, vector<72x128xf32>,
    %c0_38 = arith.constant 0 : index
    %c0_39 = arith.constant 0 : index
    %68 = vector.load %arg6[%c0_38, %c0_39] : memref<72x128xf32, #tpu.memory_space<vmem>>, vector<72x128xf32>
    %69 = arith.truncf %68 : vector<72x128xf32> to vector<72x128xbf16>
    %c5 = arith.constant 5 : index
    %c0_40 = arith.constant 0 : index
    %c0_41 = arith.constant 0 : index
    %70 = vector.load %arg1[%c5, %c0_40, %c0_41] : memref<13x128x128xbf16, #tpu.memory_space<vmem>>, vector<1x128x128xbf16>
    %71 = vector.shape_cast %70 : vector<1x128x128xbf16> to vector<128x128xbf16>
    %cst_42 = arith.constant dense<0.000000e+00> : vector<72x128xf32>
    %72 = tpu.matmul %69, %71, %cst_42 {dimension_numbers = #tpu.dot_dimension_numbers<[1], [0], [0], [1], [0, 0, 1, 1], [], []>} : vector<72x128xbf16>, vector<128x128xbf16>, vector<72x128xf32> -> vector<72x128xf32>
    %c5_43 = arith.constant 5 : index
    %c0_44 = arith.constant 0 : index
    %c0_45 = arith.constant 0 : index
    %73 = vector.load %arg2[%c5_43, %c0_44, %c0_45] : memref<13x1x128xf32, #tpu.memory_space<vmem>>, vector<1x1x128xf32>
    %74 = vector.shape_cast %73 : vector<1x1x128xf32> to vector<1x128xf32>
    %75 = vector.broadcast %74 : vector<1x128xf32> to vector<72x128xf32>
    %76 = arith.addf %72, %75 : vector<72x128xf32>
    %cst_46 = arith.constant 0.000000e+00 : f32
    %77 = vector.broadcast %cst_46 : f32 to vector<72x128xf32>
    %78 = arith.maximumf %76, %77 : vector<72x128xf32>
    %79 = arith.truncf %78 : vector<72x128xf32> to vector<72x128xbf16>
    %c6 = arith.constant 6 : index
    %c0_47 = arith.constant 0 : index
    %c0_48 = arith.constant 0 : index
    %80 = vector.load %arg1[%c6, %c0_47, %c0_48] : memref<13x128x128xbf16, #tpu.memory_space<vmem>>, vector<1x128x128xbf16>
    %81 = vector.shape_cast %80 : vector<1x128x128xbf16> to vector<128x128xbf16>
    %cst_49 = arith.constant dense<0.000000e+00> : vector<72x128xf32>
    %82 = tpu.matmul %79, %81, %cst_49 {dimension_numbers = #tpu.dot_dimension_numbers<[1], [0], [0], [1], [0, 0, 1, 1], [], []>} : vector<72x128xbf16>, vector<128x128xbf16>, vector<72x128xf32> -> vector<72x128xf32>
    %c6_50 = arith.constant 6 : index
    %c0_51 = arith.constant 0 : index
    %c0_52 = arith.constant 0 : index
    %83 = vector.load %arg2[%c6_50, %c0_51, %c0_52] : memref<13x1x128xf32, #tpu.memory_space<vmem>>, vector<1x1x128xf32>
    %84 = vector.shape_cast %83 : vector<1x1x128xf32> to vector<1x128xf32>
    %85 = vector.broadcast %84 : vector<1x128xf32> to vector<72x128xf32>
    %86 = arith.addf %82, %85 : vector<72x128xf32>
    %cst_53 = arith.constant 0.000000e+00 : f32
    %87 = vector.broadcast %cst_53 : f32 to vector<72x128xf32>
    %88 = arith.maximumf %86, %87 : vector<72x128xf32>
    %89 = arith.truncf %88 : vector<72x128xf32> to vector<72x128xbf16>
    %c7 = arith.constant 7 : index
    %c0_54 = arith.constant 0 : index
    %c0_55 = arith.constant 0 : index
    %90 = vector.load %arg1[%c7, %c0_54, %c0_55] : memref<13x128x128xbf16, #tpu.memory_space<vmem>>, vector<1x128x128xbf16>
    %91 = vector.shape_cast %90 : vector<1x128x128xbf16> to vector<128x128xbf16>
    %cst_56 = arith.constant dense<0.000000e+00> : vector<72x128xf32>
    %92 = tpu.matmul %89, %91, %cst_56 {dimension_numbers = #tpu.dot_dimension_numbers<[1], [0], [0], [1], [0, 0, 1, 1], [], []>} : vector<72x128xbf16>, vector<128x128xbf16>, vector<72x128xf32> -> vector<72x128xf32>
    %c7_57 = arith.constant 7 : index
    %c0_58 = arith.constant 0 : index
    %c0_59 = arith.constant 0 : index
    %93 = vector.load %arg2[%c7_57, %c0_58, %c0_59] : memref<13x1x128xf32, #tpu.memory_space<vmem>>, vector<1x1x128xf32>
    %94 = vector.shape_cast %93 : vector<1x1x128xf32> to vector<1x128xf32>
    %95 = vector.broadcast %94 : vector<1x128xf32> to vector<72x128xf32>
    %96 = arith.addf %92, %95 : vector<72x128xf32>
    %97 = math.tanh %96 : vector<72x128xf32>
    %c0_60 = arith.constant 0 : index
    %c0_61 = arith.constant 0 : index
    %98 = vector.load %arg4[%c0_60, %c0_61] : memref<72x128xf32, #tpu.memory_space<vmem>>, vector<72x128xf32>
    tpu.vector_store %arg4[%c0_60, %c0_61], %97 {strides = array<i32>} : memref<72x128xf32, #tpu.memory_space<vmem>>, vector<72x128xf32>,
    %99 = arith.truncf %68 : vector<72x128xf32> to vector<72x128xbf16>
    %c8 = arith.constant 8 : index
    %c0_62 = arith.constant 0 : index
    %c0_63 = arith.constant 0 : index
    %100 = vector.load %arg1[%c8, %c0_62, %c0_63] : memref<13x128x128xbf16, #tpu.memory_space<vmem>>, vector<1x128x128xbf16>
    %101 = vector.shape_cast %100 : vector<1x128x128xbf16> to vector<128x128xbf16>
    %cst_64 = arith.constant dense<0.000000e+00> : vector<72x128xf32>
    %102 = tpu.matmul %99, %101, %cst_64 {dimension_numbers = #tpu.dot_dimension_numbers<[1], [0], [0], [1], [0, 0, 1, 1], [], []>} : vector<72x128xbf16>, vector<128x128xbf16>, vector<72x128xf32> -> vector<72x128xf32>
    %c8_65 = arith.constant 8 : index
    %c0_66 = arith.constant 0 : index
    %c0_67 = arith.constant 0 : index
    %103 = vector.load %arg2[%c8_65, %c0_66, %c0_67] : memref<13x1x128xf32, #tpu.memory_space<vmem>>, vector<1x1x128xf32>
    %104 = vector.shape_cast %103 : vector<1x1x128xf32> to vector<1x128xf32>
    %105 = vector.broadcast %104 : vector<1x128xf32> to vector<72x128xf32>
    %106 = arith.addf %102, %105 : vector<72x128xf32>
    %107 = arith.truncf %97 : vector<72x128xf32> to vector<72x128xbf16>
    %108 = vector.shape_cast %107 : vector<72x128xbf16> to vector<1x72x128xbf16>
    %109 = vector.shape_cast %108 : vector<1x72x128xbf16> to vector<1x72x128xbf16>
    %110 = vector.broadcast %109 : vector<1x72x128xbf16> to vector<16x72x128xbf16>
    %111 = tpu.iota {dimensions = array<i32: 0>} : vector<16x72x128xi32>
    %112 = tpu.iota {dimensions = array<i32: 2>} : vector<16x72x128xi32>
    %c3_i32_68 = arith.constant 3 : i32
    %113 = vector.broadcast %c3_i32_68 : i32 to vector<16x72x128xi32>
    %114 = arith.muli %113, %111 : vector<16x72x128xi32>
    %115 = arith.cmpi sge, %112, %114 : vector<16x72x128xi32>
    %c3_i32_69 = arith.constant 3 : i32
    %116 = vector.broadcast %c3_i32_69 : i32 to vector<16x72x128xi32>
    %117 = arith.muli %116, %111 : vector<16x72x128xi32>
    %c3_i32_70 = arith.constant 3 : i32
    %118 = vector.broadcast %c3_i32_70 : i32 to vector<16x72x128xi32>
    %119 = arith.addi %117, %118 : vector<16x72x128xi32>
    %120 = arith.cmpi slt, %112, %119 : vector<16x72x128xi32>
    %121 = arith.andi %115, %120 : vector<16x72x128xi1>
    %cst_71 = arith.constant 0.000000e+00 : bf16
    %122 = vector.broadcast %cst_71 : bf16 to vector<16x72x128xbf16>
    %123 = arith.select %121, %110, %122 : vector<16x72x128xi1>, vector<16x72x128xbf16>
    %124 = vector.shape_cast %123 : vector<16x72x128xbf16> to vector<1152x128xbf16>
    %c9 = arith.constant 9 : index
    %c0_72 = arith.constant 0 : index
    %c0_73 = arith.constant 0 : index
    %125 = vector.load %arg1[%c9, %c0_72, %c0_73] : memref<13x128x128xbf16, #tpu.memory_space<vmem>>, vector<1x128x128xbf16>
    %126 = vector.shape_cast %125 : vector<1x128x128xbf16> to vector<128x128xbf16>
    %cst_74 = arith.constant dense<0.000000e+00> : vector<1152x128xf32>
    %127 = tpu.matmul %124, %126, %cst_74 {dimension_numbers = #tpu.dot_dimension_numbers<[1], [0], [0], [1], [0, 0, 1, 1], [], []>} : vector<1152x128xbf16>, vector<128x128xbf16>, vector<1152x128xf32> -> vector<1152x128xf32>
    %128 = vector.shape_cast %106 : vector<72x128xf32> to vector<1x72x128xf32>
    %129 = vector.shape_cast %128 : vector<1x72x128xf32> to vector<1x72x128xf32>
    %130 = vector.broadcast %129 : vector<1x72x128xf32> to vector<16x72x128xf32>
    %131 = vector.shape_cast %130 : vector<16x72x128xf32> to vector<1152x128xf32>
    %132 = arith.addf %127, %131 : vector<1152x128xf32>
    %cst_75 = arith.constant 0.000000e+00 : f32
    %133 = vector.broadcast %cst_75 : f32 to vector<1152x128xf32>
    %134 = arith.maximumf %132, %133 : vector<1152x128xf32>
    %c0_76 = arith.constant 0 : index
    %c0_77 = arith.constant 0 : index
    %135 = vector.load %arg7[%c0_76, %c0_77] : memref<1152x128xf32, #tpu.memory_space<vmem>>, vector<1152x128xf32>
    tpu.vector_store %arg7[%c0_76, %c0_77], %134 {strides = array<i32>} : memref<1152x128xf32, #tpu.memory_space<vmem>>, vector<1152x128xf32>,
    %c0_78 = arith.constant 0 : index
    %c0_79 = arith.constant 0 : index
    %136 = vector.load %arg7[%c0_78, %c0_79] : memref<1152x128xf32, #tpu.memory_space<vmem>>, vector<1152x128xf32>
    %137 = arith.truncf %136 : vector<1152x128xf32> to vector<1152x128xbf16>
    %c10 = arith.constant 10 : index
    %c0_80 = arith.constant 0 : index
    %c0_81 = arith.constant 0 : index
    %138 = vector.load %arg1[%c10, %c0_80, %c0_81] : memref<13x128x128xbf16, #tpu.memory_space<vmem>>, vector<1x128x128xbf16>
    %139 = vector.shape_cast %138 : vector<1x128x128xbf16> to vector<128x128xbf16>
    %cst_82 = arith.constant dense<0.000000e+00> : vector<1152x128xf32>
    %140 = tpu.matmul %137, %139, %cst_82 {dimension_numbers = #tpu.dot_dimension_numbers<[1], [0], [0], [1], [0, 0, 1, 1], [], []>} : vector<1152x128xbf16>, vector<128x128xbf16>, vector<1152x128xf32> -> vector<1152x128xf32>
    %c10_83 = arith.constant 10 : index
    %c0_84 = arith.constant 0 : index
    %c0_85 = arith.constant 0 : index
    %141 = vector.load %arg2[%c10_83, %c0_84, %c0_85] : memref<13x1x128xf32, #tpu.memory_space<vmem>>, vector<1x1x128xf32>
    %142 = vector.shape_cast %141 : vector<1x1x128xf32> to vector<1x128xf32>
    %143 = vector.broadcast %142 : vector<1x128xf32> to vector<1152x128xf32>
    %144 = arith.addf %140, %143 : vector<1152x128xf32>
    %cst_86 = arith.constant 0.000000e+00 : f32
    %145 = vector.broadcast %cst_86 : f32 to vector<1152x128xf32>
    %146 = arith.maximumf %144, %145 : vector<1152x128xf32>
    %147 = arith.truncf %146 : vector<1152x128xf32> to vector<1152x128xbf16>
    %c11 = arith.constant 11 : index
    %c0_87 = arith.constant 0 : index
    %c0_88 = arith.constant 0 : index
    %148 = vector.load %arg1[%c11, %c0_87, %c0_88] : memref<13x128x128xbf16, #tpu.memory_space<vmem>>, vector<1x128x128xbf16>
    %149 = vector.shape_cast %148 : vector<1x128x128xbf16> to vector<128x128xbf16>
    %cst_89 = arith.constant dense<0.000000e+00> : vector<1152x128xf32>
    %150 = tpu.matmul %147, %149, %cst_89 {dimension_numbers = #tpu.dot_dimension_numbers<[1], [0], [0], [1], [0, 0, 1, 1], [], []>} : vector<1152x128xbf16>, vector<128x128xbf16>, vector<1152x128xf32> -> vector<1152x128xf32>
    %c11_90 = arith.constant 11 : index
    %c0_91 = arith.constant 0 : index
    %c0_92 = arith.constant 0 : index
    %151 = vector.load %arg2[%c11_90, %c0_91, %c0_92] : memref<13x1x128xf32, #tpu.memory_space<vmem>>, vector<1x1x128xf32>
    %152 = vector.shape_cast %151 : vector<1x1x128xf32> to vector<1x128xf32>
    %153 = vector.broadcast %152 : vector<1x128xf32> to vector<1152x128xf32>
    %154 = arith.addf %150, %153 : vector<1152x128xf32>
    %cst_93 = arith.constant 0.000000e+00 : f32
    %155 = vector.broadcast %cst_93 : f32 to vector<1152x128xf32>
    %156 = arith.maximumf %154, %155 : vector<1152x128xf32>
    %157 = arith.truncf %156 : vector<1152x128xf32> to vector<1152x128xbf16>
    %c12 = arith.constant 12 : index
    %c0_94 = arith.constant 0 : index
    %c0_95 = arith.constant 0 : index
    %158 = vector.load %arg1[%c12, %c0_94, %c0_95] : memref<13x128x128xbf16, #tpu.memory_space<vmem>>, vector<1x128x128xbf16>
    %159 = vector.shape_cast %158 : vector<1x128x128xbf16> to vector<128x128xbf16>
    %cst_96 = arith.constant dense<0.000000e+00> : vector<1152x128xf32>
    %160 = tpu.matmul %157, %159, %cst_96 {dimension_numbers = #tpu.dot_dimension_numbers<[1], [0], [0], [1], [0, 0, 1, 1], [], []>} : vector<1152x128xbf16>, vector<128x128xbf16>, vector<1152x128xf32> -> vector<1152x128xf32>
    %c12_97 = arith.constant 12 : index
    %c0_98 = arith.constant 0 : index
    %c0_99 = arith.constant 0 : index
    %161 = vector.load %arg2[%c12_97, %c0_98, %c0_99] : memref<13x1x128xf32, #tpu.memory_space<vmem>>, vector<1x1x128xf32>
    %162 = vector.shape_cast %161 : vector<1x1x128xf32> to vector<1x128xf32>
    %163 = vector.broadcast %162 : vector<1x128xf32> to vector<1152x128xf32>
    %164 = arith.addf %160, %163 : vector<1152x128xf32>
    %165 = math.tanh %164 : vector<1152x128xf32>
    %c0_100 = arith.constant 0 : index
    %c0_101 = arith.constant 0 : index
    %166 = vector.load %arg5[%c0_100, %c0_101] : memref<1152x128xf32, #tpu.memory_space<vmem>>, vector<1152x128xf32>
    tpu.vector_store %arg5[%c0_100, %c0_101], %165 {strides = array<i32>} : memref<1152x128xf32, #tpu.memory_space<vmem>>, vector<1152x128xf32>,
    return
  }
}

</mosaic_0001>

<llo_original>
// kernel: full_decoder_forward.1
$region0: #{full_decoder_forward.1}
  #allocation0 [shape = 'u32[]', space=smem, size = 0x4, offset = 0x4, fixed_abs, tag = 'smem constant byte address 0x4 - core index']
  #allocation1 [shape = 'u32[144,128]{1,0:T(1,128)}', space=vmem, size = 0x12000, scoped, tag = 'internal scratch']
  #allocation2 [shape = 'f32[72,128]{1,0:T(8,128)}', space=vmem, size = 0x9000, scoped, tag = 'scratch operand']
  #allocation3 [shape = 'f32[1152,128]{1,0:T(8,128)}', space=vmem, size = 0x90000, scoped, tag = 'scratch operand']
  %s0 = inlined_call_operand.vmem [shape: f32[8,128], index: 0, kind: input, shape index: {}]
  %s1 = inlined_call_operand.hbm [shape: bf16[13,128,128], index: 1, kind: input, shape index: {}]
  %s2 = inlined_call_operand.hbm [shape: f32[13,1,128], index: 2, kind: input, shape index: {}]
  %s3 = inlined_call_operand.vmem [shape: f32[8,128], index: 3, kind: output, shape index: {0}]
  %s4 = inlined_call_operand.vmem [shape: f32[72,128], index: 4, kind: output, shape index: {1}]
  %s5 = inlined_call_operand.vmem [shape: f32[1152,128], index: 5, kind: output, shape index: {2}]
  %6 = xla_tuple %s3, %s4, %s5
  %s7 = sld [smem:[#allocation0]]
  $region46: #{full_decoder_forward.1} parent=0
    _
  %s9 = ssub.s32 1, %s7
  %s10 = scalar_select 0, %s9, %s7
  $region1: #{full_decoder_forward.1} parent=0
    #allocation4 [shape = 'u8[425984]{0}', space=vmem, size = 0x68000, scoped, tag = 'input window, operand 1, single buffered']
    #allocation5 [shape = 's32[1]{0}', space=sflag, size = 0x4, scoped, tag = 'scoped memory for full_decoder_forward.1']
    #allocation6 [shape = 'u8[6656]{0}', space=vmem, size = 0x1c00, scoped, tag = 'input window, operand 2, single buffered']
    #allocation7 [shape = 's32[1]{0}', space=sflag, size = 0x4, scoped, tag = 'scoped memory for full_decoder_forward.1']
    %11 = vsyncpa [#allocation5], 0
    %12 = vsyncpa [#allocation7], 0
    // Predicated region
    $region2: #{full_decoder_forward.1} parent=1 // pred_check
      _
    $region3: #{full_decoder_forward.1} parent=1 // pred_check_branch
      %14 = sbr.rel (0) target = $region5
    $region4: #{full_decoder_forward.1} parent=1 // pred_region
      _
    $region5: #{full_decoder_forward.1} parent=1 // pred_fallthru
      _
    // Predicated region
    $region6: #{full_decoder_forward.1} parent=1 // pred_check
      _
    $region7: #{full_decoder_forward.1} parent=1 // pred_check_branch
      %16 = sbr.rel (0) target = $region9
    $region8: #{full_decoder_forward.1} parent=1 // pred_region
      %s18 = ssub.s32 13312, 13312
      %19 = vsyncadd [#allocation5], %s18
      %s20 = sshll.u32 [#allocation4], 4
      %s21 = int_to_ptr.vmem [resolvable:$true] %s20
      %26 = dma.hbm_to_vmem [thread:$0]  %s1, 13312, %s21, [#allocation5], 64, 64, 4
    $region9: #{full_decoder_forward.1} parent=1 // pred_fallthru
      _
    // Predicated region
    $region10: #{full_decoder_forward.1} parent=1 // pred_check
      _
    $region11: #{full_decoder_forward.1} parent=1 // pred_check_branch
      %28 = sbr.rel (0) target = $region13
    $region12: #{full_decoder_forward.1} parent=1 // pred_region
      %s30 = ssub.s32 208, 208
      %31 = vsyncadd [#allocation7], %s30
      %s32 = sshll.u32 [#allocation6], 4
      %s33 = int_to_ptr.vmem [resolvable:$true] %s32
      %38 = dma.hbm_to_vmem [thread:$0]  %s2, 208, %s33, [#allocation7], 16, 16, 1
    $region13: #{full_decoder_forward.1} parent=1 // pred_fallthru
      _
    // Predicated region
    $region14: #{full_decoder_forward.1} parent=1 // pred_check
      _
    $region15: #{full_decoder_forward.1} parent=1 // pred_check_branch
      %40 = sbr.rel (0) target = $region17
    $region16: #{full_decoder_forward.1} parent=1 // pred_region
      %41 = dma.done [#allocation5], 13312
    $region17: #{full_decoder_forward.1} parent=1 // pred_fallthru
      _
    // Predicated region
    $region18: #{full_decoder_forward.1} parent=1 // pred_check
      _
    $region19: #{full_decoder_forward.1} parent=1 // pred_check_branch
      %43 = sbr.rel (0) target = $region21
    $region20: #{full_decoder_forward.1} parent=1 // pred_region
      %44 = dma.done [#allocation7], 208
    $region21: #{full_decoder_forward.1} parent=1 // pred_fallthru
      _
    %v48 = vld [vmem:[%s0] sm:$0xff]
    %v49 = vpack.c.bf16 %v48, %v48
    %v50 = vld [vmem:[#allocation4] sm:$0xf]
    %v51 = vld [vmem:[#allocation4 + $0x4] sm:$0xf]
    %v52 = vld [vmem:[#allocation4 + $0x8] sm:$0xf]
    %v53 = vld [vmem:[#allocation4 + $0xc] sm:$0xf]
    %v54 = vld [vmem:[#allocation4 + $0x10] sm:$0xf]
    %v55 = vld [vmem:[#allocation4 + $0x14] sm:$0xf]
    %v56 = vld [vmem:[#allocation4 + $0x18] sm:$0xf]
    %v57 = vld [vmem:[#allocation4 + $0x1c] sm:$0xf]
    %v58 = vld [vmem:[#allocation4 + $0x20] sm:$0xf]
    %v59 = vld [vmem:[#allocation4 + $0x24] sm:$0xf]
    %v60 = vld [vmem:[#allocation4 + $0x28] sm:$0xf]
    %v61 = vld [vmem:[#allocation4 + $0x2c] sm:$0xf]
    %v62 = vld [vmem:[#allocation4 + $0x30] sm:$0xf]
    %v63 = vld [vmem:[#allocation4 + $0x34] sm:$0xf]
    %v64 = vld [vmem:[#allocation4 + $0x38] sm:$0xf]
    %v65 = vld [vmem:[#allocation4 + $0x3c] sm:$0xf]
    %v66 = vld [vmem:[#allocation6] sm:$0x1]
    %v68 = vlaneseq
    %v69 = vshrl.u32 %v68, 7
    %v70 = vsub.s32 0, %v69
    %v71 = vrot.slane %v66, %v70
    %v89 = vunpack.c.l.b16 %v50
    %v90 = vunpack.c.l.b16 %v51
    %v91 = vunpack.c.l.b16 %v52
    %v92 = vunpack.c.l.b16 %v53
    %v93 = vunpack.c.l.b16 %v54
    %v94 = vunpack.c.l.b16 %v55
    %v95 = vunpack.c.l.b16 %v56
    %v96 = vunpack.c.l.b16 %v57
    %v97 = vunpack.c.l.b16 %v58
    %v98 = vunpack.c.l.b16 %v59
    %v99 = vunpack.c.l.b16 %v60
    %v100 = vunpack.c.l.b16 %v61
    %v101 = vunpack.c.l.b16 %v62
    %v102 = vunpack.c.l.b16 %v63
    %v103 = vunpack.c.l.b16 %v64
    %v104 = vunpack.c.l.b16 %v65
    %v105 = vpack.c.b16 %v90, %v89
    %v106 = vpack.c.b16 %v92, %v91
    %v107 = vpack.c.b16 %v94, %v93
    %v108 = vpack.c.b16 %v96, %v95
    %v109 = vpack.c.b16 %v98, %v97
    %v110 = vpack.c.b16 %v100, %v99
    %v111 = vpack.c.b16 %v102, %v101
    %v112 = vpack.c.b16 %v104, %v103
    %121 = vmatprep.subr.bf16.mxu0 0
    %122 = vmatpush1.bf16.msra.mxu0 %v112
    %123 = vmatprep.subr.bf16.mxu0 0
    %124 = vmatpush1.bf16.msra.mxu0 %v111
    %125 = vmatprep.subr.bf16.mxu0 0
    %126 = vmatpush1.bf16.msra.mxu0 %v110
    %127 = vmatprep.subr.bf16.mxu0 0
    %128 = vmatpush1.bf16.msra.mxu0 %v109
    %129 = vmatprep.subr.bf16.mxu0 0
    %130 = vmatpush1.bf16.msra.mxu0 %v108
    %131 = vmatprep.subr.bf16.mxu0 0
    %132 = vmatpush1.bf16.msra.mxu0 %v107
    %133 = vmatprep.subr.bf16.mxu0 0
    %134 = vmatpush1.bf16.msra.mxu0 %v106
    %135 = vmatprep.subr.bf16.mxu0 0
    %136 = vmatpush1.bf16.msra.mxu0 %v105
    %137 = vmatprep.subr.bf16.mxu0 0
    %138 = vmatpush2.bf16.msra.mxu0 0
    %139 = vmatprep.subr.bf16.mxu0 0
    %140 = vmatpush2.bf16.msra.mxu0 0
    %141 = vmatprep.subr.bf16.mxu0 0
    %142 = vmatpush2.bf16.msra.mxu0 0
    %143 = vmatprep.subr.bf16.mxu0 0
    %144 = vmatpush2.bf16.msra.mxu0 0
    %145 = vmatprep.subr.bf16.mxu0 0
    %146 = vmatpush2.bf16.msra.mxu0 0
    %147 = vmatprep.subr.bf16.mxu0 0
    %148 = vmatpush2.bf16.msra.mxu0 0
    %149 = vmatprep.subr.bf16.mxu0 0
    %150 = vmatpush2.bf16.msra.mxu0 0
    %151 = vmatprep.subr.bf16.mxu0 0
    %152 = vmatpush2.bf16.msra.mxu0 0
    %153 = vmatprep.mubr.bf16.mxu0 0
    %154 = vmatmul.mubr.bf16.gmra.mxu0 %v49
    %v155 = vpop.f32.mrf.mxu0
    %v156 = vadd.f32 %v71, %v155
    %v157 = vpop.f32.mrf.mxu0
    %v158 = vpop.f32.mrf.mxu0
    %v159 = vpop.f32.mrf.mxu0
    %160 = vdwg.mxu0
    %v161 = vmax.f32 %v156, 0.0
    %v162 = vpack.c.bf16 %v161, %v161
    %s163 = scalar_lea.vmem [#allocation4], 64
    %v164 = vld [vmem:[%s163] sm:$0xf]
    %v165 = vld [vmem:[%s163 + $0x4] sm:$0xf]
    %v166 = vld [vmem:[%s163 + $0x8] sm:$0xf]
    %v167 = vld [vmem:[%s163 + $0xc] sm:$0xf]
    %v168 = vld [vmem:[%s163 + $0x10] sm:$0xf]
    %v169 = vld [vmem:[%s163 + $0x14] sm:$0xf]
    %v170 = vld [vmem:[%s163 + $0x18] sm:$0xf]
    %v171 = vld [vmem:[%s163 + $0x1c] sm:$0xf]
    %v172 = vld [vmem:[%s163 + $0x20] sm:$0xf]
    %v173 = vld [vmem:[%s163 + $0x24] sm:$0xf]
    %v174 = vld [vmem:[%s163 + $0x28] sm:$0xf]
    %v175 = vld [vmem:[%s163 + $0x2c] sm:$0xf]
    %v176 = vld [vmem:[%s163 + $0x30] sm:$0xf]
    %v177 = vld [vmem:[%s163 + $0x34] sm:$0xf]
    %v178 = vld [vmem:[%s163 + $0x38] sm:$0xf]
    %v179 = vld [vmem:[%s163 + $0x3c] sm:$0xf]
    %s180 = scalar_lea.vmem [#allocation6], 1
    %v181 = vld [vmem:[%s180] sm:$0x1]
    %v183 = vlaneseq
    %v184 = vshrl.u32 %v183, 7
    %v185 = vsub.s32 0, %v184
    %v186 = vrot.slane %v181, %v185
    %v204 = vunpack.c.l.b16 %v164
    %v205 = vunpack.c.l.b16 %v165
    %v206 = vunpack.c.l.b16 %v166
    %v207 = vunpack.c.l.b16 %v167
    %v208 = vunpack.c.l.b16 %v168
    %v209 = vunpack.c.l.b16 %v169
    %v210 = vunpack.c.l.b16 %v170
    %v211 = vunpack.c.l.b16 %v171
    %v212 = vunpack.c.l.b16 %v172
    %v213 = vunpack.c.l.b16 %v173
    %v214 = vunpack.c.l.b16 %v174
    %v215 = vunpack.c.l.b16 %v175
    %v216 = vunpack.c.l.b16 %v176
    %v217 = vunpack.c.l.b16 %v177
    %v218 = vunpack.c.l.b16 %v178
    %v219 = vunpack.c.l.b16 %v179
    %v220 = vpack.c.b16 %v205, %v204
    %v221 = vpack.c.b16 %v207, %v206
    %v222 = vpack.c.b16 %v209, %v208
    %v223 = vpack.c.b16 %v211, %v210
    %v224 = vpack.c.b16 %v213, %v212
    %v225 = vpack.c.b16 %v215, %v214
    %v226 = vpack.c.b16 %v217, %v216
    %v227 = vpack.c.b16 %v219, %v218
    %236 = vmatprep.subr.bf16.mxu0 0
    %237 = vmatpush1.bf16.msra.mxu0 %v227
    %238 = vmatprep.subr.bf16.mxu0 0
    %239 = vmatpush1.bf16.msra.mxu0 %v226
    %240 = vmatprep.subr.bf16.mxu0 0
    %241 = vmatpush1.bf16.msra.mxu0 %v225
    %242 = vmatprep.subr.bf16.mxu0 0
    %243 = vmatpush1.bf16.msra.mxu0 %v224
    %244 = vmatprep.subr.bf16.mxu0 0
    %245 = vmatpush1.bf16.msra.mxu0 %v223
    %246 = vmatprep.subr.bf16.mxu0 0
    %247 = vmatpush1.bf16.msra.mxu0 %v222
    %248 = vmatprep.subr.bf16.mxu0 0
    %249 = vmatpush1.bf16.msra.mxu0 %v221
    %250 = vmatprep.subr.bf16.mxu0 0
    %251 = vmatpush1.bf16.msra.mxu0 %v220
    %252 = vmatprep.subr.bf16.mxu0 0
    %253 = vmatpush2.bf16.msra.mxu0 0
    %254 = vmatprep.subr.bf16.mxu0 0
    %255 = vmatpush2.bf16.msra.mxu0 0
    %256 = vmatprep.subr.bf16.mxu0 0
    %257 = vmatpush2.bf16.msra.mxu0 0
    %258 = vmatprep.subr.bf16.mxu0 0
    %259 = vmatpush2.bf16.msra.mxu0 0
    %260 = vmatprep.subr.bf16.mxu0 0
    %261 = vmatpush2.bf16.msra.mxu0 0
    %262 = vmatprep.subr.bf16.mxu0 0
    %263 = vmatpush2.bf16.msra.mxu0 0
    %264 = vmatprep.subr.bf16.mxu0 0
    %265 = vmatpush2.bf16.msra.mxu0 0
    %266 = vmatprep.subr.bf16.mxu0 0
    %267 = vmatpush2.bf16.msra.mxu0 0
    %268 = vmatprep.mubr.bf16.mxu0 0
    %269 = vmatmul.mubr.bf16.gmra.mxu0 %v162
    %v270 = vpop.f32.mrf.mxu0
    %v271 = vadd.f32 %v186, %v270
    %v272 = vpop.f32.mrf.mxu0
    %v273 = vpop.f32.mrf.mxu0
    %v274 = vpop.f32.mrf.mxu0
    %275 = vdwg.mxu0
    %v276 = vmax.f32 %v271, 0.0
    %v277 = vpack.c.bf16 %v276, %v276
    %s278 = scalar_lea.vmem [#allocation4], 128
    %v279 = vld [vmem:[%s278] sm:$0xf]
    %v280 = vld [vmem:[%s278 + $0x4] sm:$0xf]
    %v281 = vld [vmem:[%s278 + $0x8] sm:$0xf]
    %v282 = vld [vmem:[%s278 + $0xc] sm:$0xf]
    %v283 = vld [vmem:[%s278 + $0x10] sm:$0xf]
    %v284 = vld [vmem:[%s278 + $0x14] sm:$0xf]
    %v285 = vld [vmem:[%s278 + $0x18] sm:$0xf]
    %v286 = vld [vmem:[%s278 + $0x1c] sm:$0xf]
    %v287 = vld [vmem:[%s278 + $0x20] sm:$0xf]
    %v288 = vld [vmem:[%s278 + $0x24] sm:$0xf]
    %v289 = vld [vmem:[%s278 + $0x28] sm:$0xf]
    %v290 = vld [vmem:[%s278 + $0x2c] sm:$0xf]
    %v291 = vld [vmem:[%s278 + $0x30] sm:$0xf]
    %v292 = vld [vmem:[%s278 + $0x34] sm:$0xf]
    %v293 = vld [vmem:[%s278 + $0x38] sm:$0xf]
    %v294 = vld [vmem:[%s278 + $0x3c] sm:$0xf]
    %s295 = scalar_lea.vmem [#allocation6], 2
    %v296 = vld [vmem:[%s295] sm:$0x1]
    %v298 = vlaneseq
    %v299 = vshrl.u32 %v298, 7
    %v300 = vsub.s32 0, %v299
    %v301 = vrot.slane %v296, %v300
    %v319 = vunpack.c.l.b16 %v279
    %v320 = vunpack.c.l.b16 %v280
    %v321 = vunpack.c.l.b16 %v281
    %v322 = vunpack.c.l.b16 %v282
    %v323 = vunpack.c.l.b16 %v283
    %v324 = vunpack.c.l.b16 %v284
    %v325 = vunpack.c.l.b16 %v285
    %v326 = vunpack.c.l.b16 %v286
    %v327 = vunpack.c.l.b16 %v287
    %v328 = vunpack.c.l.b16 %v288
    %v329 = vunpack.c.l.b16 %v289
    %v330 = vunpack.c.l.b16 %v290
    %v331 = vunpack.c.l.b16 %v291
    %v332 = vunpack.c.l.b16 %v292
    %v333 = vunpack.c.l.b16 %v293
    %v334 = vunpack.c.l.b16 %v294
    %v335 = vpack.c.b16 %v320, %v319
    %v336 = vpack.c.b16 %v322, %v321
    %v337 = vpack.c.b16 %v324, %v323
    %v338 = vpack.c.b16 %v326, %v325
    %v339 = vpack.c.b16 %v328, %v327
    %v340 = vpack.c.b16 %v330, %v329
    %v341 = vpack.c.b16 %v332, %v331
    %v342 = vpack.c.b16 %v334, %v333
    %351 = vmatprep.subr.bf16.mxu0 0
    %352 = vmatpush1.bf16.msra.mxu0 %v342
    %353 = vmatprep.subr.bf16.mxu0 0
    %354 = vmatpush1.bf16.msra.mxu0 %v341
    %355 = vmatprep.subr.bf16.mxu0 0
    %356 = vmatpush1.bf16.msra.mxu0 %v340
    %357 = vmatprep.subr.bf16.mxu0 0
    %358 = vmatpush1.bf16.msra.mxu0 %v339
    %359 = vmatprep.subr.bf16.mxu0 0
    %360 = vmatpush1.bf16.msra.mxu0 %v338
    %361 = vmatprep.subr.bf16.mxu0 0
    %362 = vmatpush1.bf16.msra.mxu0 %v337
    %363 = vmatprep.subr.bf16.mxu0 0
    %364 = vmatpush1.bf16.msra.mxu0 %v336
    %365 = vmatprep.subr.bf16.mxu0 0
    %366 = vmatpush1.bf16.msra.mxu0 %v335
    %367 = vmatprep.subr.bf16.mxu0 0
    %368 = vmatpush2.bf16.msra.mxu0 0
    %369 = vmatprep.subr.bf16.mxu0 0
    %370 = vmatpush2.bf16.msra.mxu0 0
    %371 = vmatprep.subr.bf16.mxu0 0
    %372 = vmatpush2.bf16.msra.mxu0 0
    %373 = vmatprep.subr.bf16.mxu0 0
    %374 = vmatpush2.bf16.msra.mxu0 0
    %375 = vmatprep.subr.bf16.mxu0 0
    %376 = vmatpush2.bf16.msra.mxu0 0
    %377 = vmatprep.subr.bf16.mxu0 0
    %378 = vmatpush2.bf16.msra.mxu0 0
    %379 = vmatprep.subr.bf16.mxu0 0
    %380 = vmatpush2.bf16.msra.mxu0 0
    %381 = vmatprep.subr.bf16.mxu0 0
    %382 = vmatpush2.bf16.msra.mxu0 0
    %383 = vmatprep.mubr.bf16.mxu0 0
    %384 = vmatmul.mubr.bf16.gmra.mxu0 %v277
    %v385 = vpop.f32.mrf.mxu0
    %v386 = vadd.f32 %v301, %v385
    %v387 = vpop.f32.mrf.mxu0
    %v388 = vpop.f32.mrf.mxu0
    %v389 = vpop.f32.mrf.mxu0
    %390 = vdwg.mxu0
    %v391 = vtanh.pop %v386
    %392 = vst [vmem:[%s3] sm:$0xff] %v391
    %s393 = scalar_lea.vmem [#allocation4], 192
    %v394 = vld [vmem:[%s393] sm:$0xf]
    %v395 = vld [vmem:[%s393 + $0x4] sm:$0xf]
    %v396 = vld [vmem:[%s393 + $0x8] sm:$0xf]
    %v397 = vld [vmem:[%s393 + $0xc] sm:$0xf]
    %v398 = vld [vmem:[%s393 + $0x10] sm:$0xf]
    %v399 = vld [vmem:[%s393 + $0x14] sm:$0xf]
    %v400 = vld [vmem:[%s393 + $0x18] sm:$0xf]
    %v401 = vld [vmem:[%s393 + $0x1c] sm:$0xf]
    %v402 = vld [vmem:[%s393 + $0x20] sm:$0xf]
    %v403 = vld [vmem:[%s393 + $0x24] sm:$0xf]
    %v404 = vld [vmem:[%s393 + $0x28] sm:$0xf]
    %v405 = vld [vmem:[%s393 + $0x2c] sm:$0xf]
    %v406 = vld [vmem:[%s393 + $0x30] sm:$0xf]
    %v407 = vld [vmem:[%s393 + $0x34] sm:$0xf]
    %v408 = vld [vmem:[%s393 + $0x38] sm:$0xf]
    %v409 = vld [vmem:[%s393 + $0x3c] sm:$0xf]
    %s410 = scalar_lea.vmem [#allocation6], 3
    %v411 = vld [vmem:[%s410] sm:$0x1]
    %v413 = vlaneseq
    %v414 = vshrl.u32 %v413, 7
    %v415 = vsub.s32 0, %v414
    %v416 = vrot.slane %v411, %v415
    %v434 = vunpack.c.l.b16 %v394
    %v435 = vunpack.c.l.b16 %v395
    %v436 = vunpack.c.l.b16 %v396
    %v437 = vunpack.c.l.b16 %v397
    %v438 = vunpack.c.l.b16 %v398
    %v439 = vunpack.c.l.b16 %v399
    %v440 = vunpack.c.l.b16 %v400
    %v441 = vunpack.c.l.b16 %v401
    %v442 = vunpack.c.l.b16 %v402
    %v443 = vunpack.c.l.b16 %v403
    %v444 = vunpack.c.l.b16 %v404
    %v445 = vunpack.c.l.b16 %v405
    %v446 = vunpack.c.l.b16 %v406
    %v447 = vunpack.c.l.b16 %v407
    %v448 = vunpack.c.l.b16 %v408
    %v449 = vunpack.c.l.b16 %v409
    %v450 = vpack.c.b16 %v435, %v434
    %v451 = vpack.c.b16 %v437, %v436
    %v452 = vpack.c.b16 %v439, %v438
    %v453 = vpack.c.b16 %v441, %v440
    %v454 = vpack.c.b16 %v443, %v442
    %v455 = vpack.c.b16 %v445, %v444
    %v456 = vpack.c.b16 %v447, %v446
    %v457 = vpack.c.b16 %v449, %v448
    %466 = vmatprep.subr.bf16.mxu0 0
    %467 = vmatpush1.bf16.msra.mxu0 %v457
    %468 = vmatprep.subr.bf16.mxu0 0
    %469 = vmatpush1.bf16.msra.mxu0 %v456
    %470 = vmatprep.subr.bf16.mxu0 0
    %471 = vmatpush1.bf16.msra.mxu0 %v455
    %472 = vmatprep.subr.bf16.mxu0 0
    %473 = vmatpush1.bf16.msra.mxu0 %v454
    %474 = vmatprep.subr.bf16.mxu0 0
    %475 = vmatpush1.bf16.msra.mxu0 %v453
    %476 = vmatprep.subr.bf16.mxu0 0
    %477 = vmatpush1.bf16.msra.mxu0 %v452
    %478 = vmatprep.subr.bf16.mxu0 0
    %479 = vmatpush1.bf16.msra.mxu0 %v451
    %480 = vmatprep.subr.bf16.mxu0 0
    %481 = vmatpush1.bf16.msra.mxu0 %v450
    %482 = vmatprep.subr.bf16.mxu0 0
    %483 = vmatpush2.bf16.msra.mxu0 0
    %484 = vmatprep.subr.bf16.mxu0 0
    %485 = vmatpush2.bf16.msra.mxu0 0
    %486 = vmatprep.subr.bf16.mxu0 0
    %487 = vmatpush2.bf16.msra.mxu0 0
    %488 = vmatprep.subr.bf16.mxu0 0
    %489 = vmatpush2.bf16.msra.mxu0 0
    %490 = vmatprep.subr.bf16.mxu0 0
    %491 = vmatpush2.bf16.msra.mxu0 0
    %492 = vmatprep.subr.bf16.mxu0 0
    %493 = vmatpush2.bf16.msra.mxu0 0
    %494 = vmatprep.subr.bf16.mxu0 0
    %495 = vmatpush2.bf16.msra.mxu0 0
    %496 = vmatprep.subr.bf16.mxu0 0
    %497 = vmatpush2.bf16.msra.mxu0 0
    %498 = vmatprep.mubr.bf16.mxu0 0
    %499 = vmatmul.mubr.bf16.gmra.mxu0 %v49
    %v500 = vpop.f32.mrf.mxu0
    %v501 = vadd.f32 %v416, %v500
    %v502 = vpop.f32.mrf.mxu0
    %v503 = vpop.f32.mrf.mxu0
    %v504 = vpop.f32.mrf.mxu0
    %505 = vdwg.mxu0
    %v506 = vpack.c.bf16 %v391, %v391
    %v507 = vlaneseq
    %v508 = vand.u32 %v507, 127
    %vm509 = vcmp.ge.s32.totalorder %v508, 0
    %vm510 = vcmp.ge.s32.totalorder %v508, 3
    %vm511 = vcmp.ge.s32.totalorder %v508, 6
    %vm512 = vcmp.ge.s32.totalorder %v508, 9
    %vm513 = vcmp.ge.s32.totalorder %v508, 12
    %vm514 = vcmp.ge.s32.totalorder %v508, 15
    %vm515 = vcmp.ge.s32.totalorder %v508, 18
    %vm516 = vcmp.ge.s32.totalorder %v508, 21
    %vm517 = vcmp.ge.s32.totalorder %v508, 24
    %vm518 = vcmp.lt.s32.totalorder %v508, 3
    %vm519 = vcmp.lt.s32.totalorder %v508, 6
    %vm520 = vcmp.lt.s32.totalorder %v508, 9
    %vm521 = vcmp.lt.s32.totalorder %v508, 12
    %vm522 = vcmp.lt.s32.totalorder %v508, 15
    %vm523 = vcmp.lt.s32.totalorder %v508, 18
    %vm524 = vcmp.lt.s32.totalorder %v508, 21
    %vm525 = vcmp.lt.s32.totalorder %v508, 24
    %vm526 = vcmp.lt.s32.totalorder %v508, 27
    %vm527 = vmand %vm509, %vm518
    %vm528 = vmand %vm510, %vm519
    %vm529 = vmand %vm511, %vm520
    %vm530 = vmand %vm512, %vm521
    %vm531 = vmand %vm513, %vm522
    %vm532 = vmand %vm514, %vm523
    %vm533 = vmand %vm515, %vm524
    %vm534 = vmand %vm516, %vm525
    %vm535 = vmand %vm517, %vm526
    %vm536 = vmpackc.low %vm527, %vm527
    %vm537 = vmpackc.low %vm528, %vm528
    %vm538 = vmpackc.low %vm529, %vm529
    %vm539 = vmpackc.low %vm530, %vm530
    %vm540 = vmpackc.low %vm531, %vm531
    %vm541 = vmpackc.low %vm532, %vm532
    %vm542 = vmpackc.low %vm533, %vm533
    %vm543 = vmpackc.low %vm534, %vm534
    %vm544 = vmpackc.low %vm535, %vm535
    %v545 = vsel %vm536, %v506, 0
    %v546 = vsel %vm537, %v506, 0
    %v547 = vsel %vm538, %v506, 0
    %v548 = vsel %vm539, %v506, 0
    %v549 = vsel %vm540, %v506, 0
    %v550 = vsel %vm541, %v506, 0
    %v551 = vsel %vm542, %v506, 0
    %v552 = vsel %vm543, %v506, 0
    %v553 = vsel %vm544, %v506, 0
    %s554 = scalar_lea.vmem [#allocation4], 256
    %v555 = vld [vmem:[%s554] sm:$0xf]
    %v556 = vld [vmem:[%s554 + $0x4] sm:$0xf]
    %v557 = vld [vmem:[%s554 + $0x8] sm:$0xf]
    %v558 = vld [vmem:[%s554 + $0xc] sm:$0xf]
    %v559 = vld [vmem:[%s554 + $0x10] sm:$0xf]
    %v560 = vld [vmem:[%s554 + $0x14] sm:$0xf]
    %v561 = vld [vmem:[%s554 + $0x18] sm:$0xf]
    %v562 = vld [vmem:[%s554 + $0x1c] sm:$0xf]
    %v563 = vld [vmem:[%s554 + $0x20] sm:$0xf]
    %v564 = vld [vmem:[%s554 + $0x24] sm:$0xf]
    %v565 = vld [vmem:[%s554 + $0x28] sm:$0xf]
    %v566 = vld [vmem:[%s554 + $0x2c] sm:$0xf]
    %v567 = vld [vmem:[%s554 + $0x30] sm:$0xf]
    %v568 = vld [vmem:[%s554 + $0x34] sm:$0xf]
    %v569 = vld [vmem:[%s554 + $0x38] sm:$0xf]
    %v570 = vld [vmem:[%s554 + $0x3c] sm:$0xf]
    %v580 = vunpack.c.l.b16 %v545
    %v581 = vunpack.c.l.b16 %v546
    %v582 = vunpack.c.l.b16 %v547
    %v583 = vunpack.c.l.b16 %v548
    %v584 = vunpack.c.l.b16 %v549
    %v585 = vunpack.c.l.b16 %v550
    %v586 = vunpack.c.l.b16 %v551
    %v587 = vunpack.c.l.b16 %v552
    %v588 = vunpack.c.l.b16 %v553
    %v589 = vpack.c.b16 %v581, %v580
    %v590 = vpack.c.b16 %v583, %v582
    %v591 = vpack.c.b16 %v585, %v584
    %v592 = vpack.c.b16 %v587, %v586
    %v593 = vpack.c.b16 %v588, %v588
    %v615 = vunpack.c.l.b16 %v555
    %v616 = vunpack.c.l.b16 %v556
    %v617 = vunpack.c.l.b16 %v557
    %v618 = vunpack.c.l.b16 %v558
    %v619 = vunpack.c.l.b16 %v559
    %v620 = vunpack.c.l.b16 %v560
    %v621 = vunpack.c.l.b16 %v561
    %v622 = vunpack.c.l.b16 %v562
    %v623 = vunpack.c.l.b16 %v563
    %v624 = vunpack.c.l.b16 %v564
    %v625 = vunpack.c.l.b16 %v565
    %v626 = vunpack.c.l.b16 %v566
    %v627 = vunpack.c.l.b16 %v567
    %v628 = vunpack.c.l.b16 %v568
    %v629 = vunpack.c.l.b16 %v569
    %v630 = vunpack.c.l.b16 %v570
    %v631 = vpack.c.b16 %v616, %v615
    %v632 = vpack.c.b16 %v618, %v617
    %v633 = vpack.c.b16 %v620, %v619
    %v634 = vpack.c.b16 %v622, %v621
    %v635 = vpack.c.b16 %v624, %v623
    %v636 = vpack.c.b16 %v626, %v625
    %v637 = vpack.c.b16 %v628, %v627
    %v638 = vpack.c.b16 %v630, %v629
    %647 = vmatprep.subr.bf16.mxu0 0
    %648 = vmatpush1.bf16.msra.mxu0 %v638
    %649 = vmatprep.subr.bf16.mxu0 0
    %650 = vmatpush1.bf16.msra.mxu0 %v637
    %651 = vmatprep.subr.bf16.mxu0 0
    %652 = vmatpush1.bf16.msra.mxu0 %v636
    %653 = vmatprep.subr.bf16.mxu0 0
    %654 = vmatpush1.bf16.msra.mxu0 %v635
    %655 = vmatprep.subr.bf16.mxu0 0
    %656 = vmatpush1.bf16.msra.mxu0 %v634
    %657 = vmatprep.subr.bf16.mxu0 0
    %658 = vmatpush1.bf16.msra.mxu0 %v633
    %659 = vmatprep.subr.bf16.mxu0 0
    %660 = vmatpush1.bf16.msra.mxu0 %v632
    %661 = vmatprep.subr.bf16.mxu0 0
    %662 = vmatpush1.bf16.msra.mxu0 %v631
    %663 = vmatprep.subr.bf16.mxu0 0
    %664 = vmatpush2.bf16.msra.mxu0 0
    %665 = vmatprep.subr.bf16.mxu0 0
    %666 = vmatpush2.bf16.msra.mxu0 0
    %667 = vmatprep.subr.bf16.mxu0 0
    %668 = vmatpush2.bf16.msra.mxu0 0
    %669 = vmatprep.subr.bf16.mxu0 0
    %670 = vmatpush2.bf16.msra.mxu0 0
    %671 = vmatprep.subr.bf16.mxu0 0
    %672 = vmatpush2.bf16.msra.mxu0 0
    %673 = vmatprep.subr.bf16.mxu0 0
    %674 = vmatpush2.bf16.msra.mxu0 0
    %675 = vmatprep.subr.bf16.mxu0 0
    %676 = vmatpush2.bf16.msra.mxu0 0
    %677 = vmatprep.subr.bf16.mxu0 0
    %678 = vmatpush2.bf16.msra.mxu0 0
    %679 = vmatprep.mubr.bf16.mxu0 0
    %680 = vmatmul.mubr.bf16.gmra.mxu0 %v589
    %v681 = vpop.f32.mrf.mxu0
    %v682 = vadd.f32 %v501, %v681
    %v683 = vpop.f32.mrf.mxu0
    %v684 = vpop.f32.mrf.mxu0
    %v685 = vadd.f32 %v501, %v684
    %v686 = vpop.f32.mrf.mxu0
    %687 = vmatprep.mubr.bf16.mxu0 0
    %688 = vmatmul.mubr.bf16.gmra.mxu0 %v590
    %v689 = vpop.f32.mrf.mxu0
    %v690 = vadd.f32 %v501, %v689
    %v691 = vpop.f32.mrf.mxu0
    %v692 = vpop.f32.mrf.mxu0
    %v693 = vadd.f32 %v501, %v692
    %v694 = vpop.f32.mrf.mxu0
    %695 = vmatprep.mubr.bf16.mxu0 0
    %696 = vmatmul.mubr.bf16.gmra.mxu0 %v591
    %v697 = vpop.f32.mrf.mxu0
    %v698 = vadd.f32 %v501, %v697
    %v699 = vpop.f32.mrf.mxu0
    %v700 = vpop.f32.mrf.mxu0
    %v701 = vadd.f32 %v501, %v700
    %v702 = vpop.f32.mrf.mxu0
    %703 = vmatprep.mubr.bf16.mxu0 0
    %704 = vmatmul.mubr.bf16.gmra.mxu0 %v592
    %v705 = vpop.f32.mrf.mxu0
    %v706 = vadd.f32 %v501, %v705
    %v707 = vpop.f32.mrf.mxu0
    %v708 = vpop.f32.mrf.mxu0
    %v709 = vadd.f32 %v501, %v708
    %v710 = vpop.f32.mrf.mxu0
    %711 = vmatprep.mubr.bf16.mxu0 0
    %712 = vmatmul.mubr.bf16.gmra.mxu0 %v593
    %v713 = vpop.f32.mrf.mxu0
    %v714 = vadd.f32 %v501, %v713
    %v715 = vpop.f32.mrf.mxu0
    %v716 = vpop.f32.mrf.mxu0
    %v717 = vpop.f32.mrf.mxu0
    %718 = vdwg.mxu0
    %v719 = vmax.f32 %v682, 0.0
    %v720 = vmax.f32 %v685, 0.0
    %v721 = vmax.f32 %v690, 0.0
    %v722 = vmax.f32 %v693, 0.0
    %v723 = vmax.f32 %v698, 0.0
    %v724 = vmax.f32 %v701, 0.0
    %v725 = vmax.f32 %v706, 0.0
    %v726 = vmax.f32 %v709, 0.0
    %v727 = vmax.f32 %v714, 0.0
    %728 = vst [vmem:[#allocation2] sm:$0xff] %v719
    %729 = vst [vmem:[#allocation2 + $0x8] sm:$0xff] %v720
    %730 = vst [vmem:[#allocation2 + $0x10] sm:$0xff] %v721
    %731 = vst [vmem:[#allocation2 + $0x18] sm:$0xff] %v722
    %732 = vst [vmem:[#allocation2 + $0x20] sm:$0xff] %v723
    %733 = vst [vmem:[#allocation2 + $0x28] sm:$0xff] %v724
    %734 = vst [vmem:[#allocation2 + $0x30] sm:$0xff] %v725
    %735 = vst [vmem:[#allocation2 + $0x38] sm:$0xff] %v726
    %736 = vst [vmem:[#allocation2 + $0x40] sm:$0xff] %v727
    %v737 = vld [vmem:[#allocation2] sm:$0xff]
    %v738 = vld [vmem:[#allocation2 + $0x8] sm:$0xff]
    %v739 = vld [vmem:[#allocation2 + $0x10] sm:$0xff]
    %v740 = vld [vmem:[#allocation2 + $0x18] sm:$0xff]
    %v741 = vld [vmem:[#allocation2 + $0x20] sm:$0xff]
    %v742 = vld [vmem:[#allocation2 + $0x28] sm:$0xff]
    %v743 = vld [vmem:[#allocation2 + $0x30] sm:$0xff]
    %v744 = vld [vmem:[#allocation2 + $0x38] sm:$0xff]
    %v745 = vld [vmem:[#allocation2 + $0x40] sm:$0xff]
    %v746 = vpack.c.bf16 %v738, %v737
    %v747 = vpack.c.bf16 %v740, %v739
    %v748 = vpack.c.bf16 %v742, %v741
    %v749 = vpack.c.bf16 %v744, %v743
    %v750 = vpack.c.bf16 %v745, %v745
    %s751 = scalar_lea.vmem [#allocation4], 320
    %v752 = vld [vmem:[%s751] sm:$0xf]
    %v753 = vld [vmem:[%s751 + $0x4] sm:$0xf]
    %v754 = vld [vmem:[%s751 + $0x8] sm:$0xf]
    %v755 = vld [vmem:[%s751 + $0xc] sm:$0xf]
    %v756 = vld [vmem:[%s751 + $0x10] sm:$0xf]
    %v757 = vld [vmem:[%s751 + $0x14] sm:$0xf]
    %v758 = vld [vmem:[%s751 + $0x18] sm:$0xf]
    %v759 = vld [vmem:[%s751 + $0x1c] sm:$0xf]
    %v760 = vld [vmem:[%s751 + $0x20] sm:$0xf]
    %v761 = vld [vmem:[%s751 + $0x24] sm:$0xf]
    %v762 = vld [vmem:[%s751 + $0x28] sm:$0xf]
    %v763 = vld [vmem:[%s751 + $0x2c] sm:$0xf]
    %v764 = vld [vmem:[%s751 + $0x30] sm:$0xf]
    %v765 = vld [vmem:[%s751 + $0x34] sm:$0xf]
    %v766 = vld [vmem:[%s751 + $0x38] sm:$0xf]
    %v767 = vld [vmem:[%s751 + $0x3c] sm:$0xf]
    %s768 = scalar_lea.vmem [#allocation6], 5
    %v769 = vld [vmem:[%s768] sm:$0x1]
    %v771 = vlaneseq
    %v772 = vshrl.u32 %v771, 7
    %v773 = vsub.s32 0, %v772
    %v774 = vrot.slane %v769, %v773
    %v792 = vunpack.c.l.b16 %v752
    %v793 = vunpack.c.l.b16 %v753
    %v794 = vunpack.c.l.b16 %v754
    %v795 = vunpack.c.l.b16 %v755
    %v796 = vunpack.c.l.b16 %v756
    %v797 = vunpack.c.l.b16 %v757
    %v798 = vunpack.c.l.b16 %v758
    %v799 = vunpack.c.l.b16 %v759
    %v800 = vunpack.c.l.b16 %v760
    %v801 = vunpack.c.l.b16 %v761
    %v802 = vunpack.c.l.b16 %v762
    %v803 = vunpack.c.l.b16 %v763
    %v804 = vunpack.c.l.b16 %v764
    %v805 = vunpack.c.l.b16 %v765
    %v806 = vunpack.c.l.b16 %v766
    %v807 = vunpack.c.l.b16 %v767
    %v808 = vpack.c.b16 %v793, %v792
    %v809 = vpack.c.b16 %v795, %v794
    %v810 = vpack.c.b16 %v797, %v796
    %v811 = vpack.c.b16 %v799, %v798
    %v812 = vpack.c.b16 %v801, %v800
    %v813 = vpack.c.b16 %v803, %v802
    %v814 = vpack.c.b16 %v805, %v804
    %v815 = vpack.c.b16 %v807, %v806
    %824 = vmatprep.subr.bf16.mxu0 0
    %825 = vmatpush1.bf16.msra.mxu0 %v815
    %826 = vmatprep.subr.bf16.mxu0 0
    %827 = vmatpush1.bf16.msra.mxu0 %v814
    %828 = vmatprep.subr.bf16.mxu0 0
    %829 = vmatpush1.bf16.msra.mxu0 %v813
    %830 = vmatprep.subr.bf16.mxu0 0
    %831 = vmatpush1.bf16.msra.mxu0 %v812
    %832 = vmatprep.subr.bf16.mxu0 0
    %833 = vmatpush1.bf16.msra.mxu0 %v811
    %834 = vmatprep.subr.bf16.mxu0 0
    %835 = vmatpush1.bf16.msra.mxu0 %v810
    %836 = vmatprep.subr.bf16.mxu0 0
    %837 = vmatpush1.bf16.msra.mxu0 %v809
    %838 = vmatprep.subr.bf16.mxu0 0
    %839 = vmatpush1.bf16.msra.mxu0 %v808
    %840 = vmatprep.subr.bf16.mxu0 0
    %841 = vmatpush2.bf16.msra.mxu0 0
    %842 = vmatprep.subr.bf16.mxu0 0
    %843 = vmatpush2.bf16.msra.mxu0 0
    %844 = vmatprep.subr.bf16.mxu0 0
    %845 = vmatpush2.bf16.msra.mxu0 0
    %846 = vmatprep.subr.bf16.mxu0 0
    %847 = vmatpush2.bf16.msra.mxu0 0
    %848 = vmatprep.subr.bf16.mxu0 0
    %849 = vmatpush2.bf16.msra.mxu0 0
    %850 = vmatprep.subr.bf16.mxu0 0
    %851 = vmatpush2.bf16.msra.mxu0 0
    %852 = vmatprep.subr.bf16.mxu0 0
    %853 = vmatpush2.bf16.msra.mxu0 0
    %854 = vmatprep.subr.bf16.mxu0 0
    %855 = vmatpush2.bf16.msra.mxu0 0
    %856 = vmatprep.mubr.bf16.mxu0 0
    %857 = vmatmul.mubr.bf16.gmra.mxu0 %v746
    %v858 = vpop.f32.mrf.mxu0
    %v859 = vadd.f32 %v774, %v858
    %v860 = vpop.f32.mrf.mxu0
    %v861 = vpop.f32.mrf.mxu0
    %v862 = vadd.f32 %v774, %v861
    %v863 = vpop.f32.mrf.mxu0
    %864 = vmatprep.mubr.bf16.mxu0 0
    %865 = vmatmul.mubr.bf16.gmra.mxu0 %v747
    %v866 = vpop.f32.mrf.mxu0
    %v867 = vadd.f32 %v774, %v866
    %v868 = vpop.f32.mrf.mxu0
    %v869 = vpop.f32.mrf.mxu0
    %v870 = vadd.f32 %v774, %v869
    %v871 = vpop.f32.mrf.mxu0
    %872 = vmatprep.mubr.bf16.mxu0 0
    %873 = vmatmul.mubr.bf16.gmra.mxu0 %v748
    %v874 = vpop.f32.mrf.mxu0
    %v875 = vadd.f32 %v774, %v874
    %v876 = vpop.f32.mrf.mxu0
    %v877 = vpop.f32.mrf.mxu0
    %v878 = vadd.f32 %v774, %v877
    %v879 = vpop.f32.mrf.mxu0
    %880 = vmatprep.mubr.bf16.mxu0 0
    %881 = vmatmul.mubr.bf16.gmra.mxu0 %v749
    %v882 = vpop.f32.mrf.mxu0
    %v883 = vadd.f32 %v774, %v882
    %v884 = vpop.f32.mrf.mxu0
    %v885 = vpop.f32.mrf.mxu0
    %v886 = vadd.f32 %v774, %v885
    %v887 = vpop.f32.mrf.mxu0
    %888 = vmatprep.mubr.bf16.mxu0 0
    %889 = vmatmul.mubr.bf16.gmra.mxu0 %v750
    %v890 = vpop.f32.mrf.mxu0
    %v891 = vadd.f32 %v774, %v890
    %v892 = vpop.f32.mrf.mxu0
    %v893 = vpop.f32.mrf.mxu0
    %v894 = vpop.f32.mrf.mxu0
    %895 = vdwg.mxu0
    %v896 = vmax.f32 %v859, 0.0
    %v897 = vmax.f32 %v862, 0.0
    %v898 = vmax.f32 %v867, 0.0
    %v899 = vmax.f32 %v870, 0.0
    %v900 = vmax.f32 %v875, 0.0
    %v901 = vmax.f32 %v878, 0.0
    %v902 = vmax.f32 %v883, 0.0
    %v903 = vmax.f32 %v886, 0.0
    %v904 = vmax.f32 %v891, 0.0
    %v905 = vpack.c.bf16 %v897, %v896
    %v906 = vpack.c.bf16 %v899, %v898
    %v907 = vpack.c.bf16 %v901, %v900
    %v908 = vpack.c.bf16 %v903, %v902
    %v909 = vpack.c.bf16 %v904, %v904
    %s910 = scalar_lea.vmem [#allocation4], 384
    %v911 = vld [vmem:[%s910] sm:$0xf]
    %v912 = vld [vmem:[%s910 + $0x4] sm:$0xf]
    %v913 = vld [vmem:[%s910 + $0x8] sm:$0xf]
    %v914 = vld [vmem:[%s910 + $0xc] sm:$0xf]
    %v915 = vld [vmem:[%s910 + $0x10] sm:$0xf]
    %v916 = vld [vmem:[%s910 + $0x14] sm:$0xf]
    %v917 = vld [vmem:[%s910 + $0x18] sm:$0xf]
    %v918 = vld [vmem:[%s910 + $0x1c] sm:$0xf]
    %v919 = vld [vmem:[%s910 + $0x20] sm:$0xf]
    %v920 = vld [vmem:[%s910 + $0x24] sm:$0xf]
    %v921 = vld [vmem:[%s910 + $0x28] sm:$0xf]
    %v922 = vld [vmem:[%s910 + $0x2c] sm:$0xf]
    %v923 = vld [vmem:[%s910 + $0x30] sm:$0xf]
    %v924 = vld [vmem:[%s910 + $0x34] sm:$0xf]
    %v925 = vld [vmem:[%s910 + $0x38] sm:$0xf]
    %v926 = vld [vmem:[%s910 + $0x3c] sm:$0xf]
    %s927 = scalar_lea.vmem [#allocation6], 6
    %v928 = vld [vmem:[%s927] sm:$0x1]
    %v930 = vlaneseq
    %v931 = vshrl.u32 %v930, 7
    %v932 = vsub.s32 0, %v931
    %v933 = vrot.slane %v928, %v932
    %v951 = vunpack.c.l.b16 %v911
    %v952 = vunpack.c.l.b16 %v912
    %v953 = vunpack.c.l.b16 %v913
    %v954 = vunpack.c.l.b16 %v914
    %v955 = vunpack.c.l.b16 %v915
    %v956 = vunpack.c.l.b16 %v916
    %v957 = vunpack.c.l.b16 %v917
    %v958 = vunpack.c.l.b16 %v918
    %v959 = vunpack.c.l.b16 %v919
    %v960 = vunpack.c.l.b16 %v920
    %v961 = vunpack.c.l.b16 %v921
    %v962 = vunpack.c.l.b16 %v922
    %v963 = vunpack.c.l.b16 %v923
    %v964 = vunpack.c.l.b16 %v924
    %v965 = vunpack.c.l.b16 %v925
    %v966 = vunpack.c.l.b16 %v926
    %v967 = vpack.c.b16 %v952, %v951
    %v968 = vpack.c.b16 %v954, %v953
    %v969 = vpack.c.b16 %v956, %v955
    %v970 = vpack.c.b16 %v958, %v957
    %v971 = vpack.c.b16 %v960, %v959
    %v972 = vpack.c.b16 %v962, %v961
    %v973 = vpack.c.b16 %v964, %v963
    %v974 = vpack.c.b16 %v966, %v965
    %983 = vmatprep.subr.bf16.mxu0 0
    %984 = vmatpush1.bf16.msra.mxu0 %v974
    %985 = vmatprep.subr.bf16.mxu0 0
    %986 = vmatpush1.bf16.msra.mxu0 %v973
    %987 = vmatprep.subr.bf16.mxu0 0
    %988 = vmatpush1.bf16.msra.mxu0 %v972
    %989 = vmatprep.subr.bf16.mxu0 0
    %990 = vmatpush1.bf16.msra.mxu0 %v971
    %991 = vmatprep.subr.bf16.mxu0 0
    %992 = vmatpush1.bf16.msra.mxu0 %v970
    %993 = vmatprep.subr.bf16.mxu0 0
    %994 = vmatpush1.bf16.msra.mxu0 %v969
    %995 = vmatprep.subr.bf16.mxu0 0
    %996 = vmatpush1.bf16.msra.mxu0 %v968
    %997 = vmatprep.subr.bf16.mxu0 0
    %998 = vmatpush1.bf16.msra.mxu0 %v967
    %999 = vmatprep.subr.bf16.mxu0 0
    %1000 = vmatpush2.bf16.msra.mxu0 0
    %1001 = vmatprep.subr.bf16.mxu0 0
    %1002 = vmatpush2.bf16.msra.mxu0 0
    %1003 = vmatprep.subr.bf16.mxu0 0
    %1004 = vmatpush2.bf16.msra.mxu0 0
    %1005 = vmatprep.subr.bf16.mxu0 0
    %1006 = vmatpush2.bf16.msra.mxu0 0
    %1007 = vmatprep.subr.bf16.mxu0 0
    %1008 = vmatpush2.bf16.msra.mxu0 0
    %1009 = vmatprep.subr.bf16.mxu0 0
    %1010 = vmatpush2.bf16.msra.mxu0 0
    %1011 = vmatprep.subr.bf16.mxu0 0
    %1012 = vmatpush2.bf16.msra.mxu0 0
    %1013 = vmatprep.subr.bf16.mxu0 0
    %1014 = vmatpush2.bf16.msra.mxu0 0
    %1015 = vmatprep.mubr.bf16.mxu0 0
    %1016 = vmatmul.mubr.bf16.gmra.mxu0 %v905
    %v1017 = vpop.f32.mrf.mxu0
    %v1018 = vadd.f32 %v933, %v1017
    %v1019 = vpop.f32.mrf.mxu0
    %v1020 = vpop.f32.mrf.mxu0
    %v1021 = vadd.f32 %v933, %v1020
    %v1022 = vpop.f32.mrf.mxu0
    %1023 = vmatprep.mubr.bf16.mxu0 0
    %1024 = vmatmul.mubr.bf16.gmra.mxu0 %v906
    %v1025 = vpop.f32.mrf.mxu0
    %v1026 = vadd.f32 %v933, %v1025
    %v1027 = vpop.f32.mrf.mxu0
    %v1028 = vpop.f32.mrf.mxu0
    %v1029 = vadd.f32 %v933, %v1028
    %v1030 = vpop.f32.mrf.mxu0
    %1031 = vmatprep.mubr.bf16.mxu0 0
    %1032 = vmatmul.mubr.bf16.gmra.mxu0 %v907
    %v1033 = vpop.f32.mrf.mxu0
    %v1034 = vadd.f32 %v933, %v1033
    %v1035 = vpop.f32.mrf.mxu0
    %v1036 = vpop.f32.mrf.mxu0
    %v1037 = vadd.f32 %v933, %v1036
    %v1038 = vpop.f32.mrf.mxu0
    %1039 = vmatprep.mubr.bf16.mxu0 0
    %1040 = vmatmul.mubr.bf16.gmra.mxu0 %v908
    %v1041 = vpop.f32.mrf.mxu0
    %v1042 = vadd.f32 %v933, %v1041
    %v1043 = vpop.f32.mrf.mxu0
    %v1044 = vpop.f32.mrf.mxu0
    %v1045 = vadd.f32 %v933, %v1044
    %v1046 = vpop.f32.mrf.mxu0
    %1047 = vmatprep.mubr.bf16.mxu0 0
    %1048 = vmatmul.mubr.bf16.gmra.mxu0 %v909
    %v1049 = vpop.f32.mrf.mxu0
    %v1050 = vadd.f32 %v933, %v1049
    %v1051 = vpop.f32.mrf.mxu0
    %v1052 = vpop.f32.mrf.mxu0
    %v1053 = vpop.f32.mrf.mxu0
    %1054 = vdwg.mxu0
    %v1055 = vmax.f32 %v1018, 0.0
    %v1056 = vmax.f32 %v1021, 0.0
    %v1057 = vmax.f32 %v1026, 0.0
    %v1058 = vmax.f32 %v1029, 0.0
    %v1059 = vmax.f32 %v1034, 0.0
    %v1060 = vmax.f32 %v1037, 0.0
    %v1061 = vmax.f32 %v1042, 0.0
    %v1062 = vmax.f32 %v1045, 0.0
    %v1063 = vmax.f32 %v1050, 0.0
    %v1064 = vpack.c.bf16 %v1056, %v1055
    %v1065 = vpack.c.bf16 %v1058, %v1057
    %v1066 = vpack.c.bf16 %v1060, %v1059
    %v1067 = vpack.c.bf16 %v1062, %v1061
    %v1068 = vpack.c.bf16 %v1063, %v1063
    %s1069 = scalar_lea.vmem [#allocation4], 448
    %v1070 = vld [vmem:[%s1069] sm:$0xf]
    %v1071 = vld [vmem:[%s1069 + $0x4] sm:$0xf]
    %v1072 = vld [vmem:[%s1069 + $0x8] sm:$0xf]
    %v1073 = vld [vmem:[%s1069 + $0xc] sm:$0xf]
    %v1074 = vld [vmem:[%s1069 + $0x10] sm:$0xf]
    %v1075 = vld [vmem:[%s1069 + $0x14] sm:$0xf]
    %v1076 = vld [vmem:[%s1069 + $0x18] sm:$0xf]
    %v1077 = vld [vmem:[%s1069 + $0x1c] sm:$0xf]
    %v1078 = vld [vmem:[%s1069 + $0x20] sm:$0xf]
    %v1079 = vld [vmem:[%s1069 + $0x24] sm:$0xf]
    %v1080 = vld [vmem:[%s1069 + $0x28] sm:$0xf]
    %v1081 = vld [vmem:[%s1069 + $0x2c] sm:$0xf]
    %v1082 = vld [vmem:[%s1069 + $0x30] sm:$0xf]
    %v1083 = vld [vmem:[%s1069 + $0x34] sm:$0xf]
    %v1084 = vld [vmem:[%s1069 + $0x38] sm:$0xf]
    %v1085 = vld [vmem:[%s1069 + $0x3c] sm:$0xf]
    %s1086 = scalar_lea.vmem [#allocation6], 7
    %v1087 = vld [vmem:[%s1086] sm:$0x1]
    %v1089 = vlaneseq
    %v1090 = vshrl.u32 %v1089, 7
    %v1091 = vsub.s32 0, %v1090
    %v1092 = vrot.slane %v1087, %v1091
    %v1110 = vunpack.c.l.b16 %v1070
    %v1111 = vunpack.c.l.b16 %v1071
    %v1112 = vunpack.c.l.b16 %v1072
    %v1113 = vunpack.c.l.b16 %v1073
    %v1114 = vunpack.c.l.b16 %v1074
    %v1115 = vunpack.c.l.b16 %v1075
    %v1116 = vunpack.c.l.b16 %v1076
    %v1117 = vunpack.c.l.b16 %v1077
    %v1118 = vunpack.c.l.b16 %v1078
    %v1119 = vunpack.c.l.b16 %v1079
    %v1120 = vunpack.c.l.b16 %v1080
    %v1121 = vunpack.c.l.b16 %v1081
    %v1122 = vunpack.c.l.b16 %v1082
    %v1123 = vunpack.c.l.b16 %v1083
    %v1124 = vunpack.c.l.b16 %v1084
    %v1125 = vunpack.c.l.b16 %v1085
    %v1126 = vpack.c.b16 %v1111, %v1110
    %v1127 = vpack.c.b16 %v1113, %v1112
    %v1128 = vpack.c.b16 %v1115, %v1114
    %v1129 = vpack.c.b16 %v1117, %v1116
    %v1130 = vpack.c.b16 %v1119, %v1118
    %v1131 = vpack.c.b16 %v1121, %v1120
    %v1132 = vpack.c.b16 %v1123, %v1122
    %v1133 = vpack.c.b16 %v1125, %v1124
    %1142 = vmatprep.subr.bf16.mxu0 0
    %1143 = vmatpush1.bf16.msra.mxu0 %v1133
    %1144 = vmatprep.subr.bf16.mxu0 0
    %1145 = vmatpush1.bf16.msra.mxu0 %v1132
    %1146 = vmatprep.subr.bf16.mxu0 0
    %1147 = vmatpush1.bf16.msra.mxu0 %v1131
    %1148 = vmatprep.subr.bf16.mxu0 0
    %1149 = vmatpush1.bf16.msra.mxu0 %v1130
    %1150 = vmatprep.subr.bf16.mxu0 0
    %1151 = vmatpush1.bf16.msra.mxu0 %v1129
    %1152 = vmatprep.subr.bf16.mxu0 0
    %1153 = vmatpush1.bf16.msra.mxu0 %v1128
    %1154 = vmatprep.subr.bf16.mxu0 0
    %1155 = vmatpush1.bf16.msra.mxu0 %v1127
    %1156 = vmatprep.subr.bf16.mxu0 0
    %1157 = vmatpush1.bf16.msra.mxu0 %v1126
    %1158 = vmatprep.subr.bf16.mxu0 0
    %1159 = vmatpush2.bf16.msra.mxu0 0
    %1160 = vmatprep.subr.bf16.mxu0 0
    %1161 = vmatpush2.bf16.msra.mxu0 0
    %1162 = vmatprep.subr.bf16.mxu0 0
    %1163 = vmatpush2.bf16.msra.mxu0 0
    %1164 = vmatprep.subr.bf16.mxu0 0
    %1165 = vmatpush2.bf16.msra.mxu0 0
    %1166 = vmatprep.subr.bf16.mxu0 0
    %1167 = vmatpush2.bf16.msra.mxu0 0
    %1168 = vmatprep.subr.bf16.mxu0 0
    %1169 = vmatpush2.bf16.msra.mxu0 0
    %1170 = vmatprep.subr.bf16.mxu0 0
    %1171 = vmatpush2.bf16.msra.mxu0 0
    %1172 = vmatprep.subr.bf16.mxu0 0
    %1173 = vmatpush2.bf16.msra.mxu0 0
    %1174 = vmatprep.mubr.bf16.mxu0 0
    %1175 = vmatmul.mubr.bf16.gmra.mxu0 %v1064
    %v1176 = vpop.f32.mrf.mxu0
    %v1177 = vadd.f32 %v1092, %v1176
    %v1178 = vpop.f32.mrf.mxu0
    %v1179 = vpop.f32.mrf.mxu0
    %v1180 = vadd.f32 %v1092, %v1179
    %v1181 = vpop.f32.mrf.mxu0
    %1182 = vmatprep.mubr.bf16.mxu0 0
    %1183 = vmatmul.mubr.bf16.gmra.mxu0 %v1065
    %v1184 = vpop.f32.mrf.mxu0
    %v1185 = vadd.f32 %v1092, %v1184
    %v1186 = vpop.f32.mrf.mxu0
    %v1187 = vpop.f32.mrf.mxu0
    %v1188 = vadd.f32 %v1092, %v1187
    %v1189 = vpop.f32.mrf.mxu0
    %1190 = vmatprep.mubr.bf16.mxu0 0
    %1191 = vmatmul.mubr.bf16.gmra.mxu0 %v1066
    %v1192 = vpop.f32.mrf.mxu0
    %v1193 = vadd.f32 %v1092, %v1192
    %v1194 = vpop.f32.mrf.mxu0
    %v1195 = vpop.f32.mrf.mxu0
    %v1196 = vadd.f32 %v1092, %v1195
    %v1197 = vpop.f32.mrf.mxu0
    %1198 = vmatprep.mubr.bf16.mxu0 0
    %1199 = vmatmul.mubr.bf16.gmra.mxu0 %v1067
    %v1200 = vpop.f32.mrf.mxu0
    %v1201 = vadd.f32 %v1092, %v1200
    %v1202 = vpop.f32.mrf.mxu0
    %v1203 = vpop.f32.mrf.mxu0
    %v1204 = vadd.f32 %v1092, %v1203
    %v1205 = vpop.f32.mrf.mxu0
    %1206 = vmatprep.mubr.bf16.mxu0 0
    %1207 = vmatmul.mubr.bf16.gmra.mxu0 %v1068
    %v1208 = vpop.f32.mrf.mxu0
    %v1209 = vadd.f32 %v1092, %v1208
    %v1210 = vpop.f32.mrf.mxu0
    %v1211 = vpop.f32.mrf.mxu0
    %v1212 = vpop.f32.mrf.mxu0
    %1213 = vdwg.mxu0
    %v1214 = vtanh.pop %v1177
    %v1215 = vtanh.pop %v1180
    %v1216 = vtanh.pop %v1185
    %v1217 = vtanh.pop %v1188
    %v1218 = vtanh.pop %v1193
    %v1219 = vtanh.pop %v1196
    %v1220 = vtanh.pop %v1201
    %v1221 = vtanh.pop %v1204
    %v1222 = vtanh.pop %v1209
    %1223 = vst [vmem:[%s4] sm:$0xff] %v1214
    %1224 = vst [vmem:[%s4 + $0x8] sm:$0xff] %v1215
    %1225 = vst [vmem:[%s4 + $0x10] sm:$0xff] %v1216
    %1226 = vst [vmem:[%s4 + $0x18] sm:$0xff] %v1217
    %1227 = vst [vmem:[%s4 + $0x20] sm:$0xff] %v1218
    %1228 = vst [vmem:[%s4 + $0x28] sm:$0xff] %v1219
    %1229 = vst [vmem:[%s4 + $0x30] sm:$0xff] %v1220
    %1230 = vst [vmem:[%s4 + $0x38] sm:$0xff] %v1221
    %1231 = vst [vmem:[%s4 + $0x40] sm:$0xff] %v1222
    %s1232 = scalar_lea.vmem [#allocation4], 512
    %v1233 = vld [vmem:[%s1232] sm:$0xf]
    %v1234 = vld [vmem:[%s1232 + $0x4] sm:$0xf]
    %v1235 = vld [vmem:[%s1232 + $0x8] sm:$0xf]
    %v1236 = vld [vmem:[%s1232 + $0xc] sm:$0xf]
    %v1237 = vld [vmem:[%s1232 + $0x10] sm:$0xf]
    %v1238 = vld [vmem:[%s1232 + $0x14] sm:$0xf]
    %v1239 = vld [vmem:[%s1232 + $0x18] sm:$0xf]
    %v1240 = vld [vmem:[%s1232 + $0x1c] sm:$0xf]
    %v1241 = vld [vmem:[%s1232 + $0x20] sm:$0xf]
    %v1242 = vld [vmem:[%s1232 + $0x24] sm:$0xf]
    %v1243 = vld [vmem:[%s1232 + $0x28] sm:$0xf]
    %v1244 = vld [vmem:[%s1232 + $0x2c] sm:$0xf]
    %v1245 = vld [vmem:[%s1232 + $0x30] sm:$0xf]
    %v1246 = vld [vmem:[%s1232 + $0x34] sm:$0xf]
    %v1247 = vld [vmem:[%s1232 + $0x38] sm:$0xf]
    %v1248 = vld [vmem:[%s1232 + $0x3c] sm:$0xf]
    %s1249 = scalar_lea.vmem [#allocation6], 8
    %v1250 = vld [vmem:[%s1249] sm:$0x1]
    %v1252 = vlaneseq
    %v1253 = vshrl.u32 %v1252, 7
    %v1254 = vsub.s32 0, %v1253
    %v1255 = vrot.slane %v1250, %v1254
    %v1273 = vunpack.c.l.b16 %v1233
    %v1274 = vunpack.c.l.b16 %v1234
    %v1275 = vunpack.c.l.b16 %v1235
    %v1276 = vunpack.c.l.b16 %v1236
    %v1277 = vunpack.c.l.b16 %v1237
    %v1278 = vunpack.c.l.b16 %v1238
    %v1279 = vunpack.c.l.b16 %v1239
    %v1280 = vunpack.c.l.b16 %v1240
    %v1281 = vunpack.c.l.b16 %v1241
    %v1282 = vunpack.c.l.b16 %v1242
    %v1283 = vunpack.c.l.b16 %v1243
    %v1284 = vunpack.c.l.b16 %v1244
    %v1285 = vunpack.c.l.b16 %v1245
    %v1286 = vunpack.c.l.b16 %v1246
    %v1287 = vunpack.c.l.b16 %v1247
    %v1288 = vunpack.c.l.b16 %v1248
    %v1289 = vpack.c.b16 %v1274, %v1273
    %v1290 = vpack.c.b16 %v1276, %v1275
    %v1291 = vpack.c.b16 %v1278, %v1277
    %v1292 = vpack.c.b16 %v1280, %v1279
    %v1293 = vpack.c.b16 %v1282, %v1281
    %v1294 = vpack.c.b16 %v1284, %v1283
    %v1295 = vpack.c.b16 %v1286, %v1285
    %v1296 = vpack.c.b16 %v1288, %v1287
    %1305 = vmatprep.subr.bf16.mxu0 0
    %1306 = vmatpush1.bf16.msra.mxu0 %v1296
    %1307 = vmatprep.subr.bf16.mxu0 0
    %1308 = vmatpush1.bf16.msra.mxu0 %v1295
    %1309 = vmatprep.subr.bf16.mxu0 0
    %1310 = vmatpush1.bf16.msra.mxu0 %v1294
    %1311 = vmatprep.subr.bf16.mxu0 0
    %1312 = vmatpush1.bf16.msra.mxu0 %v1293
    %1313 = vmatprep.subr.bf16.mxu0 0
    %1314 = vmatpush1.bf16.msra.mxu0 %v1292
    %1315 = vmatprep.subr.bf16.mxu0 0
    %1316 = vmatpush1.bf16.msra.mxu0 %v1291
    %1317 = vmatprep.subr.bf16.mxu0 0
    %1318 = vmatpush1.bf16.msra.mxu0 %v1290
    %1319 = vmatprep.subr.bf16.mxu0 0
    %1320 = vmatpush1.bf16.msra.mxu0 %v1289
    %1321 = vmatprep.subr.bf16.mxu0 0
    %1322 = vmatpush2.bf16.msra.mxu0 0
    %1323 = vmatprep.subr.bf16.mxu0 0
    %1324 = vmatpush2.bf16.msra.mxu0 0
    %1325 = vmatprep.subr.bf16.mxu0 0
    %1326 = vmatpush2.bf16.msra.mxu0 0
    %1327 = vmatprep.subr.bf16.mxu0 0
    %1328 = vmatpush2.bf16.msra.mxu0 0
    %1329 = vmatprep.subr.bf16.mxu0 0
    %1330 = vmatpush2.bf16.msra.mxu0 0
    %1331 = vmatprep.subr.bf16.mxu0 0
    %1332 = vmatpush2.bf16.msra.mxu0 0
    %1333 = vmatprep.subr.bf16.mxu0 0
    %1334 = vmatpush2.bf16.msra.mxu0 0
    %1335 = vmatprep.subr.bf16.mxu0 0
    %1336 = vmatpush2.bf16.msra.mxu0 0
    %1337 = vmatprep.mubr.bf16.mxu0 0
    %1338 = vmatmul.mubr.bf16.gmra.mxu0 %v746
    %v1339 = vpop.f32.mrf.mxu0
    %v1340 = vadd.f32 %v1255, %v1339
    %v1341 = vpop.f32.mrf.mxu0
    %v1342 = vpop.f32.mrf.mxu0
    %v1343 = vadd.f32 %v1255, %v1342
    %v1344 = vpop.f32.mrf.mxu0
    %1345 = vmatprep.mubr.bf16.mxu0 0
    %1346 = vmatmul.mubr.bf16.gmra.mxu0 %v747
    %v1347 = vpop.f32.mrf.mxu0
    %v1348 = vadd.f32 %v1255, %v1347
    %v1349 = vpop.f32.mrf.mxu0
    %v1350 = vpop.f32.mrf.mxu0
    %v1351 = vadd.f32 %v1255, %v1350
    %v1352 = vpop.f32.mrf.mxu0
    %1353 = vmatprep.mubr.bf16.mxu0 0
    %1354 = vmatmul.mubr.bf16.gmra.mxu0 %v748
    %v1355 = vpop.f32.mrf.mxu0
    %v1356 = vadd.f32 %v1255, %v1355
    %v1357 = vpop.f32.mrf.mxu0
    %v1358 = vpop.f32.mrf.mxu0
    %v1359 = vadd.f32 %v1255, %v1358
    %v1360 = vpop.f32.mrf.mxu0
    %1361 = vmatprep.mubr.bf16.mxu0 0
    %1362 = vmatmul.mubr.bf16.gmra.mxu0 %v749
    %v1363 = vpop.f32.mrf.mxu0
    %v1364 = vadd.f32 %v1255, %v1363
    %v1365 = vpop.f32.mrf.mxu0
    %v1366 = vpop.f32.mrf.mxu0
    %v1367 = vadd.f32 %v1255, %v1366
    %v1368 = vpop.f32.mrf.mxu0
    %1369 = vmatprep.mubr.bf16.mxu0 0
    %1370 = vmatmul.mubr.bf16.gmra.mxu0 %v750
    %v1371 = vpop.f32.mrf.mxu0
    %v1372 = vadd.f32 %v1255, %v1371
    %v1373 = vpop.f32.mrf.mxu0
    %v1374 = vpop.f32.mrf.mxu0
    %v1375 = vpop.f32.mrf.mxu0
    %1376 = vdwg.mxu0
    %v1377 = vpack.c.bf16 %v1215, %v1214
    %v1378 = vpack.c.bf16 %v1217, %v1216
    %v1379 = vpack.c.bf16 %v1219, %v1218
    %v1380 = vpack.c.bf16 %v1221, %v1220
    %v1381 = vpack.c.bf16 %v1222, %v1222
    %vm1382 = vcmp.ge.s32.totalorder %v508, 27
    %vm1383 = vcmp.ge.s32.totalorder %v508, 30
    %vm1384 = vcmp.ge.s32.totalorder %v508, 33
    %vm1385 = vcmp.ge.s32.totalorder %v508, 36
    %vm1386 = vcmp.ge.s32.totalorder %v508, 39
    %vm1387 = vcmp.ge.s32.totalorder %v508, 42
    %vm1388 = vcmp.ge.s32.totalorder %v508, 45
    %vm1389 = vcmp.lt.s32.totalorder %v508, 30
    %vm1390 = vcmp.lt.s32.totalorder %v508, 33
    %vm1391 = vcmp.lt.s32.totalorder %v508, 36
    %vm1392 = vcmp.lt.s32.totalorder %v508, 39
    %vm1393 = vcmp.lt.s32.totalorder %v508, 42
    %vm1394 = vcmp.lt.s32.totalorder %v508, 45
    %vm1395 = vcmp.lt.s32.totalorder %v508, 48
    %vm1396 = vmand %vm1382, %vm1389
    %vm1397 = vmand %vm1383, %vm1390
    %vm1398 = vmand %vm1384, %vm1391
    %vm1399 = vmand %vm1385, %vm1392
    %vm1400 = vmand %vm1386, %vm1393
    %vm1401 = vmand %vm1387, %vm1394
    %vm1402 = vmand %vm1388, %vm1395
    %vm1403 = vmpackc.low %vm1396, %vm1396
    %vm1404 = vmpackc.low %vm1397, %vm1397
    %vm1405 = vmpackc.low %vm1398, %vm1398
    %vm1406 = vmpackc.low %vm1399, %vm1399
    %vm1407 = vmpackc.low %vm1400, %vm1400
    %vm1408 = vmpackc.low %vm1401, %vm1401
    %vm1409 = vmpackc.low %vm1402, %vm1402
    %v1410 = vsel %vm536, 65537, 0
    %v1411 = vsel %vm537, 65537, 0
    %v1412 = vsel %vm538, 65537, 0
    %v1413 = vsel %vm539, 65537, 0
    %v1414 = vsel %vm540, 65537, 0
    %v1415 = vsel %vm541, 65537, 0
    %v1416 = vsel %vm542, 65537, 0
    %v1417 = vsel %vm543, 65537, 0
    %v1418 = vsel %vm544, 65537, 0
    %v1419 = vsel %vm1403, 65537, 0
    %v1420 = vsel %vm1404, 65537, 0
    %v1421 = vsel %vm1405, 65537, 0
    %v1422 = vsel %vm1406, 65537, 0
    %v1423 = vsel %vm1407, 65537, 0
    %v1424 = vsel %vm1408, 65537, 0
    %v1425 = vsel %vm1409, 65537, 0
    %v1426 = vlaneseq
    %v1427 = vshrl.u32 %v1426, 7
    %v1428 = vsub.s32 0, %v1427
    %v1429 = vrot.slane %v1410, %v1428
    %v1430 = vlaneseq
    %v1431 = vshrl.u32 %v1430, 7
    %v1432 = vsub.s32 0, %v1431
    %v1433 = vrot.slane %v1411, %v1432
    %v1434 = vlaneseq
    %v1435 = vshrl.u32 %v1434, 7
    %v1436 = vsub.s32 0, %v1435
    %v1437 = vrot.slane %v1412, %v1436
    %v1438 = vlaneseq
    %v1439 = vshrl.u32 %v1438, 7
    %v1440 = vsub.s32 0, %v1439
    %v1441 = vrot.slane %v1413, %v1440
    %v1442 = vlaneseq
    %v1443 = vshrl.u32 %v1442, 7
    %v1444 = vsub.s32 0, %v1443
    %v1445 = vrot.slane %v1414, %v1444
    %v1446 = vlaneseq
    %v1447 = vshrl.u32 %v1446, 7
    %v1448 = vsub.s32 0, %v1447
    %v1449 = vrot.slane %v1415, %v1448
    %v1450 = vlaneseq
    %v1451 = vshrl.u32 %v1450, 7
    %v1452 = vsub.s32 0, %v1451
    %v1453 = vrot.slane %v1416, %v1452
    %v1454 = vlaneseq
    %v1455 = vshrl.u32 %v1454, 7
    %v1456 = vsub.s32 0, %v1455
    %v1457 = vrot.slane %v1417, %v1456
    %v1458 = vlaneseq
    %v1459 = vshrl.u32 %v1458, 7
    %v1460 = vsub.s32 0, %v1459
    %v1461 = vrot.slane %v1418, %v1460
    %v1462 = vlaneseq
    %v1463 = vshrl.u32 %v1462, 7
    %v1464 = vsub.s32 0, %v1463
    %v1465 = vrot.slane %v1419, %v1464
    %v1466 = vlaneseq
    %v1467 = vshrl.u32 %v1466, 7
    %v1468 = vsub.s32 0, %v1467
    %v1469 = vrot.slane %v1420, %v1468
    %v1470 = vlaneseq
    %v1471 = vshrl.u32 %v1470, 7
    %v1472 = vsub.s32 0, %v1471
    %v1473 = vrot.slane %v1421, %v1472
    %v1474 = vlaneseq
    %v1475 = vshrl.u32 %v1474, 7
    %v1476 = vsub.s32 0, %v1475
    %v1477 = vrot.slane %v1422, %v1476
    %v1478 = vlaneseq
    %v1479 = vshrl.u32 %v1478, 7
    %v1480 = vsub.s32 0, %v1479
    %v1481 = vrot.slane %v1423, %v1480
    %v1482 = vlaneseq
    %v1483 = vshrl.u32 %v1482, 7
    %v1484 = vsub.s32 0, %v1483
    %v1485 = vrot.slane %v1424, %v1484
    %v1486 = vlaneseq
    %v1487 = vshrl.u32 %v1486, 7
    %v1488 = vsub.s32 0, %v1487
    %v1489 = vrot.slane %v1425, %v1488
    %vm1490 = vcmp.ne.s16.totalorder %v1429, 0
    %vm1491 = vcmp.ne.s16.totalorder %v1433, 0
    %vm1492 = vcmp.ne.s16.totalorder %v1437, 0
    %vm1493 = vcmp.ne.s16.totalorder %v1441, 0
    %vm1494 = vcmp.ne.s16.totalorder %v1445, 0
    %vm1495 = vcmp.ne.s16.totalorder %v1449, 0
    %vm1496 = vcmp.ne.s16.totalorder %v1453, 0
    %vm1497 = vcmp.ne.s16.totalorder %v1457, 0
    %vm1498 = vcmp.ne.s16.totalorder %v1461, 0
    %vm1499 = vcmp.ne.s16.totalorder %v1465, 0
    %vm1500 = vcmp.ne.s16.totalorder %v1469, 0
    %vm1501 = vcmp.ne.s16.totalorder %v1473, 0
    %vm1502 = vcmp.ne.s16.totalorder %v1477, 0
    %vm1503 = vcmp.ne.s16.totalorder %v1481, 0
    %vm1504 = vcmp.ne.s16.totalorder %v1485, 0
    %vm1505 = vcmp.ne.s16.totalorder %v1489, 0
    %v1506 = vsel %vm1490, %v1377, 0
    %v1507 = vsel %vm1490, %v1378, 0
    %v1508 = vsel %vm1490, %v1379, 0
    %v1509 = vsel %vm1490, %v1380, 0
    %v1510 = vsel %vm1490, %v1381, 0
    %v1511 = vsel %vm1491, %v1377, 0
    %v1512 = vsel %vm1491, %v1378, 0
    %v1513 = vsel %vm1491, %v1379, 0
    %v1514 = vsel %vm1491, %v1380, 0
    %v1515 = vsel %vm1491, %v1381, 0
    %v1516 = vsel %vm1492, %v1377, 0
    %v1517 = vsel %vm1492, %v1378, 0
    %v1518 = vsel %vm1492, %v1379, 0
    %v1519 = vsel %vm1492, %v1380, 0
    %v1520 = vsel %vm1492, %v1381, 0
    %v1521 = vsel %vm1493, %v1377, 0
    %v1522 = vsel %vm1493, %v1378, 0
    %v1523 = vsel %vm1493, %v1379, 0
    %v1524 = vsel %vm1493, %v1380, 0
    %v1525 = vsel %vm1493, %v1381, 0
    %v1526 = vsel %vm1494, %v1377, 0
    %v1527 = vsel %vm1494, %v1378, 0
    %v1528 = vsel %vm1494, %v1379, 0
    %v1529 = vsel %vm1494, %v1380, 0
    %v1530 = vsel %vm1494, %v1381, 0
    %v1531 = vsel %vm1495, %v1377, 0
    %v1532 = vsel %vm1495, %v1378, 0
    %v1533 = vsel %vm1495, %v1379, 0
    %v1534 = vsel %vm1495, %v1380, 0
    %v1535 = vsel %vm1495, %v1381, 0
    %v1536 = vsel %vm1496, %v1377, 0
    %v1537 = vsel %vm1496, %v1378, 0
    %v1538 = vsel %vm1496, %v1379, 0
    %v1539 = vsel %vm1496, %v1380, 0
    %v1540 = vsel %vm1496, %v1381, 0
    %v1541 = vsel %vm1497, %v1377, 0
    %v1542 = vsel %vm1497, %v1378, 0
    %v1543 = vsel %vm1497, %v1379, 0
    %v1544 = vsel %vm1497, %v1380, 0
    %v1545 = vsel %vm1497, %v1381, 0
    %v1546 = vsel %vm1498, %v1377, 0
    %v1547 = vsel %vm1498, %v1378, 0
    %v1548 = vsel %vm1498, %v1379, 0
    %v1549 = vsel %vm1498, %v1380, 0
    %v1550 = vsel %vm1498, %v1381, 0
    %v1551 = vsel %vm1499, %v1377, 0
    %v1552 = vsel %vm1499, %v1378, 0
    %v1553 = vsel %vm1499, %v1379, 0
    %v1554 = vsel %vm1499, %v1380, 0
    %v1555 = vsel %vm1499, %v1381, 0
    %v1556 = vsel %vm1500, %v1377, 0
    %v1557 = vsel %vm1500, %v1378, 0
    %v1558 = vsel %vm1500, %v1379, 0
    %v1559 = vsel %vm1500, %v1380, 0
    %v1560 = vsel %vm1500, %v1381, 0
    %v1561 = vsel %vm1501, %v1377, 0
    %v1562 = vsel %vm1501, %v1378, 0
    %v1563 = vsel %vm1501, %v1379, 0
    %v1564 = vsel %vm1501, %v1380, 0
    %v1565 = vsel %vm1501, %v1381, 0
    %v1566 = vsel %vm1502, %v1377, 0
    %v1567 = vsel %vm1502, %v1378, 0
    %v1568 = vsel %vm1502, %v1379, 0
    %v1569 = vsel %vm1502, %v1380, 0
    %v1570 = vsel %vm1502, %v1381, 0
    %v1571 = vsel %vm1503, %v1377, 0
    %v1572 = vsel %vm1503, %v1378, 0
    %v1573 = vsel %vm1503, %v1379, 0
    %v1574 = vsel %vm1503, %v1380, 0
    %v1575 = vsel %vm1503, %v1381, 0
    %v1576 = vsel %vm1504, %v1377, 0
    %v1577 = vsel %vm1504, %v1378, 0
    %v1578 = vsel %vm1504, %v1379, 0
    %v1579 = vsel %vm1504, %v1380, 0
    %v1580 = vsel %vm1504, %v1381, 0
    %v1581 = vsel %vm1505, %v1377, 0
    %v1582 = vsel %vm1505, %v1378, 0
    %v1583 = vsel %vm1505, %v1379, 0
    %v1584 = vsel %vm1505, %v1380, 0
    %v1585 = vsel %vm1505, %v1381, 0
    %v1666 = vunpack.c.l.b16 %v1506
    %v1667 = vunpack.c.h.b16 %v1506
    %v1668 = vunpack.c.l.b16 %v1507
    %v1669 = vunpack.c.h.b16 %v1507
    %v1670 = vunpack.c.l.b16 %v1508
    %v1671 = vunpack.c.h.b16 %v1508
    %v1672 = vunpack.c.l.b16 %v1509
    %v1673 = vunpack.c.h.b16 %v1509
    %v1674 = vunpack.c.l.b16 %v1510
    %v1675 = vunpack.c.l.b16 %v1511
    %v1676 = vunpack.c.h.b16 %v1511
    %v1677 = vunpack.c.l.b16 %v1512
    %v1678 = vunpack.c.h.b16 %v1512
    %v1679 = vunpack.c.l.b16 %v1513
    %v1680 = vunpack.c.h.b16 %v1513
    %v1681 = vunpack.c.l.b16 %v1514
    %v1682 = vunpack.c.h.b16 %v1514
    %v1683 = vunpack.c.l.b16 %v1515
    %v1684 = vunpack.c.l.b16 %v1516
    %v1685 = vunpack.c.h.b16 %v1516
    %v1686 = vunpack.c.l.b16 %v1517
    %v1687 = vunpack.c.h.b16 %v1517
    %v1688 = vunpack.c.l.b16 %v1518
    %v1689 = vunpack.c.h.b16 %v1518
    %v1690 = vunpack.c.l.b16 %v1519
    %v1691 = vunpack.c.h.b16 %v1519
    %v1692 = vunpack.c.l.b16 %v1520
    %v1693 = vunpack.c.l.b16 %v1521
    %v1694 = vunpack.c.h.b16 %v1521
    %v1695 = vunpack.c.l.b16 %v1522
    %v1696 = vunpack.c.h.b16 %v1522
    %v1697 = vunpack.c.l.b16 %v1523
    %v1698 = vunpack.c.h.b16 %v1523
    %v1699 = vunpack.c.l.b16 %v1524
    %v1700 = vunpack.c.h.b16 %v1524
    %v1701 = vunpack.c.l.b16 %v1525
    %v1702 = vunpack.c.l.b16 %v1526
    %v1703 = vunpack.c.h.b16 %v1526
    %v1704 = vunpack.c.l.b16 %v1527
    %v1705 = vunpack.c.h.b16 %v1527
    %v1706 = vunpack.c.l.b16 %v1528
    %v1707 = vunpack.c.h.b16 %v1528
    %v1708 = vunpack.c.l.b16 %v1529
    %v1709 = vunpack.c.h.b16 %v1529
    %v1710 = vunpack.c.l.b16 %v1530
    %v1711 = vunpack.c.l.b16 %v1531
    %v1712 = vunpack.c.h.b16 %v1531
    %v1713 = vunpack.c.l.b16 %v1532
    %v1714 = vunpack.c.h.b16 %v1532
    %v1715 = vunpack.c.l.b16 %v1533
    %v1716 = vunpack.c.h.b16 %v1533
    %v1717 = vunpack.c.l.b16 %v1534
    %v1718 = vunpack.c.h.b16 %v1534
    %v1719 = vunpack.c.l.b16 %v1535
    %v1720 = vunpack.c.l.b16 %v1536
    %v1721 = vunpack.c.h.b16 %v1536
    %v1722 = vunpack.c.l.b16 %v1537
    %v1723 = vunpack.c.h.b16 %v1537
    %v1724 = vunpack.c.l.b16 %v1538
    %v1725 = vunpack.c.h.b16 %v1538
    %v1726 = vunpack.c.l.b16 %v1539
    %v1727 = vunpack.c.h.b16 %v1539
    %v1728 = vunpack.c.l.b16 %v1540
    %v1729 = vunpack.c.l.b16 %v1541
    %v1730 = vunpack.c.h.b16 %v1541
    %v1731 = vunpack.c.l.b16 %v1542
    %v1732 = vunpack.c.h.b16 %v1542
    %v1733 = vunpack.c.l.b16 %v1543
    %v1734 = vunpack.c.h.b16 %v1543
    %v1735 = vunpack.c.l.b16 %v1544
    %v1736 = vunpack.c.h.b16 %v1544
    %v1737 = vunpack.c.l.b16 %v1545
    %v1738 = vunpack.c.l.b16 %v1546
    %v1739 = vunpack.c.h.b16 %v1546
    %v1740 = vunpack.c.l.b16 %v1547
    %v1741 = vunpack.c.h.b16 %v1547
    %v1742 = vunpack.c.l.b16 %v1548
    %v1743 = vunpack.c.h.b16 %v1548
    %v1744 = vunpack.c.l.b16 %v1549
    %v1745 = vunpack.c.h.b16 %v1549
    %v1746 = vunpack.c.l.b16 %v1550
    %v1747 = vunpack.c.l.b16 %v1551
    %v1748 = vunpack.c.h.b16 %v1551
    %v1749 = vunpack.c.l.b16 %v1552
    %v1750 = vunpack.c.h.b16 %v1552
    %v1751 = vunpack.c.l.b16 %v1553
    %v1752 = vunpack.c.h.b16 %v1553
    %v1753 = vunpack.c.l.b16 %v1554
    %v1754 = vunpack.c.h.b16 %v1554
    %v1755 = vunpack.c.l.b16 %v1555
    %v1756 = vunpack.c.l.b16 %v1556
    %v1757 = vunpack.c.h.b16 %v1556
    %v1758 = vunpack.c.l.b16 %v1557
    %v1759 = vunpack.c.h.b16 %v1557
    %v1760 = vunpack.c.l.b16 %v1558
    %v1761 = vunpack.c.h.b16 %v1558
    %v1762 = vunpack.c.l.b16 %v1559
    %v1763 = vunpack.c.h.b16 %v1559
    %v1764 = vunpack.c.l.b16 %v1560
    %v1765 = vunpack.c.l.b16 %v1561
    %v1766 = vunpack.c.h.b16 %v1561
    %v1767 = vunpack.c.l.b16 %v1562
    %v1768 = vunpack.c.h.b16 %v1562
    %v1769 = vunpack.c.l.b16 %v1563
    %v1770 = vunpack.c.h.b16 %v1563
    %v1771 = vunpack.c.l.b16 %v1564
    %v1772 = vunpack.c.h.b16 %v1564
    %v1773 = vunpack.c.l.b16 %v1565
    %v1774 = vunpack.c.l.b16 %v1566
    %v1775 = vunpack.c.h.b16 %v1566
    %v1776 = vunpack.c.l.b16 %v1567
    %v1777 = vunpack.c.h.b16 %v1567
    %v1778 = vunpack.c.l.b16 %v1568
    %v1779 = vunpack.c.h.b16 %v1568
    %v1780 = vunpack.c.l.b16 %v1569
    %v1781 = vunpack.c.h.b16 %v1569
    %v1782 = vunpack.c.l.b16 %v1570
    %v1783 = vunpack.c.l.b16 %v1571
    %v1784 = vunpack.c.h.b16 %v1571
    %v1785 = vunpack.c.l.b16 %v1572
    %v1786 = vunpack.c.h.b16 %v1572
    %v1787 = vunpack.c.l.b16 %v1573
    %v1788 = vunpack.c.h.b16 %v1573
    %v1789 = vunpack.c.l.b16 %v1574
    %v1790 = vunpack.c.h.b16 %v1574
    %v1791 = vunpack.c.l.b16 %v1575
    %v1792 = vunpack.c.l.b16 %v1576
    %v1793 = vunpack.c.h.b16 %v1576
    %v1794 = vunpack.c.l.b16 %v1577
    %v1795 = vunpack.c.h.b16 %v1577
    %v1796 = vunpack.c.l.b16 %v1578
    %v1797 = vunpack.c.h.b16 %v1578
    %v1798 = vunpack.c.l.b16 %v1579
    %v1799 = vunpack.c.h.b16 %v1579
    %v1800 = vunpack.c.l.b16 %v1580
    %v1801 = vunpack.c.l.b16 %v1581
    %v1802 = vunpack.c.h.b16 %v1581
    %v1803 = vunpack.c.l.b16 %v1582
    %v1804 = vunpack.c.h.b16 %v1582
    %v1805 = vunpack.c.l.b16 %v1583
    %v1806 = vunpack.c.h.b16 %v1583
    %v1807 = vunpack.c.l.b16 %v1584
    %v1808 = vunpack.c.h.b16 %v1584
    %v1809 = vunpack.c.l.b16 %v1585
    %s1810 = scalar_lea.vmem [#allocation4], 576
    %v1811 = vld [vmem:[%s1810] sm:$0xf]
    %v1812 = vld [vmem:[%s1810 + $0x4] sm:$0xf]
    %v1813 = vld [vmem:[%s1810 + $0x8] sm:$0xf]
    %v1814 = vld [vmem:[%s1810 + $0xc] sm:$0xf]
    %v1815 = vld [vmem:[%s1810 + $0x10] sm:$0xf]
    %v1816 = vld [vmem:[%s1810 + $0x14] sm:$0xf]
    %v1817 = vld [vmem:[%s1810 + $0x18] sm:$0xf]
    %v1818 = vld [vmem:[%s1810 + $0x1c] sm:$0xf]
    %v1819 = vld [vmem:[%s1810 + $0x20] sm:$0xf]
    %v1820 = vld [vmem:[%s1810 + $0x24] sm:$0xf]
    %v1821 = vld [vmem:[%s1810 + $0x28] sm:$0xf]
    %v1822 = vld [vmem:[%s1810 + $0x2c] sm:$0xf]
    %v1823 = vld [vmem:[%s1810 + $0x30] sm:$0xf]
    %v1824 = vld [vmem:[%s1810 + $0x34] sm:$0xf]
    %v1825 = vld [vmem:[%s1810 + $0x38] sm:$0xf]
    %v1826 = vld [vmem:[%s1810 + $0x3c] sm:$0xf]
    %v1827 = vpack.c.b16 %v1667, %v1666
    %v1828 = vpack.c.b16 %v1669, %v1668
    %v1829 = vpack.c.b16 %v1671, %v1670
    %v1830 = vpack.c.b16 %v1673, %v1672
    %v1831 = vpack.c.b16 %v1675, %v1674
    %v1832 = vpack.c.b16 %v1677, %v1676
    %v1833 = vpack.c.b16 %v1679, %v1678
    %v1834 = vpack.c.b16 %v1681, %v1680
    %v1835 = vpack.c.b16 %v1683, %v1682
    %v1836 = vpack.c.b16 %v1685, %v1684
    %v1837 = vpack.c.b16 %v1687, %v1686
    %v1838 = vpack.c.b16 %v1689, %v1688
    %v1839 = vpack.c.b16 %v1691, %v1690
    %v1840 = vpack.c.b16 %v1693, %v1692
    %v1841 = vpack.c.b16 %v1695, %v1694
    %v1842 = vpack.c.b16 %v1697, %v1696
    %v1843 = vpack.c.b16 %v1699, %v1698
    %v1844 = vpack.c.b16 %v1701, %v1700
    %v1845 = vpack.c.b16 %v1703, %v1702
    %v1846 = vpack.c.b16 %v1705, %v1704
    %v1847 = vpack.c.b16 %v1707, %v1706
    %v1848 = vpack.c.b16 %v1709, %v1708
    %v1849 = vpack.c.b16 %v1711, %v1710
    %v1850 = vpack.c.b16 %v1713, %v1712
    %v1851 = vpack.c.b16 %v1715, %v1714
    %v1852 = vpack.c.b16 %v1717, %v1716
    %v1853 = vpack.c.b16 %v1719, %v1718
    %v1854 = vpack.c.b16 %v1721, %v1720
    %v1855 = vpack.c.b16 %v1723, %v1722
    %v1856 = vpack.c.b16 %v1725, %v1724
    %v1857 = vpack.c.b16 %v1727, %v1726
    %v1858 = vpack.c.b16 %v1729, %v1728
    %v1859 = vpack.c.b16 %v1731, %v1730
    %v1860 = vpack.c.b16 %v1733, %v1732
    %v1861 = vpack.c.b16 %v1735, %v1734
    %v1862 = vpack.c.b16 %v1737, %v1736
    %v1863 = vpack.c.b16 %v1739, %v1738
    %v1864 = vpack.c.b16 %v1741, %v1740
    %v1865 = vpack.c.b16 %v1743, %v1742
    %v1866 = vpack.c.b16 %v1745, %v1744
    %v1867 = vpack.c.b16 %v1747, %v1746
    %v1868 = vpack.c.b16 %v1749, %v1748
    %v1869 = vpack.c.b16 %v1751, %v1750
    %v1870 = vpack.c.b16 %v1753, %v1752
    %v1871 = vpack.c.b16 %v1755, %v1754
    %v1872 = vpack.c.b16 %v1757, %v1756
    %v1873 = vpack.c.b16 %v1759, %v1758
    %v1874 = vpack.c.b16 %v1761, %v1760
    %v1875 = vpack.c.b16 %v1763, %v1762
    %v1876 = vpack.c.b16 %v1765, %v1764
    %v1877 = vpack.c.b16 %v1767, %v1766
    %v1878 = vpack.c.b16 %v1769, %v1768
    %v1879 = vpack.c.b16 %v1771, %v1770
    %v1880 = vpack.c.b16 %v1773, %v1772
    %v1881 = vpack.c.b16 %v1775, %v1774
    %v1882 = vpack.c.b16 %v1777, %v1776
    %v1883 = vpack.c.b16 %v1779, %v1778
    %v1884 = vpack.c.b16 %v1781, %v1780
    %v1885 = vpack.c.b16 %v1783, %v1782
    %v1886 = vpack.c.b16 %v1785, %v1784
    %v1887 = vpack.c.b16 %v1787, %v1786
    %v1888 = vpack.c.b16 %v1789, %v1788
    %v1889 = vpack.c.b16 %v1791, %v1790
    %v1890 = vpack.c.b16 %v1793, %v1792
    %v1891 = vpack.c.b16 %v1795, %v1794
    %v1892 = vpack.c.b16 %v1797, %v1796
    %v1893 = vpack.c.b16 %v1799, %v1798
    %v1894 = vpack.c.b16 %v1801, %v1800
    %v1895 = vpack.c.b16 %v1803, %v1802
    %v1896 = vpack.c.b16 %v1805, %v1804
    %v1897 = vpack.c.b16 %v1807, %v1806
    %v1898 = vpack.c.b16 %v1809, %v1808
    %v1987 = vunpack.c.l.b16 %v1811
    %v1988 = vunpack.c.l.b16 %v1812
    %v1989 = vunpack.c.l.b16 %v1813
    %v1990 = vunpack.c.l.b16 %v1814
    %v1991 = vunpack.c.l.b16 %v1815
    %v1992 = vunpack.c.l.b16 %v1816
    %v1993 = vunpack.c.l.b16 %v1817
    %v1994 = vunpack.c.l.b16 %v1818
    %v1995 = vunpack.c.l.b16 %v1819
    %v1996 = vunpack.c.l.b16 %v1820
    %v1997 = vunpack.c.l.b16 %v1821
    %v1998 = vunpack.c.l.b16 %v1822
    %v1999 = vunpack.c.l.b16 %v1823
    %v2000 = vunpack.c.l.b16 %v1824
    %v2001 = vunpack.c.l.b16 %v1825
    %v2002 = vunpack.c.l.b16 %v1826
    %v2003 = vpack.c.b16 %v1988, %v1987
    %v2004 = vpack.c.b16 %v1990, %v1989
    %v2005 = vpack.c.b16 %v1992, %v1991
    %v2006 = vpack.c.b16 %v1994, %v1993
    %v2007 = vpack.c.b16 %v1996, %v1995
    %v2008 = vpack.c.b16 %v1998, %v1997
    %v2009 = vpack.c.b16 %v2000, %v1999
    %v2010 = vpack.c.b16 %v2002, %v2001
    %2019 = vmatprep.subr.bf16.mxu0 0
    %2020 = vmatpush1.bf16.msra.mxu0 %v2010
    %2021 = vmatprep.subr.bf16.mxu0 0
    %2022 = vmatpush1.bf16.msra.mxu0 %v2009
    %2023 = vmatprep.subr.bf16.mxu0 0
    %2024 = vmatpush1.bf16.msra.mxu0 %v2008
    %2025 = vmatprep.subr.bf16.mxu0 0
    %2026 = vmatpush1.bf16.msra.mxu0 %v2007
    %2027 = vmatprep.subr.bf16.mxu0 0
    %2028 = vmatpush1.bf16.msra.mxu0 %v2006
    %2029 = vmatprep.subr.bf16.mxu0 0
    %2030 = vmatpush1.bf16.msra.mxu0 %v2005
    %2031 = vmatprep.subr.bf16.mxu0 0
    %2032 = vmatpush1.bf16.msra.mxu0 %v2004
    %2033 = vmatprep.subr.bf16.mxu0 0
    %2034 = vmatpush1.bf16.msra.mxu0 %v2003
    %2035 = vmatprep.subr.bf16.mxu0 0
    %2036 = vmatpush2.bf16.msra.mxu0 0
    %2037 = vmatprep.subr.bf16.mxu0 0
    %2038 = vmatpush2.bf16.msra.mxu0 0
    %2039 = vmatprep.subr.bf16.mxu0 0
    %2040 = vmatpush2.bf16.msra.mxu0 0
    %2041 = vmatprep.subr.bf16.mxu0 0
    %2042 = vmatpush2.bf16.msra.mxu0 0
    %2043 = vmatprep.subr.bf16.mxu0 0
    %2044 = vmatpush2.bf16.msra.mxu0 0
    %2045 = vmatprep.subr.bf16.mxu0 0
    %2046 = vmatpush2.bf16.msra.mxu0 0
    %2047 = vmatprep.subr.bf16.mxu0 0
    %2048 = vmatpush2.bf16.msra.mxu0 0
    %2049 = vmatprep.subr.bf16.mxu0 0
    %2050 = vmatpush2.bf16.msra.mxu0 0
    %2051 = vmatprep.mubr.bf16.mxu0 0
    %2052 = vmatmul.mubr.bf16.gmra.mxu0 %v1827
    %v2053 = vpop.f32.mrf.mxu0
    %v2054 = vadd.f32 %v1340, %v2053
    %v2055 = vpop.f32.mrf.mxu0
    %v2056 = vpop.f32.mrf.mxu0
    %v2057 = vadd.f32 %v1343, %v2056
    %v2058 = vpop.f32.mrf.mxu0
    %2059 = vmatprep.mubr.bf16.mxu0 0
    %2060 = vmatmul.mubr.bf16.gmra.mxu0 %v1828
    %v2061 = vpop.f32.mrf.mxu0
    %v2062 = vadd.f32 %v1348, %v2061
    %v2063 = vpop.f32.mrf.mxu0
    %v2064 = vpop.f32.mrf.mxu0
    %v2065 = vadd.f32 %v1351, %v2064
    %v2066 = vpop.f32.mrf.mxu0
    %2067 = vmatprep.mubr.bf16.mxu0 0
    %2068 = vmatmul.mubr.bf16.gmra.mxu0 %v1829
    %v2069 = vpop.f32.mrf.mxu0
    %v2070 = vadd.f32 %v1356, %v2069
    %v2071 = vpop.f32.mrf.mxu0
    %v2072 = vpop.f32.mrf.mxu0
    %v2073 = vadd.f32 %v1359, %v2072
    %v2074 = vpop.f32.mrf.mxu0
    %2075 = vmatprep.mubr.bf16.mxu0 0
    %2076 = vmatmul.mubr.bf16.gmra.mxu0 %v1830
    %v2077 = vpop.f32.mrf.mxu0
    %v2078 = vadd.f32 %v1364, %v2077
    %v2079 = vpop.f32.mrf.mxu0
    %v2080 = vpop.f32.mrf.mxu0
    %v2081 = vadd.f32 %v1367, %v2080
    %v2082 = vpop.f32.mrf.mxu0
    %2083 = vmatprep.mubr.bf16.mxu0 0
    %2084 = vmatmul.mubr.bf16.gmra.mxu0 %v1831
    %v2085 = vpop.f32.mrf.mxu0
    %v2086 = vadd.f32 %v1372, %v2085
    %v2087 = vpop.f32.mrf.mxu0
    %v2088 = vpop.f32.mrf.mxu0
    %v2089 = vadd.f32 %v1340, %v2088
    %v2090 = vpop.f32.mrf.mxu0
    %2091 = vmatprep.mubr.bf16.mxu0 0
    %2092 = vmatmul.mubr.bf16.gmra.mxu0 %v1832
    %v2093 = vpop.f32.mrf.mxu0
    %v2094 = vadd.f32 %v1343, %v2093
    %v2095 = vpop.f32.mrf.mxu0
    %v2096 = vpop.f32.mrf.mxu0
    %v2097 = vadd.f32 %v1348, %v2096
    %v2098 = vpop.f32.mrf.mxu0
    %2099 = vmatprep.mubr.bf16.mxu0 0
    %2100 = vmatmul.mubr.bf16.gmra.mxu0 %v1833
    %v2101 = vpop.f32.mrf.mxu0
    %v2102 = vadd.f32 %v1351, %v2101
    %v2103 = vpop.f32.mrf.mxu0
    %v2104 = vpop.f32.mrf.mxu0
    %v2105 = vadd.f32 %v1356, %v2104
    %v2106 = vpop.f32.mrf.mxu0
    %2107 = vmatprep.mubr.bf16.mxu0 0
    %2108 = vmatmul.mubr.bf16.gmra.mxu0 %v1834
    %v2109 = vpop.f32.mrf.mxu0
    %v2110 = vadd.f32 %v1359, %v2109
    %v2111 = vpop.f32.mrf.mxu0
    %v2112 = vpop.f32.mrf.mxu0
    %v2113 = vadd.f32 %v1364, %v2112
    %v2114 = vpop.f32.mrf.mxu0
    %2115 = vmatprep.mubr.bf16.mxu0 0
    %2116 = vmatmul.mubr.bf16.gmra.mxu0 %v1835
    %v2117 = vpop.f32.mrf.mxu0
    %v2118 = vadd.f32 %v1367, %v2117
    %v2119 = vpop.f32.mrf.mxu0
    %v2120 = vpop.f32.mrf.mxu0
    %v2121 = vadd.f32 %v1372, %v2120
    %v2122 = vpop.f32.mrf.mxu0
    %2123 = vmatprep.mubr.bf16.mxu0 0
    %2124 = vmatmul.mubr.bf16.gmra.mxu0 %v1836
    %v2125 = vpop.f32.mrf.mxu0
    %v2126 = vadd.f32 %v1340, %v2125
    %v2127 = vpop.f32.mrf.mxu0
    %v2128 = vpop.f32.mrf.mxu0
    %v2129 = vadd.f32 %v1343, %v2128
    %v2130 = vpop.f32.mrf.mxu0
    %2131 = vmatprep.mubr.bf16.mxu0 0
    %2132 = vmatmul.mubr.bf16.gmra.mxu0 %v1837
    %v2133 = vpop.f32.mrf.mxu0
    %v2134 = vadd.f32 %v1348, %v2133
    %v2135 = vpop.f32.mrf.mxu0
    %v2136 = vpop.f32.mrf.mxu0
    %v2137 = vadd.f32 %v1351, %v2136
    %v2138 = vpop.f32.mrf.mxu0
    %2139 = vmatprep.mubr.bf16.mxu0 0
    %2140 = vmatmul.mubr.bf16.gmra.mxu0 %v1838
    %v2141 = vpop.f32.mrf.mxu0
    %v2142 = vadd.f32 %v1356, %v2141
    %v2143 = vpop.f32.mrf.mxu0
    %v2144 = vpop.f32.mrf.mxu0
    %v2145 = vadd.f32 %v1359, %v2144
    %v2146 = vpop.f32.mrf.mxu0
    %2147 = vmatprep.mubr.bf16.mxu0 0
    %2148 = vmatmul.mubr.bf16.gmra.mxu0 %v1839
    %v2149 = vpop.f32.mrf.mxu0
    %v2150 = vadd.f32 %v1364, %v2149
    %v2151 = vpop.f32.mrf.mxu0
    %v2152 = vpop.f32.mrf.mxu0
    %v2153 = vadd.f32 %v1367, %v2152
    %v2154 = vpop.f32.mrf.mxu0
    %2155 = vmatprep.mubr.bf16.mxu0 0
    %2156 = vmatmul.mubr.bf16.gmra.mxu0 %v1840
    %v2157 = vpop.f32.mrf.mxu0
    %v2158 = vadd.f32 %v1372, %v2157
    %v2159 = vpop.f32.mrf.mxu0
    %v2160 = vpop.f32.mrf.mxu0
    %v2161 = vadd.f32 %v1340, %v2160
    %v2162 = vpop.f32.mrf.mxu0
    %2163 = vmatprep.mubr.bf16.mxu0 0
    %2164 = vmatmul.mubr.bf16.gmra.mxu0 %v1841
    %v2165 = vpop.f32.mrf.mxu0
    %v2166 = vadd.f32 %v1343, %v2165
    %v2167 = vpop.f32.mrf.mxu0
    %v2168 = vpop.f32.mrf.mxu0
    %v2169 = vadd.f32 %v1348, %v2168
    %v2170 = vpop.f32.mrf.mxu0
    %2171 = vmatprep.mubr.bf16.mxu0 0
    %2172 = vmatmul.mubr.bf16.gmra.mxu0 %v1842
    %v2173 = vpop.f32.mrf.mxu0
    %v2174 = vadd.f32 %v1351, %v2173
    %v2175 = vpop.f32.mrf.mxu0
    %v2176 = vpop.f32.mrf.mxu0
    %v2177 = vadd.f32 %v1356, %v2176
    %v2178 = vpop.f32.mrf.mxu0
    %2179 = vmatprep.mubr.bf16.mxu0 0
    %2180 = vmatmul.mubr.bf16.gmra.mxu0 %v1843
    %v2181 = vpop.f32.mrf.mxu0
    %v2182 = vadd.f32 %v1359, %v2181
    %v2183 = vpop.f32.mrf.mxu0
    %v2184 = vpop.f32.mrf.mxu0
    %v2185 = vadd.f32 %v1364, %v2184
    %v2186 = vpop.f32.mrf.mxu0
    %2187 = vmatprep.mubr.bf16.mxu0 0
    %2188 = vmatmul.mubr.bf16.gmra.mxu0 %v1844
    %v2189 = vpop.f32.mrf.mxu0
    %v2190 = vadd.f32 %v1367, %v2189
    %v2191 = vpop.f32.mrf.mxu0
    %v2192 = vpop.f32.mrf.mxu0
    %v2193 = vadd.f32 %v1372, %v2192
    %v2194 = vpop.f32.mrf.mxu0
    %2195 = vmatprep.mubr.bf16.mxu0 0
    %2196 = vmatmul.mubr.bf16.gmra.mxu0 %v1845
    %v2197 = vpop.f32.mrf.mxu0
    %v2198 = vadd.f32 %v1340, %v2197
    %v2199 = vpop.f32.mrf.mxu0
    %v2200 = vpop.f32.mrf.mxu0
    %v2201 = vadd.f32 %v1343, %v2200
    %v2202 = vpop.f32.mrf.mxu0
    %2203 = vmatprep.mubr.bf16.mxu0 0
    %2204 = vmatmul.mubr.bf16.gmra.mxu0 %v1846
    %v2205 = vpop.f32.mrf.mxu0
    %v2206 = vadd.f32 %v1348, %v2205
    %v2207 = vpop.f32.mrf.mxu0
    %v2208 = vpop.f32.mrf.mxu0
    %v2209 = vadd.f32 %v1351, %v2208
    %v2210 = vpop.f32.mrf.mxu0
    %2211 = vmatprep.mubr.bf16.mxu0 0
    %2212 = vmatmul.mubr.bf16.gmra.mxu0 %v1847
    %v2213 = vpop.f32.mrf.mxu0
    %v2214 = vadd.f32 %v1356, %v2213
    %v2215 = vpop.f32.mrf.mxu0
    %v2216 = vpop.f32.mrf.mxu0
    %v2217 = vadd.f32 %v1359, %v2216
    %v2218 = vpop.f32.mrf.mxu0
    %2219 = vmatprep.mubr.bf16.mxu0 0
    %2220 = vmatmul.mubr.bf16.gmra.mxu0 %v1848
    %v2221 = vpop.f32.mrf.mxu0
    %v2222 = vadd.f32 %v1364, %v2221
    %v2223 = vpop.f32.mrf.mxu0
    %v2224 = vpop.f32.mrf.mxu0
    %v2225 = vadd.f32 %v1367, %v2224
    %v2226 = vpop.f32.mrf.mxu0
    %2227 = vmatprep.mubr.bf16.mxu0 0
    %2228 = vmatmul.mubr.bf16.gmra.mxu0 %v1849
    %v2229 = vpop.f32.mrf.mxu0
    %v2230 = vadd.f32 %v1372, %v2229
    %v2231 = vpop.f32.mrf.mxu0
    %v2232 = vpop.f32.mrf.mxu0
    %v2233 = vadd.f32 %v1340, %v2232
    %v2234 = vpop.f32.mrf.mxu0
    %2235 = vmatprep.mubr.bf16.mxu0 0
    %2236 = vmatmul.mubr.bf16.gmra.mxu0 %v1850
    %v2237 = vpop.f32.mrf.mxu0
    %v2238 = vadd.f32 %v1343, %v2237
    %v2239 = vpop.f32.mrf.mxu0
    %v2240 = vpop.f32.mrf.mxu0
    %v2241 = vadd.f32 %v1348, %v2240
    %v2242 = vpop.f32.mrf.mxu0
    %2243 = vmatprep.mubr.bf16.mxu0 0
    %2244 = vmatmul.mubr.bf16.gmra.mxu0 %v1851
    %v2245 = vpop.f32.mrf.mxu0
    %v2246 = vadd.f32 %v1351, %v2245
    %v2247 = vpop.f32.mrf.mxu0
    %v2248 = vpop.f32.mrf.mxu0
    %v2249 = vadd.f32 %v1356, %v2248
    %v2250 = vpop.f32.mrf.mxu0
    %2251 = vmatprep.mubr.bf16.mxu0 0
    %2252 = vmatmul.mubr.bf16.gmra.mxu0 %v1852
    %v2253 = vpop.f32.mrf.mxu0
    %v2254 = vadd.f32 %v1359, %v2253
    %v2255 = vpop.f32.mrf.mxu0
    %v2256 = vpop.f32.mrf.mxu0
    %v2257 = vadd.f32 %v1364, %v2256
    %v2258 = vpop.f32.mrf.mxu0
    %2259 = vmatprep.mubr.bf16.mxu0 0
    %2260 = vmatmul.mubr.bf16.gmra.mxu0 %v1853
    %v2261 = vpop.f32.mrf.mxu0
    %v2262 = vadd.f32 %v1367, %v2261
    %v2263 = vpop.f32.mrf.mxu0
    %v2264 = vpop.f32.mrf.mxu0
    %v2265 = vadd.f32 %v1372, %v2264
    %v2266 = vpop.f32.mrf.mxu0
    %2267 = vmatprep.mubr.bf16.mxu0 0
    %2268 = vmatmul.mubr.bf16.gmra.mxu0 %v1854
    %v2269 = vpop.f32.mrf.mxu0
    %v2270 = vadd.f32 %v1340, %v2269
    %v2271 = vpop.f32.mrf.mxu0
    %v2272 = vpop.f32.mrf.mxu0
    %v2273 = vadd.f32 %v1343, %v2272
    %v2274 = vpop.f32.mrf.mxu0
    %2275 = vmatprep.mubr.bf16.mxu0 0
    %2276 = vmatmul.mubr.bf16.gmra.mxu0 %v1855
    %v2277 = vpop.f32.mrf.mxu0
    %v2278 = vadd.f32 %v1348, %v2277
    %v2279 = vpop.f32.mrf.mxu0
    %v2280 = vpop.f32.mrf.mxu0
    %v2281 = vadd.f32 %v1351, %v2280
    %v2282 = vpop.f32.mrf.mxu0
    %2283 = vmatprep.mubr.bf16.mxu0 0
    %2284 = vmatmul.mubr.bf16.gmra.mxu0 %v1856
    %v2285 = vpop.f32.mrf.mxu0
    %v2286 = vadd.f32 %v1356, %v2285
    %v2287 = vpop.f32.mrf.mxu0
    %v2288 = vpop.f32.mrf.mxu0
    %v2289 = vadd.f32 %v1359, %v2288
    %v2290 = vpop.f32.mrf.mxu0
    %2291 = vmatprep.mubr.bf16.mxu0 0
    %2292 = vmatmul.mubr.bf16.gmra.mxu0 %v1857
    %v2293 = vpop.f32.mrf.mxu0
    %v2294 = vadd.f32 %v1364, %v2293
    %v2295 = vpop.f32.mrf.mxu0
    %v2296 = vpop.f32.mrf.mxu0
    %v2297 = vadd.f32 %v1367, %v2296
    %v2298 = vpop.f32.mrf.mxu0
    %2299 = vmatprep.mubr.bf16.mxu0 0
    %2300 = vmatmul.mubr.bf16.gmra.mxu0 %v1858
    %v2301 = vpop.f32.mrf.mxu0
    %v2302 = vadd.f32 %v1372, %v2301
    %v2303 = vpop.f32.mrf.mxu0
    %v2304 = vpop.f32.mrf.mxu0
    %v2305 = vadd.f32 %v1340, %v2304
    %v2306 = vpop.f32.mrf.mxu0
    %2307 = vmatprep.mubr.bf16.mxu0 0
    %2308 = vmatmul.mubr.bf16.gmra.mxu0 %v1859
    %v2309 = vpop.f32.mrf.mxu0
    %v2310 = vadd.f32 %v1343, %v2309
    %v2311 = vpop.f32.mrf.mxu0
    %v2312 = vpop.f32.mrf.mxu0
    %v2313 = vadd.f32 %v1348, %v2312
    %v2314 = vpop.f32.mrf.mxu0
    %2315 = vmatprep.mubr.bf16.mxu0 0
    %2316 = vmatmul.mubr.bf16.gmra.mxu0 %v1860
    %v2317 = vpop.f32.mrf.mxu0
    %v2318 = vadd.f32 %v1351, %v2317
    %v2319 = vpop.f32.mrf.mxu0
    %v2320 = vpop.f32.mrf.mxu0
    %v2321 = vadd.f32 %v1356, %v2320
    %v2322 = vpop.f32.mrf.mxu0
    %2323 = vmatprep.mubr.bf16.mxu0 0
    %2324 = vmatmul.mubr.bf16.gmra.mxu0 %v1861
    %v2325 = vpop.f32.mrf.mxu0
    %v2326 = vadd.f32 %v1359, %v2325
    %v2327 = vpop.f32.mrf.mxu0
    %v2328 = vpop.f32.mrf.mxu0
    %v2329 = vadd.f32 %v1364, %v2328
    %v2330 = vpop.f32.mrf.mxu0
    %2331 = vmatprep.mubr.bf16.mxu0 0
    %2332 = vmatmul.mubr.bf16.gmra.mxu0 %v1862
    %v2333 = vpop.f32.mrf.mxu0
    %v2334 = vadd.f32 %v1367, %v2333
    %v2335 = vpop.f32.mrf.mxu0
    %v2336 = vpop.f32.mrf.mxu0
    %v2337 = vadd.f32 %v1372, %v2336
    %v2338 = vpop.f32.mrf.mxu0
    %2339 = vmatprep.mubr.bf16.mxu0 0
    %2340 = vmatmul.mubr.bf16.gmra.mxu0 %v1863
    %v2341 = vpop.f32.mrf.mxu0
    %v2342 = vadd.f32 %v1340, %v2341
    %v2343 = vpop.f32.mrf.mxu0
    %v2344 = vpop.f32.mrf.mxu0
    %v2345 = vadd.f32 %v1343, %v2344
    %v2346 = vpop.f32.mrf.mxu0
    %2347 = vmatprep.mubr.bf16.mxu0 0
    %2348 = vmatmul.mubr.bf16.gmra.mxu0 %v1864
    %v2349 = vpop.f32.mrf.mxu0
    %v2350 = vadd.f32 %v1348, %v2349
    %v2351 = vpop.f32.mrf.mxu0
    %v2352 = vpop.f32.mrf.mxu0
    %v2353 = vadd.f32 %v1351, %v2352
    %v2354 = vpop.f32.mrf.mxu0
    %2355 = vmatprep.mubr.bf16.mxu0 0
    %2356 = vmatmul.mubr.bf16.gmra.mxu0 %v1865
    %v2357 = vpop.f32.mrf.mxu0
    %v2358 = vadd.f32 %v1356, %v2357
    %v2359 = vpop.f32.mrf.mxu0
    %v2360 = vpop.f32.mrf.mxu0
    %v2361 = vadd.f32 %v1359, %v2360
    %v2362 = vpop.f32.mrf.mxu0
    %2363 = vmatprep.mubr.bf16.mxu0 0
    %2364 = vmatmul.mubr.bf16.gmra.mxu0 %v1866
    %v2365 = vpop.f32.mrf.mxu0
    %v2366 = vadd.f32 %v1364, %v2365
    %v2367 = vpop.f32.mrf.mxu0
    %v2368 = vpop.f32.mrf.mxu0
    %v2369 = vadd.f32 %v1367, %v2368
    %v2370 = vpop.f32.mrf.mxu0
    %2371 = vmatprep.mubr.bf16.mxu0 0
    %2372 = vmatmul.mubr.bf16.gmra.mxu0 %v1867
    %v2373 = vpop.f32.mrf.mxu0
    %v2374 = vadd.f32 %v1372, %v2373
    %v2375 = vpop.f32.mrf.mxu0
    %v2376 = vpop.f32.mrf.mxu0
    %v2377 = vadd.f32 %v1340, %v2376
    %v2378 = vpop.f32.mrf.mxu0
    %2379 = vmatprep.mubr.bf16.mxu0 0
    %2380 = vmatmul.mubr.bf16.gmra.mxu0 %v1868
    %v2381 = vpop.f32.mrf.mxu0
    %v2382 = vadd.f32 %v1343, %v2381
    %v2383 = vpop.f32.mrf.mxu0
    %v2384 = vpop.f32.mrf.mxu0
    %v2385 = vadd.f32 %v1348, %v2384
    %v2386 = vpop.f32.mrf.mxu0
    %2387 = vmatprep.mubr.bf16.mxu0 0
    %2388 = vmatmul.mubr.bf16.gmra.mxu0 %v1869
    %v2389 = vpop.f32.mrf.mxu0
    %v2390 = vadd.f32 %v1351, %v2389
    %v2391 = vpop.f32.mrf.mxu0
    %v2392 = vpop.f32.mrf.mxu0
    %v2393 = vadd.f32 %v1356, %v2392
    %v2394 = vpop.f32.mrf.mxu0
    %2395 = vmatprep.mubr.bf16.mxu0 0
    %2396 = vmatmul.mubr.bf16.gmra.mxu0 %v1870
    %v2397 = vpop.f32.mrf.mxu0
    %v2398 = vadd.f32 %v1359, %v2397
    %v2399 = vpop.f32.mrf.mxu0
    %v2400 = vpop.f32.mrf.mxu0
    %v2401 = vadd.f32 %v1364, %v2400
    %v2402 = vpop.f32.mrf.mxu0
    %2403 = vmatprep.mubr.bf16.mxu0 0
    %2404 = vmatmul.mubr.bf16.gmra.mxu0 %v1871
    %v2405 = vpop.f32.mrf.mxu0
    %v2406 = vadd.f32 %v1367, %v2405
    %v2407 = vpop.f32.mrf.mxu0
    %v2408 = vpop.f32.mrf.mxu0
    %v2409 = vadd.f32 %v1372, %v2408
    %v2410 = vpop.f32.mrf.mxu0
    %2411 = vmatprep.mubr.bf16.mxu0 0
    %2412 = vmatmul.mubr.bf16.gmra.mxu0 %v1872
    %v2413 = vpop.f32.mrf.mxu0
    %v2414 = vadd.f32 %v1340, %v2413
    %v2415 = vpop.f32.mrf.mxu0
    %v2416 = vpop.f32.mrf.mxu0
    %v2417 = vadd.f32 %v1343, %v2416
    %v2418 = vpop.f32.mrf.mxu0
    %2419 = vmatprep.mubr.bf16.mxu0 0
    %2420 = vmatmul.mubr.bf16.gmra.mxu0 %v1873
    %v2421 = vpop.f32.mrf.mxu0
    %v2422 = vadd.f32 %v1348, %v2421
    %v2423 = vpop.f32.mrf.mxu0
    %v2424 = vpop.f32.mrf.mxu0
    %v2425 = vadd.f32 %v1351, %v2424
    %v2426 = vpop.f32.mrf.mxu0
    %2427 = vmatprep.mubr.bf16.mxu0 0
    %2428 = vmatmul.mubr.bf16.gmra.mxu0 %v1874
    %v2429 = vpop.f32.mrf.mxu0
    %v2430 = vadd.f32 %v1356, %v2429
    %v2431 = vpop.f32.mrf.mxu0
    %v2432 = vpop.f32.mrf.mxu0
    %v2433 = vadd.f32 %v1359, %v2432
    %v2434 = vpop.f32.mrf.mxu0
    %2435 = vmatprep.mubr.bf16.mxu0 0
    %2436 = vmatmul.mubr.bf16.gmra.mxu0 %v1875
    %v2437 = vpop.f32.mrf.mxu0
    %v2438 = vadd.f32 %v1364, %v2437
    %v2439 = vpop.f32.mrf.mxu0
    %v2440 = vpop.f32.mrf.mxu0
    %v2441 = vadd.f32 %v1367, %v2440
    %v2442 = vpop.f32.mrf.mxu0
    %2443 = vmatprep.mubr.bf16.mxu0 0
    %2444 = vmatmul.mubr.bf16.gmra.mxu0 %v1876
    %v2445 = vpop.f32.mrf.mxu0
    %v2446 = vadd.f32 %v1372, %v2445
    %v2447 = vpop.f32.mrf.mxu0
    %v2448 = vpop.f32.mrf.mxu0
    %v2449 = vadd.f32 %v1340, %v2448
    %v2450 = vpop.f32.mrf.mxu0
    %2451 = vmatprep.mubr.bf16.mxu0 0
    %2452 = vmatmul.mubr.bf16.gmra.mxu0 %v1877
    %v2453 = vpop.f32.mrf.mxu0
    %v2454 = vadd.f32 %v1343, %v2453
    %v2455 = vpop.f32.mrf.mxu0
    %v2456 = vpop.f32.mrf.mxu0
    %v2457 = vadd.f32 %v1348, %v2456
    %v2458 = vpop.f32.mrf.mxu0
    %2459 = vmatprep.mubr.bf16.mxu0 0
    %2460 = vmatmul.mubr.bf16.gmra.mxu0 %v1878
    %v2461 = vpop.f32.mrf.mxu0
    %v2462 = vadd.f32 %v1351, %v2461
    %v2463 = vpop.f32.mrf.mxu0
    %v2464 = vpop.f32.mrf.mxu0
    %v2465 = vadd.f32 %v1356, %v2464
    %v2466 = vpop.f32.mrf.mxu0
    %2467 = vmatprep.mubr.bf16.mxu0 0
    %2468 = vmatmul.mubr.bf16.gmra.mxu0 %v1879
    %v2469 = vpop.f32.mrf.mxu0
    %v2470 = vadd.f32 %v1359, %v2469
    %v2471 = vpop.f32.mrf.mxu0
    %v2472 = vpop.f32.mrf.mxu0
    %v2473 = vadd.f32 %v1364, %v2472
    %v2474 = vpop.f32.mrf.mxu0
    %2475 = vmatprep.mubr.bf16.mxu0 0
    %2476 = vmatmul.mubr.bf16.gmra.mxu0 %v1880
    %v2477 = vpop.f32.mrf.mxu0
    %v2478 = vadd.f32 %v1367, %v2477
    %v2479 = vpop.f32.mrf.mxu0
    %v2480 = vpop.f32.mrf.mxu0
    %v2481 = vadd.f32 %v1372, %v2480
    %v2482 = vpop.f32.mrf.mxu0
    %2483 = vmatprep.mubr.bf16.mxu0 0
    %2484 = vmatmul.mubr.bf16.gmra.mxu0 %v1881
    %v2485 = vpop.f32.mrf.mxu0
    %v2486 = vadd.f32 %v1340, %v2485
    %v2487 = vpop.f32.mrf.mxu0
    %v2488 = vpop.f32.mrf.mxu0
    %v2489 = vadd.f32 %v1343, %v2488
    %v2490 = vpop.f32.mrf.mxu0
    %2491 = vmatprep.mubr.bf16.mxu0 0
    %2492 = vmatmul.mubr.bf16.gmra.mxu0 %v1882
    %v2493 = vpop.f32.mrf.mxu0
    %v2494 = vadd.f32 %v1348, %v2493
    %v2495 = vpop.f32.mrf.mxu0
    %v2496 = vpop.f32.mrf.mxu0
    %v2497 = vadd.f32 %v1351, %v2496
    %v2498 = vpop.f32.mrf.mxu0
    %2499 = vmatprep.mubr.bf16.mxu0 0
    %2500 = vmatmul.mubr.bf16.gmra.mxu0 %v1883
    %v2501 = vpop.f32.mrf.mxu0
    %v2502 = vadd.f32 %v1356, %v2501
    %v2503 = vpop.f32.mrf.mxu0
    %v2504 = vpop.f32.mrf.mxu0
    %v2505 = vadd.f32 %v1359, %v2504
    %v2506 = vpop.f32.mrf.mxu0
    %2507 = vmatprep.mubr.bf16.mxu0 0
    %2508 = vmatmul.mubr.bf16.gmra.mxu0 %v1884
    %v2509 = vpop.f32.mrf.mxu0
    %v2510 = vadd.f32 %v1364, %v2509
    %v2511 = vpop.f32.mrf.mxu0
    %v2512 = vpop.f32.mrf.mxu0
    %v2513 = vadd.f32 %v1367, %v2512
    %v2514 = vpop.f32.mrf.mxu0
    %2515 = vmatprep.mubr.bf16.mxu0 0
    %2516 = vmatmul.mubr.bf16.gmra.mxu0 %v1885
    %v2517 = vpop.f32.mrf.mxu0
    %v2518 = vadd.f32 %v1372, %v2517
    %v2519 = vpop.f32.mrf.mxu0
    %v2520 = vpop.f32.mrf.mxu0
    %v2521 = vadd.f32 %v1340, %v2520
    %v2522 = vpop.f32.mrf.mxu0
    %2523 = vmatprep.mubr.bf16.mxu0 0
    %2524 = vmatmul.mubr.bf16.gmra.mxu0 %v1886
    %v2525 = vpop.f32.mrf.mxu0
    %v2526 = vadd.f32 %v1343, %v2525
    %v2527 = vpop.f32.mrf.mxu0
    %v2528 = vpop.f32.mrf.mxu0
    %v2529 = vadd.f32 %v1348, %v2528
    %v2530 = vpop.f32.mrf.mxu0
    %2531 = vmatprep.mubr.bf16.mxu0 0
    %2532 = vmatmul.mubr.bf16.gmra.mxu0 %v1887
    %v2533 = vpop.f32.mrf.mxu0
    %v2534 = vadd.f32 %v1351, %v2533
    %v2535 = vpop.f32.mrf.mxu0
    %v2536 = vpop.f32.mrf.mxu0
    %v2537 = vadd.f32 %v1356, %v2536
    %v2538 = vpop.f32.mrf.mxu0
    %2539 = vmatprep.mubr.bf16.mxu0 0
    %2540 = vmatmul.mubr.bf16.gmra.mxu0 %v1888
    %v2541 = vpop.f32.mrf.mxu0
    %v2542 = vadd.f32 %v1359, %v2541
    %v2543 = vpop.f32.mrf.mxu0
    %v2544 = vpop.f32.mrf.mxu0
    %v2545 = vadd.f32 %v1364, %v2544
    %v2546 = vpop.f32.mrf.mxu0
    %2547 = vmatprep.mubr.bf16.mxu0 0
    %2548 = vmatmul.mubr.bf16.gmra.mxu0 %v1889
    %v2549 = vpop.f32.mrf.mxu0
    %v2550 = vadd.f32 %v1367, %v2549
    %v2551 = vpop.f32.mrf.mxu0
    %v2552 = vpop.f32.mrf.mxu0
    %v2553 = vadd.f32 %v1372, %v2552
    %v2554 = vpop.f32.mrf.mxu0
    %2555 = vmatprep.mubr.bf16.mxu0 0
    %2556 = vmatmul.mubr.bf16.gmra.mxu0 %v1890
    %v2557 = vpop.f32.mrf.mxu0
    %v2558 = vadd.f32 %v1340, %v2557
    %v2559 = vpop.f32.mrf.mxu0
    %v2560 = vpop.f32.mrf.mxu0
    %v2561 = vadd.f32 %v1343, %v2560
    %v2562 = vpop.f32.mrf.mxu0
    %2563 = vmatprep.mubr.bf16.mxu0 0
    %2564 = vmatmul.mubr.bf16.gmra.mxu0 %v1891
    %v2565 = vpop.f32.mrf.mxu0
    %v2566 = vadd.f32 %v1348, %v2565
    %v2567 = vpop.f32.mrf.mxu0
    %v2568 = vpop.f32.mrf.mxu0
    %v2569 = vadd.f32 %v1351, %v2568
    %v2570 = vpop.f32.mrf.mxu0
    %2571 = vmatprep.mubr.bf16.mxu0 0
    %2572 = vmatmul.mubr.bf16.gmra.mxu0 %v1892
    %v2573 = vpop.f32.mrf.mxu0
    %v2574 = vadd.f32 %v1356, %v2573
    %v2575 = vpop.f32.mrf.mxu0
    %v2576 = vpop.f32.mrf.mxu0
    %v2577 = vadd.f32 %v1359, %v2576
    %v2578 = vpop.f32.mrf.mxu0
    %2579 = vmatprep.mubr.bf16.mxu0 0
    %2580 = vmatmul.mubr.bf16.gmra.mxu0 %v1893
    %v2581 = vpop.f32.mrf.mxu0
    %v2582 = vadd.f32 %v1364, %v2581
    %v2583 = vpop.f32.mrf.mxu0
    %v2584 = vpop.f32.mrf.mxu0
    %v2585 = vadd.f32 %v1367, %v2584
    %v2586 = vpop.f32.mrf.mxu0
    %2587 = vmatprep.mubr.bf16.mxu0 0
    %2588 = vmatmul.mubr.bf16.gmra.mxu0 %v1894
    %v2589 = vpop.f32.mrf.mxu0
    %v2590 = vadd.f32 %v1372, %v2589
    %v2591 = vpop.f32.mrf.mxu0
    %v2592 = vpop.f32.mrf.mxu0
    %v2593 = vadd.f32 %v1340, %v2592
    %v2594 = vpop.f32.mrf.mxu0
    %2595 = vmatprep.mubr.bf16.mxu0 0
    %2596 = vmatmul.mubr.bf16.gmra.mxu0 %v1895
    %v2597 = vpop.f32.mrf.mxu0
    %v2598 = vadd.f32 %v1343, %v2597
    %v2599 = vpop.f32.mrf.mxu0
    %v2600 = vpop.f32.mrf.mxu0
    %v2601 = vadd.f32 %v1348, %v2600
    %v2602 = vpop.f32.mrf.mxu0
    %2603 = vmatprep.mubr.bf16.mxu0 0
    %2604 = vmatmul.mubr.bf16.gmra.mxu0 %v1896
    %v2605 = vpop.f32.mrf.mxu0
    %v2606 = vadd.f32 %v1351, %v2605
    %v2607 = vpop.f32.mrf.mxu0
    %v2608 = vpop.f32.mrf.mxu0
    %v2609 = vadd.f32 %v1356, %v2608
    %v2610 = vpop.f32.mrf.mxu0
    %2611 = vmatprep.mubr.bf16.mxu0 0
    %2612 = vmatmul.mubr.bf16.gmra.mxu0 %v1897
    %v2613 = vpop.f32.mrf.mxu0
    %v2614 = vadd.f32 %v1359, %v2613
    %v2615 = vpop.f32.mrf.mxu0
    %v2616 = vpop.f32.mrf.mxu0
    %v2617 = vadd.f32 %v1364, %v2616
    %v2618 = vpop.f32.mrf.mxu0
    %2619 = vmatprep.mubr.bf16.mxu0 0
    %2620 = vmatmul.mubr.bf16.gmra.mxu0 %v1898
    %v2621 = vpop.f32.mrf.mxu0
    %v2622 = vadd.f32 %v1367, %v2621
    %v2623 = vpop.f32.mrf.mxu0
    %v2624 = vpop.f32.mrf.mxu0
    %v2625 = vadd.f32 %v1372, %v2624
    %v2626 = vpop.f32.mrf.mxu0
    %2627 = vdwg.mxu0
    %v2628 = vmax.f32 %v2054, 0.0
    %v2629 = vmax.f32 %v2057, 0.0
    %v2630 = vmax.f32 %v2062, 0.0
    %v2631 = vmax.f32 %v2065, 0.0
    %v2632 = vmax.f32 %v2070, 0.0
    %v2633 = vmax.f32 %v2073, 0.0
    %v2634 = vmax.f32 %v2078, 0.0
    %v2635 = vmax.f32 %v2081, 0.0
    %v2636 = vmax.f32 %v2086, 0.0
    %v2637 = vmax.f32 %v2089, 0.0
    %v2638 = vmax.f32 %v2094, 0.0
    %v2639 = vmax.f32 %v2097, 0.0
    %v2640 = vmax.f32 %v2102, 0.0
    %v2641 = vmax.f32 %v2105, 0.0
    %v2642 = vmax.f32 %v2110, 0.0
    %v2643 = vmax.f32 %v2113, 0.0
    %v2644 = vmax.f32 %v2118, 0.0
    %v2645 = vmax.f32 %v2121, 0.0
    %v2646 = vmax.f32 %v2126, 0.0
    %v2647 = vmax.f32 %v2129, 0.0
    %v2648 = vmax.f32 %v2134, 0.0
    %v2649 = vmax.f32 %v2137, 0.0
    %v2650 = vmax.f32 %v2142, 0.0
    %v2651 = vmax.f32 %v2145, 0.0
    %v2652 = vmax.f32 %v2150, 0.0
    %v2653 = vmax.f32 %v2153, 0.0
    %v2654 = vmax.f32 %v2158, 0.0
    %v2655 = vmax.f32 %v2161, 0.0
    %v2656 = vmax.f32 %v2166, 0.0
    %v2657 = vmax.f32 %v2169, 0.0
    %v2658 = vmax.f32 %v2174, 0.0
    %v2659 = vmax.f32 %v2177, 0.0
    %v2660 = vmax.f32 %v2182, 0.0
    %v2661 = vmax.f32 %v2185, 0.0
    %v2662 = vmax.f32 %v2190, 0.0
    %v2663 = vmax.f32 %v2193, 0.0
    %v2664 = vmax.f32 %v2198, 0.0
    %v2665 = vmax.f32 %v2201, 0.0
    %v2666 = vmax.f32 %v2206, 0.0
    %v2667 = vmax.f32 %v2209, 0.0
    %v2668 = vmax.f32 %v2214, 0.0
    %v2669 = vmax.f32 %v2217, 0.0
    %v2670 = vmax.f32 %v2222, 0.0
    %v2671 = vmax.f32 %v2225, 0.0
    %v2672 = vmax.f32 %v2230, 0.0
    %v2673 = vmax.f32 %v2233, 0.0
    %v2674 = vmax.f32 %v2238, 0.0
    %v2675 = vmax.f32 %v2241, 0.0
    %v2676 = vmax.f32 %v2246, 0.0
    %v2677 = vmax.f32 %v2249, 0.0
    %v2678 = vmax.f32 %v2254, 0.0
    %v2679 = vmax.f32 %v2257, 0.0
    %v2680 = vmax.f32 %v2262, 0.0
    %v2681 = vmax.f32 %v2265, 0.0
    %v2682 = vmax.f32 %v2270, 0.0
    %v2683 = vmax.f32 %v2273, 0.0
    %v2684 = vmax.f32 %v2278, 0.0
    %v2685 = vmax.f32 %v2281, 0.0
    %v2686 = vmax.f32 %v2286, 0.0
    %v2687 = vmax.f32 %v2289, 0.0
    %v2688 = vmax.f32 %v2294, 0.0
    %v2689 = vmax.f32 %v2297, 0.0
    %v2690 = vmax.f32 %v2302, 0.0
    %v2691 = vmax.f32 %v2305, 0.0
    %v2692 = vmax.f32 %v2310, 0.0
    %v2693 = vmax.f32 %v2313, 0.0
    %v2694 = vmax.f32 %v2318, 0.0
    %v2695 = vmax.f32 %v2321, 0.0
    %v2696 = vmax.f32 %v2326, 0.0
    %v2697 = vmax.f32 %v2329, 0.0
    %v2698 = vmax.f32 %v2334, 0.0
    %v2699 = vmax.f32 %v2337, 0.0
    %v2700 = vmax.f32 %v2342, 0.0
    %v2701 = vmax.f32 %v2345, 0.0
    %v2702 = vmax.f32 %v2350, 0.0
    %v2703 = vmax.f32 %v2353, 0.0
    %v2704 = vmax.f32 %v2358, 0.0
    %v2705 = vmax.f32 %v2361, 0.0
    %v2706 = vmax.f32 %v2366, 0.0
    %v2707 = vmax.f32 %v2369, 0.0
    %v2708 = vmax.f32 %v2374, 0.0
    %v2709 = vmax.f32 %v2377, 0.0
    %v2710 = vmax.f32 %v2382, 0.0
    %v2711 = vmax.f32 %v2385, 0.0
    %v2712 = vmax.f32 %v2390, 0.0
    %v2713 = vmax.f32 %v2393, 0.0
    %v2714 = vmax.f32 %v2398, 0.0
    %v2715 = vmax.f32 %v2401, 0.0
    %v2716 = vmax.f32 %v2406, 0.0
    %v2717 = vmax.f32 %v2409, 0.0
    %v2718 = vmax.f32 %v2414, 0.0
    %v2719 = vmax.f32 %v2417, 0.0
    %v2720 = vmax.f32 %v2422, 0.0
    %v2721 = vmax.f32 %v2425, 0.0
    %v2722 = vmax.f32 %v2430, 0.0
    %v2723 = vmax.f32 %v2433, 0.0
    %v2724 = vmax.f32 %v2438, 0.0
    %v2725 = vmax.f32 %v2441, 0.0
    %v2726 = vmax.f32 %v2446, 0.0
    %v2727 = vmax.f32 %v2449, 0.0
    %v2728 = vmax.f32 %v2454, 0.0
    %v2729 = vmax.f32 %v2457, 0.0
    %v2730 = vmax.f32 %v2462, 0.0
    %v2731 = vmax.f32 %v2465, 0.0
    %v2732 = vmax.f32 %v2470, 0.0
    %v2733 = vmax.f32 %v2473, 0.0
    %v2734 = vmax.f32 %v2478, 0.0
    %v2735 = vmax.f32 %v2481, 0.0
    %v2736 = vmax.f32 %v2486, 0.0
    %v2737 = vmax.f32 %v2489, 0.0
    %v2738 = vmax.f32 %v2494, 0.0
    %v2739 = vmax.f32 %v2497, 0.0
    %v2740 = vmax.f32 %v2502, 0.0
    %v2741 = vmax.f32 %v2505, 0.0
    %v2742 = vmax.f32 %v2510, 0.0
    %v2743 = vmax.f32 %v2513, 0.0
    %v2744 = vmax.f32 %v2518, 0.0
    %v2745 = vmax.f32 %v2521, 0.0
    %v2746 = vmax.f32 %v2526, 0.0
    %v2747 = vmax.f32 %v2529, 0.0
    %v2748 = vmax.f32 %v2534, 0.0
    %v2749 = vmax.f32 %v2537, 0.0
    %v2750 = vmax.f32 %v2542, 0.0
    %v2751 = vmax.f32 %v2545, 0.0
    %v2752 = vmax.f32 %v2550, 0.0
    %v2753 = vmax.f32 %v2553, 0.0
    %v2754 = vmax.f32 %v2558, 0.0
    %v2755 = vmax.f32 %v2561, 0.0
    %v2756 = vmax.f32 %v2566, 0.0
    %v2757 = vmax.f32 %v2569, 0.0
    %v2758 = vmax.f32 %v2574, 0.0
    %v2759 = vmax.f32 %v2577, 0.0
    %v2760 = vmax.f32 %v2582, 0.0
    %v2761 = vmax.f32 %v2585, 0.0
    %v2762 = vmax.f32 %v2590, 0.0
    %v2763 = vmax.f32 %v2593, 0.0
    %v2764 = vmax.f32 %v2598, 0.0
    %v2765 = vmax.f32 %v2601, 0.0
    %v2766 = vmax.f32 %v2606, 0.0
    %v2767 = vmax.f32 %v2609, 0.0
    %v2768 = vmax.f32 %v2614, 0.0
    %v2769 = vmax.f32 %v2617, 0.0
    %v2770 = vmax.f32 %v2622, 0.0
    %v2771 = vmax.f32 %v2625, 0.0
    %2772 = vst [vmem:[#allocation3] sm:$0xff] %v2628
    %2773 = vst [vmem:[#allocation3 + $0x8] sm:$0xff] %v2629
    %2774 = vst [vmem:[#allocation3 + $0x10] sm:$0xff] %v2630
    %2775 = vst [vmem:[#allocation3 + $0x18] sm:$0xff] %v2631
    %2776 = vst [vmem:[#allocation3 + $0x20] sm:$0xff] %v2632
    %2777 = vst [vmem:[#allocation3 + $0x28] sm:$0xff] %v2633
    %2778 = vst [vmem:[#allocation3 + $0x30] sm:$0xff] %v2634
    %2779 = vst [vmem:[#allocation3 + $0x38] sm:$0xff] %v2635
    %2780 = vst [vmem:[#allocation3 + $0x40] sm:$0xff] %v2636
    %2781 = vst [vmem:[#allocation3 + $0x48] sm:$0xff] %v2637
    %2782 = vst [vmem:[#allocation3 + $0x50] sm:$0xff] %v2638
    %2783 = vst [vmem:[#allocation3 + $0x58] sm:$0xff] %v2639
    %2784 = vst [vmem:[#allocation3 + $0x60] sm:$0xff] %v2640
    %2785 = vst [vmem:[#allocation3 + $0x68] sm:$0xff] %v2641
    %2786 = vst [vmem:[#allocation3 + $0x70] sm:$0xff] %v2642
    %2787 = vst [vmem:[#allocation3 + $0x78] sm:$0xff] %v2643
    %2788 = vst [vmem:[#allocation3 + $0x80] sm:$0xff] %v2644
    %2789 = vst [vmem:[#allocation3 + $0x88] sm:$0xff] %v2645
    %2790 = vst [vmem:[#allocation3 + $0x90] sm:$0xff] %v2646
    %2791 = vst [vmem:[#allocation3 + $0x98] sm:$0xff] %v2647
    %2792 = vst [vmem:[#allocation3 + $0xa0] sm:$0xff] %v2648
    %2793 = vst [vmem:[#allocation3 + $0xa8] sm:$0xff] %v2649
    %2794 = vst [vmem:[#allocation3 + $0xb0] sm:$0xff] %v2650
    %2795 = vst [vmem:[#allocation3 + $0xb8] sm:$0xff] %v2651
    %2796 = vst [vmem:[#allocation3 + $0xc0] sm:$0xff] %v2652
    %2797 = vst [vmem:[#allocation3 + $0xc8] sm:$0xff] %v2653
    %2798 = vst [vmem:[#allocation3 + $0xd0] sm:$0xff] %v2654
    %2799 = vst [vmem:[#allocation3 + $0xd8] sm:$0xff] %v2655
    %2800 = vst [vmem:[#allocation3 + $0xe0] sm:$0xff] %v2656
    %2801 = vst [vmem:[#allocation3 + $0xe8] sm:$0xff] %v2657
    %2802 = vst [vmem:[#allocation3 + $0xf0] sm:$0xff] %v2658
    %2803 = vst [vmem:[#allocation3 + $0xf8] sm:$0xff] %v2659
    %2804 = vst [vmem:[#allocation3 + $0x100] sm:$0xff] %v2660
    %2805 = vst [vmem:[#allocation3 + $0x108] sm:$0xff] %v2661
    %2806 = vst [vmem:[#allocation3 + $0x110] sm:$0xff] %v2662
    %2807 = vst [vmem:[#allocation3 + $0x118] sm:$0xff] %v2663
    %2808 = vst [vmem:[#allocation3 + $0x120] sm:$0xff] %v2664
    %2809 = vst [vmem:[#allocation3 + $0x128] sm:$0xff] %v2665
    %2810 = vst [vmem:[#allocation3 + $0x130] sm:$0xff] %v2666
    %2811 = vst [vmem:[#allocation3 + $0x138] sm:$0xff] %v2667
    %2812 = vst [vmem:[#allocation3 + $0x140] sm:$0xff] %v2668
    %2813 = vst [vmem:[#allocation3 + $0x148] sm:$0xff] %v2669
    %2814 = vst [vmem:[#allocation3 + $0x150] sm:$0xff] %v2670
    %2815 = vst [vmem:[#allocation3 + $0x158] sm:$0xff] %v2671
    %2816 = vst [vmem:[#allocation3 + $0x160] sm:$0xff] %v2672
    %2817 = vst [vmem:[#allocation3 + $0x168] sm:$0xff] %v2673
    %2818 = vst [vmem:[#allocation3 + $0x170] sm:$0xff] %v2674
    %2819 = vst [vmem:[#allocation3 + $0x178] sm:$0xff] %v2675
    %2820 = vst [vmem:[#allocation3 + $0x180] sm:$0xff] %v2676
    %2821 = vst [vmem:[#allocation3 + $0x188] sm:$0xff] %v2677
    %2822 = vst [vmem:[#allocation3 + $0x190] sm:$0xff] %v2678
    %2823 = vst [vmem:[#allocation3 + $0x198] sm:$0xff] %v2679
    %2824 = vst [vmem:[#allocation3 + $0x1a0] sm:$0xff] %v2680
    %2825 = vst [vmem:[#allocation3 + $0x1a8] sm:$0xff] %v2681
    %2826 = vst [vmem:[#allocation3 + $0x1b0] sm:$0xff] %v2682
    %2827 = vst [vmem:[#allocation3 + $0x1b8] sm:$0xff] %v2683
    %2828 = vst [vmem:[#allocation3 + $0x1c0] sm:$0xff] %v2684
    %2829 = vst [vmem:[#allocation3 + $0x1c8] sm:$0xff] %v2685
    %2830 = vst [vmem:[#allocation3 + $0x1d0] sm:$0xff] %v2686
    %2831 = vst [vmem:[#allocation3 + $0x1d8] sm:$0xff] %v2687
    %2832 = vst [vmem:[#allocation3 + $0x1e0] sm:$0xff] %v2688
    %2833 = vst [vmem:[#allocation3 + $0x1e8] sm:$0xff] %v2689
    %2834 = vst [vmem:[#allocation3 + $0x1f0] sm:$0xff] %v2690
    %2835 = vst [vmem:[#allocation3 + $0x1f8] sm:$0xff] %v2691
    %2836 = vst [vmem:[#allocation3 + $0x200] sm:$0xff] %v2692
    %2837 = vst [vmem:[#allocation3 + $0x208] sm:$0xff] %v2693
    %2838 = vst [vmem:[#allocation3 + $0x210] sm:$0xff] %v2694
    %2839 = vst [vmem:[#allocation3 + $0x218] sm:$0xff] %v2695
    %2840 = vst [vmem:[#allocation3 + $0x220] sm:$0xff] %v2696
    %2841 = vst [vmem:[#allocation3 + $0x228] sm:$0xff] %v2697
    %2842 = vst [vmem:[#allocation3 + $0x230] sm:$0xff] %v2698
    %2843 = vst [vmem:[#allocation3 + $0x238] sm:$0xff] %v2699
    %2844 = vst [vmem:[#allocation3 + $0x240] sm:$0xff] %v2700
    %2845 = vst [vmem:[#allocation3 + $0x248] sm:$0xff] %v2701
    %2846 = vst [vmem:[#allocation3 + $0x250] sm:$0xff] %v2702
    %2847 = vst [vmem:[#allocation3 + $0x258] sm:$0xff] %v2703
    %2848 = vst [vmem:[#allocation3 + $0x260] sm:$0xff] %v2704
    %2849 = vst [vmem:[#allocation3 + $0x268] sm:$0xff] %v2705
    %2850 = vst [vmem:[#allocation3 + $0x270] sm:$0xff] %v2706
    %2851 = vst [vmem:[#allocation3 + $0x278] sm:$0xff] %v2707
    %2852 = vst [vmem:[#allocation3 + $0x280] sm:$0xff] %v2708
    %2853 = vst [vmem:[#allocation3 + $0x288] sm:$0xff] %v2709
    %2854 = vst [vmem:[#allocation3 + $0x290] sm:$0xff] %v2710
    %2855 = vst [vmem:[#allocation3 + $0x298] sm:$0xff] %v2711
    %2856 = vst [vmem:[#allocation3 + $0x2a0] sm:$0xff] %v2712
    %2857 = vst [vmem:[#allocation3 + $0x2a8] sm:$0xff] %v2713
    %2858 = vst [vmem:[#allocation3 + $0x2b0] sm:$0xff] %v2714
    %2859 = vst [vmem:[#allocation3 + $0x2b8] sm:$0xff] %v2715
    %2860 = vst [vmem:[#allocation3 + $0x2c0] sm:$0xff] %v2716
    %2861 = vst [vmem:[#allocation3 + $0x2c8] sm:$0xff] %v2717
    %2862 = vst [vmem:[#allocation3 + $0x2d0] sm:$0xff] %v2718
    %2863 = vst [vmem:[#allocation3 + $0x2d8] sm:$0xff] %v2719
    %2864 = vst [vmem:[#allocation3 + $0x2e0] sm:$0xff] %v2720
    %2865 = vst [vmem:[#allocation3 + $0x2e8] sm:$0xff] %v2721
    %2866 = vst [vmem:[#allocation3 + $0x2f0] sm:$0xff] %v2722
    %2867 = vst [vmem:[#allocation3 + $0x2f8] sm:$0xff] %v2723
    %2868 = vst [vmem:[#allocation3 + $0x300] sm:$0xff] %v2724
    %2869 = vst [vmem:[#allocation3 + $0x308] sm:$0xff] %v2725
    %2870 = vst [vmem:[#allocation3 + $0x310] sm:$0xff] %v2726
    %2871 = vst [vmem:[#allocation3 + $0x318] sm:$0xff] %v2727
    %2872 = vst [vmem:[#allocation3 + $0x320] sm:$0xff] %v2728
    %2873 = vst [vmem:[#allocation3 + $0x328] sm:$0xff] %v2729
    %2874 = vst [vmem:[#allocation3 + $0x330] sm:$0xff] %v2730
    %2875 = vst [vmem:[#allocation3 + $0x338] sm:$0xff] %v2731
    %2876 = vst [vmem:[#allocation3 + $0x340] sm:$0xff] %v2732
    %2877 = vst [vmem:[#allocation3 + $0x348] sm:$0xff] %v2733
    %2878 = vst [vmem:[#allocation3 + $0x350] sm:$0xff] %v2734
    %2879 = vst [vmem:[#allocation3 + $0x358] sm:$0xff] %v2735
    %2880 = vst [vmem:[#allocation3 + $0x360] sm:$0xff] %v2736
    %2881 = vst [vmem:[#allocation3 + $0x368] sm:$0xff] %v2737
    %2882 = vst [vmem:[#allocation3 + $0x370] sm:$0xff] %v2738
    %2883 = vst [vmem:[#allocation3 + $0x378] sm:$0xff] %v2739
    %2884 = vst [vmem:[#allocation3 + $0x380] sm:$0xff] %v2740
    %2885 = vst [vmem:[#allocation3 + $0x388] sm:$0xff] %v2741
    %2886 = vst [vmem:[#allocation3 + $0x390] sm:$0xff] %v2742
    %2887 = vst [vmem:[#allocation3 + $0x398] sm:$0xff] %v2743
    %2888 = vst [vmem:[#allocation3 + $0x3a0] sm:$0xff] %v2744
    %2889 = vst [vmem:[#allocation3 + $0x3a8] sm:$0xff] %v2745
    %2890 = vst [vmem:[#allocation3 + $0x3b0] sm:$0xff] %v2746
    %2891 = vst [vmem:[#allocation3 + $0x3b8] sm:$0xff] %v2747
    %2892 = vst [vmem:[#allocation3 + $0x3c0] sm:$0xff] %v2748
    %2893 = vst [vmem:[#allocation3 + $0x3c8] sm:$0xff] %v2749
    %2894 = vst [vmem:[#allocation3 + $0x3d0] sm:$0xff] %v2750
    %2895 = vst [vmem:[#allocation3 + $0x3d8] sm:$0xff] %v2751
    %2896 = vst [vmem:[#allocation3 + $0x3e0] sm:$0xff] %v2752
    %2897 = vst [vmem:[#allocation3 + $0x3e8] sm:$0xff] %v2753
    %2898 = vst [vmem:[#allocation3 + $0x3f0] sm:$0xff] %v2754
    %2899 = vst [vmem:[#allocation3 + $0x3f8] sm:$0xff] %v2755
    %2900 = vst [vmem:[#allocation3 + $0x400] sm:$0xff] %v2756
    %2901 = vst [vmem:[#allocation3 + $0x408] sm:$0xff] %v2757
    %2902 = vst [vmem:[#allocation3 + $0x410] sm:$0xff] %v2758
    %2903 = vst [vmem:[#allocation3 + $0x418] sm:$0xff] %v2759
    %2904 = vst [vmem:[#allocation3 + $0x420] sm:$0xff] %v2760
    %2905 = vst [vmem:[#allocation3 + $0x428] sm:$0xff] %v2761
    %2906 = vst [vmem:[#allocation3 + $0x430] sm:$0xff] %v2762
    %2907 = vst [vmem:[#allocation3 + $0x438] sm:$0xff] %v2763
    %2908 = vst [vmem:[#allocation3 + $0x440] sm:$0xff] %v2764
    %2909 = vst [vmem:[#allocation3 + $0x448] sm:$0xff] %v2765
    %2910 = vst [vmem:[#allocation3 + $0x450] sm:$0xff] %v2766
    %2911 = vst [vmem:[#allocation3 + $0x458] sm:$0xff] %v2767
    %2912 = vst [vmem:[#allocation3 + $0x460] sm:$0xff] %v2768
    %2913 = vst [vmem:[#allocation3 + $0x468] sm:$0xff] %v2769
    %2914 = vst [vmem:[#allocation3 + $0x470] sm:$0xff] %v2770
    %2915 = vst [vmem:[#allocation3 + $0x478] sm:$0xff] %v2771
    %v2916 = vld [vmem:[#allocation3] sm:$0xff]
    %v2917 = vld [vmem:[#allocation3 + $0x8] sm:$0xff]
    %v2918 = vld [vmem:[#allocation3 + $0x10] sm:$0xff]
    %v2919 = vld [vmem:[#allocation3 + $0x18] sm:$0xff]
    %v2920 = vld [vmem:[#allocation3 + $0x20] sm:$0xff]
    %v2921 = vld [vmem:[#allocation3 + $0x28] sm:$0xff]
    %v2922 = vld [vmem:[#allocation3 + $0x30] sm:$0xff]
    %v2923 = vld [vmem:[#allocation3 + $0x38] sm:$0xff]
    %v2924 = vld [vmem:[#allocation3 + $0x40] sm:$0xff]
    %v2925 = vld [vmem:[#allocation3 + $0x48] sm:$0xff]
    %v2926 = vld [vmem:[#allocation3 + $0x50] sm:$0xff]
    %v2927 = vld [vmem:[#allocation3 + $0x58] sm:$0xff]
    %v2928 = vld [vmem:[#allocation3 + $0x60] sm:$0xff]
    %v2929 = vld [vmem:[#allocation3 + $0x68] sm:$0xff]
    %v2930 = vld [vmem:[#allocation3 + $0x70] sm:$0xff]
    %v2931 = vld [vmem:[#allocation3 + $0x78] sm:$0xff]
    %v2932 = vld [vmem:[#allocation3 + $0x80] sm:$0xff]
    %v2933 = vld [vmem:[#allocation3 + $0x88] sm:$0xff]
    %v2934 = vld [vmem:[#allocation3 + $0x90] sm:$0xff]
    %v2935 = vld [vmem:[#allocation3 + $0x98] sm:$0xff]
    %v2936 = vld [vmem:[#allocation3 + $0xa0] sm:$0xff]
    %v2937 = vld [vmem:[#allocation3 + $0xa8] sm:$0xff]
    %v2938 = vld [vmem:[#allocation3 + $0xb0] sm:$0xff]
    %v2939 = vld [vmem:[#allocation3 + $0xb8] sm:$0xff]
    %v2940 = vld [vmem:[#allocation3 + $0xc0] sm:$0xff]
    %v2941 = vld [vmem:[#allocation3 + $0xc8] sm:$0xff]
    %v2942 = vld [vmem:[#allocation3 + $0xd0] sm:$0xff]
    %v2943 = vld [vmem:[#allocation3 + $0xd8] sm:$0xff]
    %v2944 = vld [vmem:[#allocation3 + $0xe0] sm:$0xff]
    %v2945 = vld [vmem:[#allocation3 + $0xe8] sm:$0xff]
    %v2946 = vld [vmem:[#allocation3 + $0xf0] sm:$0xff]
    %v2947 = vld [vmem:[#allocation3 + $0xf8] sm:$0xff]
    %v2948 = vld [vmem:[#allocation3 + $0x100] sm:$0xff]
    %v2949 = vld [vmem:[#allocation3 + $0x108] sm:$0xff]
    %v2950 = vld [vmem:[#allocation3 + $0x110] sm:$0xff]
    %v2951 = vld [vmem:[#allocation3 + $0x118] sm:$0xff]
    %v2952 = vld [vmem:[#allocation3 + $0x120] sm:$0xff]
    %v2953 = vld [vmem:[#allocation3 + $0x128] sm:$0xff]
    %v2954 = vld [vmem:[#allocation3 + $0x130] sm:$0xff]
    %v2955 = vld [vmem:[#allocation3 + $0x138] sm:$0xff]
    %v2956 = vld [vmem:[#allocation3 + $0x140] sm:$0xff]
    %v2957 = vld [vmem:[#allocation3 + $0x148] sm:$0xff]
    %v2958 = vld [vmem:[#allocation3 + $0x150] sm:$0xff]
    %v2959 = vld [vmem:[#allocation3 + $0x158] sm:$0xff]
    %v2960 = vld [vmem:[#allocation3 + $0x160] sm:$0xff]
    %v2961 = vld [vmem:[#allocation3 + $0x168] sm:$0xff]
    %v2962 = vld [vmem:[#allocation3 + $0x170] sm:$0xff]
    %v2963 = vld [vmem:[#allocation3 + $0x178] sm:$0xff]
    %v2964 = vld [vmem:[#allocation3 + $0x180] sm:$0xff]
    %v2965 = vld [vmem:[#allocation3 + $0x188] sm:$0xff]
    %v2966 = vld [vmem:[#allocation3 + $0x190] sm:$0xff]
    %v2967 = vld [vmem:[#allocation3 + $0x198] sm:$0xff]
    %v2968 = vld [vmem:[#allocation3 + $0x1a0] sm:$0xff]
    %v2969 = vld [vmem:[#allocation3 + $0x1a8] sm:$0xff]
    %v2970 = vld [vmem:[#allocation3 + $0x1b0] sm:$0xff]
    %v2971 = vld [vmem:[#allocation3 + $0x1b8] sm:$0xff]
    %v2972 = vld [vmem:[#allocation3 + $0x1c0] sm:$0xff]
    %v2973 = vld [vmem:[#allocation3 + $0x1c8] sm:$0xff]
    %v2974 = vld [vmem:[#allocation3 + $0x1d0] sm:$0xff]
    %v2975 = vld [vmem:[#allocation3 + $0x1d8] sm:$0xff]
    %v2976 = vld [vmem:[#allocation3 + $0x1e0] sm:$0xff]
    %v2977 = vld [vmem:[#allocation3 + $0x1e8] sm:$0xff]
    %v2978 = vld [vmem:[#allocation3 + $0x1f0] sm:$0xff]
    %v2979 = vld [vmem:[#allocation3 + $0x1f8] sm:$0xff]
    %v2980 = vld [vmem:[#allocation3 + $0x200] sm:$0xff]
    %v2981 = vld [vmem:[#allocation3 + $0x208] sm:$0xff]
    %v2982 = vld [vmem:[#allocation3 + $0x210] sm:$0xff]
    %v2983 = vld [vmem:[#allocation3 + $0x218] sm:$0xff]
    %v2984 = vld [vmem:[#allocation3 + $0x220] sm:$0xff]
    %v2985 = vld [vmem:[#allocation3 + $0x228] sm:$0xff]
    %v2986 = vld [vmem:[#allocation3 + $0x230] sm:$0xff]
    %v2987 = vld [vmem:[#allocation3 + $0x238] sm:$0xff]
    %v2988 = vld [vmem:[#allocation3 + $0x240] sm:$0xff]
    %v2989 = vld [vmem:[#allocation3 + $0x248] sm:$0xff]
    %v2990 = vld [vmem:[#allocation3 + $0x250] sm:$0xff]
    %v2991 = vld [vmem:[#allocation3 + $0x258] sm:$0xff]
    %v2992 = vld [vmem:[#allocation3 + $0x260] sm:$0xff]
    %v2993 = vld [vmem:[#allocation3 + $0x268] sm:$0xff]
    %v2994 = vld [vmem:[#allocation3 + $0x270] sm:$0xff]
    %v2995 = vld [vmem:[#allocation3 + $0x278] sm:$0xff]
    %v2996 = vld [vmem:[#allocation3 + $0x280] sm:$0xff]
    %v2997 = vld [vmem:[#allocation3 + $0x288] sm:$0xff]
    %v2998 = vld [vmem:[#allocation3 + $0x290] sm:$0xff]
    %v2999 = vld [vmem:[#allocation3 + $0x298] sm:$0xff]
    %v3000 = vld [vmem:[#allocation3 + $0x2a0] sm:$0xff]
    %v3001 = vld [vmem:[#allocation3 + $0x2a8] sm:$0xff]
    %v3002 = vld [vmem:[#allocation3 + $0x2b0] sm:$0xff]
    %v3003 = vld [vmem:[#allocation3 + $0x2b8] sm:$0xff]
    %v3004 = vld [vmem:[#allocation3 + $0x2c0] sm:$0xff]
    %v3005 = vld [vmem:[#allocation3 + $0x2c8] sm:$0xff]
    %v3006 = vld [vmem:[#allocation3 + $0x2d0] sm:$0xff]
    %v3007 = vld [vmem:[#allocation3 + $0x2d8] sm:$0xff]
    %v3008 = vld [vmem:[#allocation3 + $0x2e0] sm:$0xff]
    %v3009 = vld [vmem:[#allocation3 + $0x2e8] sm:$0xff]
    %v3010 = vld [vmem:[#allocation3 + $0x2f0] sm:$0xff]
    %v3011 = vld [vmem:[#allocation3 + $0x2f8] sm:$0xff]
    %v3012 = vld [vmem:[#allocation3 + $0x300] sm:$0xff]
    %v3013 = vld [vmem:[#allocation3 + $0x308] sm:$0xff]
    %v3014 = vld [vmem:[#allocation3 + $0x310] sm:$0xff]
    %v3015 = vld [vmem:[#allocation3 + $0x318] sm:$0xff]
    %v3016 = vld [vmem:[#allocation3 + $0x320] sm:$0xff]
    %v3017 = vld [vmem:[#allocation3 + $0x328] sm:$0xff]
    %v3018 = vld [vmem:[#allocation3 + $0x330] sm:$0xff]
    %v3019 = vld [vmem:[#allocation3 + $0x338] sm:$0xff]
    %v3020 = vld [vmem:[#allocation3 + $0x340] sm:$0xff]
    %v3021 = vld [vmem:[#allocation3 + $0x348] sm:$0xff]
    %v3022 = vld [vmem:[#allocation3 + $0x350] sm:$0xff]
    %v3023 = vld [vmem:[#allocation3 + $0x358] sm:$0xff]
    %v3024 = vld [vmem:[#allocation3 + $0x360] sm:$0xff]
    %v3025 = vld [vmem:[#allocation3 + $0x368] sm:$0xff]
    %v3026 = vld [vmem:[#allocation3 + $0x370] sm:$0xff]
    %v3027 = vld [vmem:[#allocation3 + $0x378] sm:$0xff]
    %v3028 = vld [vmem:[#allocation3 + $0x380] sm:$0xff]
    %v3029 = vld [vmem:[#allocation3 + $0x388] sm:$0xff]
    %v3030 = vld [vmem:[#allocation3 + $0x390] sm:$0xff]
    %v3031 = vld [vmem:[#allocation3 + $0x398] sm:$0xff]
    %v3032 = vld [vmem:[#allocation3 + $0x3a0] sm:$0xff]
    %v3033 = vld [vmem:[#allocation3 + $0x3a8] sm:$0xff]
    %v3034 = vld [vmem:[#allocation3 + $0x3b0] sm:$0xff]
    %v3035 = vld [vmem:[#allocation3 + $0x3b8] sm:$0xff]
    %v3036 = vld [vmem:[#allocation3 + $0x3c0] sm:$0xff]
    %v3037 = vld [vmem:[#allocation3 + $0x3c8] sm:$0xff]
    %v3038 = vld [vmem:[#allocation3 + $0x3d0] sm:$0xff]
    %v3039 = vld [vmem:[#allocation3 + $0x3d8] sm:$0xff]
    %v3040 = vld [vmem:[#allocation3 + $0x3e0] sm:$0xff]
    %v3041 = vld [vmem:[#allocation3 + $0x3e8] sm:$0xff]
    %v3042 = vld [vmem:[#allocation3 + $0x3f0] sm:$0xff]
    %v3043 = vld [vmem:[#allocation3 + $0x3f8] sm:$0xff]
    %v3044 = vld [vmem:[#allocation3 + $0x400] sm:$0xff]
    %v3045 = vld [vmem:[#allocation3 + $0x408] sm:$0xff]
    %v3046 = vld [vmem:[#allocation3 + $0x410] sm:$0xff]
    %v3047 = vld [vmem:[#allocation3 + $0x418] sm:$0xff]
    %v3048 = vld [vmem:[#allocation3 + $0x420] sm:$0xff]
    %v3049 = vld [vmem:[#allocation3 + $0x428] sm:$0xff]
    %v3050 = vld [vmem:[#allocation3 + $0x430] sm:$0xff]
    %v3051 = vld [vmem:[#allocation3 + $0x438] sm:$0xff]
    %v3052 = vld [vmem:[#allocation3 + $0x440] sm:$0xff]
    %v3053 = vld [vmem:[#allocation3 + $0x448] sm:$0xff]
    %v3054 = vld [vmem:[#allocation3 + $0x450] sm:$0xff]
    %v3055 = vld [vmem:[#allocation3 + $0x458] sm:$0xff]
    %v3056 = vld [vmem:[#allocation3 + $0x460] sm:$0xff]
    %v3057 = vld [vmem:[#allocation3 + $0x468] sm:$0xff]
    %v3058 = vld [vmem:[#allocation3 + $0x470] sm:$0xff]
    %v3059 = vld [vmem:[#allocation3 + $0x478] sm:$0xff]
    %v3060 = vpack.c.bf16 %v2917, %v2916
    %v3061 = vpack.c.bf16 %v2919, %v2918
    %v3062 = vpack.c.bf16 %v2921, %v2920
    %v3063 = vpack.c.bf16 %v2923, %v2922
    %v3064 = vpack.c.bf16 %v2925, %v2924
    %v3065 = vpack.c.bf16 %v2927, %v2926
    %v3066 = vpack.c.bf16 %v2929, %v2928
    %v3067 = vpack.c.bf16 %v2931, %v2930
    %v3068 = vpack.c.bf16 %v2933, %v2932
    %v3069 = vpack.c.bf16 %v2935, %v2934
    %v3070 = vpack.c.bf16 %v2937, %v2936
    %v3071 = vpack.c.bf16 %v2939, %v2938
    %v3072 = vpack.c.bf16 %v2941, %v2940
    %v3073 = vpack.c.bf16 %v2943, %v2942
    %v3074 = vpack.c.bf16 %v2945, %v2944
    %v3075 = vpack.c.bf16 %v2947, %v2946
    %v3076 = vpack.c.bf16 %v2949, %v2948
    %v3077 = vpack.c.bf16 %v2951, %v2950
    %v3078 = vpack.c.bf16 %v2953, %v2952
    %v3079 = vpack.c.bf16 %v2955, %v2954
    %v3080 = vpack.c.bf16 %v2957, %v2956
    %v3081 = vpack.c.bf16 %v2959, %v2958
    %v3082 = vpack.c.bf16 %v2961, %v2960
    %v3083 = vpack.c.bf16 %v2963, %v2962
    %v3084 = vpack.c.bf16 %v2965, %v2964
    %v3085 = vpack.c.bf16 %v2967, %v2966
    %v3086 = vpack.c.bf16 %v2969, %v2968
    %v3087 = vpack.c.bf16 %v2971, %v2970
    %v3088 = vpack.c.bf16 %v2973, %v2972
    %v3089 = vpack.c.bf16 %v2975, %v2974
    %v3090 = vpack.c.bf16 %v2977, %v2976
    %v3091 = vpack.c.bf16 %v2979, %v2978
    %v3092 = vpack.c.bf16 %v2981, %v2980
    %v3093 = vpack.c.bf16 %v2983, %v2982
    %v3094 = vpack.c.bf16 %v2985, %v2984
    %v3095 = vpack.c.bf16 %v2987, %v2986
    %v3096 = vpack.c.bf16 %v2989, %v2988
    %v3097 = vpack.c.bf16 %v2991, %v2990
    %v3098 = vpack.c.bf16 %v2993, %v2992
    %v3099 = vpack.c.bf16 %v2995, %v2994
    %v3100 = vpack.c.bf16 %v2997, %v2996
    %v3101 = vpack.c.bf16 %v2999, %v2998
    %v3102 = vpack.c.bf16 %v3001, %v3000
    %v3103 = vpack.c.bf16 %v3003, %v3002
    %v3104 = vpack.c.bf16 %v3005, %v3004
    %v3105 = vpack.c.bf16 %v3007, %v3006
    %v3106 = vpack.c.bf16 %v3009, %v3008
    %v3107 = vpack.c.bf16 %v3011, %v3010
    %v3108 = vpack.c.bf16 %v3013, %v3012
    %v3109 = vpack.c.bf16 %v3015, %v3014
    %v3110 = vpack.c.bf16 %v3017, %v3016
    %v3111 = vpack.c.bf16 %v3019, %v3018
    %v3112 = vpack.c.bf16 %v3021, %v3020
    %v3113 = vpack.c.bf16 %v3023, %v3022
    %v3114 = vpack.c.bf16 %v3025, %v3024
    %v3115 = vpack.c.bf16 %v3027, %v3026
    %v3116 = vpack.c.bf16 %v3029, %v3028
    %v3117 = vpack.c.bf16 %v3031, %v3030
    %v3118 = vpack.c.bf16 %v3033, %v3032
    %v3119 = vpack.c.bf16 %v3035, %v3034
    %v3120 = vpack.c.bf16 %v3037, %v3036
    %v3121 = vpack.c.bf16 %v3039, %v3038
    %v3122 = vpack.c.bf16 %v3041, %v3040
    %v3123 = vpack.c.bf16 %v3043, %v3042
    %v3124 = vpack.c.bf16 %v3045, %v3044
    %v3125 = vpack.c.bf16 %v3047, %v3046
    %v3126 = vpack.c.bf16 %v3049, %v3048
    %v3127 = vpack.c.bf16 %v3051, %v3050
    %v3128 = vpack.c.bf16 %v3053, %v3052
    %v3129 = vpack.c.bf16 %v3055, %v3054
    %v3130 = vpack.c.bf16 %v3057, %v3056
    %v3131 = vpack.c.bf16 %v3059, %v3058
    %s3132 = scalar_lea.vmem [#allocation4], 640
    %v3133 = vld [vmem:[%s3132] sm:$0xf]
    %v3134 = vld [vmem:[%s3132 + $0x4] sm:$0xf]
    %v3135 = vld [vmem:[%s3132 + $0x8] sm:$0xf]
    %v3136 = vld [vmem:[%s3132 + $0xc] sm:$0xf]
    %v3137 = vld [vmem:[%s3132 + $0x10] sm:$0xf]
    %v3138 = vld [vmem:[%s3132 + $0x14] sm:$0xf]
    %v3139 = vld [vmem:[%s3132 + $0x18] sm:$0xf]
    %v3140 = vld [vmem:[%s3132 + $0x1c] sm:$0xf]
    %v3141 = vld [vmem:[%s3132 + $0x20] sm:$0xf]
    %v3142 = vld [vmem:[%s3132 + $0x24] sm:$0xf]
    %v3143 = vld [vmem:[%s3132 + $0x28] sm:$0xf]
    %v3144 = vld [vmem:[%s3132 + $0x2c] sm:$0xf]
    %v3145 = vld [vmem:[%s3132 + $0x30] sm:$0xf]
    %v3146 = vld [vmem:[%s3132 + $0x34] sm:$0xf]
    %v3147 = vld [vmem:[%s3132 + $0x38] sm:$0xf]
    %v3148 = vld [vmem:[%s3132 + $0x3c] sm:$0xf]
    %s3149 = scalar_lea.vmem [#allocation6], 10
    %v3150 = vld [vmem:[%s3149] sm:$0x1]
    %v3152 = vlaneseq
    %v3153 = vshrl.u32 %v3152, 7
    %v3154 = vsub.s32 0, %v3153
    %v3155 = vrot.slane %v3150, %v3154
    %v3173 = vunpack.c.l.b16 %v3133
    %v3174 = vunpack.c.l.b16 %v3134
    %v3175 = vunpack.c.l.b16 %v3135
    %v3176 = vunpack.c.l.b16 %v3136
    %v3177 = vunpack.c.l.b16 %v3137
    %v3178 = vunpack.c.l.b16 %v3138
    %v3179 = vunpack.c.l.b16 %v3139
    %v3180 = vunpack.c.l.b16 %v3140
    %v3181 = vunpack.c.l.b16 %v3141
    %v3182 = vunpack.c.l.b16 %v3142
    %v3183 = vunpack.c.l.b16 %v3143
    %v3184 = vunpack.c.l.b16 %v3144
    %v3185 = vunpack.c.l.b16 %v3145
    %v3186 = vunpack.c.l.b16 %v3146
    %v3187 = vunpack.c.l.b16 %v3147
    %v3188 = vunpack.c.l.b16 %v3148
    %v3189 = vpack.c.b16 %v3174, %v3173
    %v3190 = vpack.c.b16 %v3176, %v3175
    %v3191 = vpack.c.b16 %v3178, %v3177
    %v3192 = vpack.c.b16 %v3180, %v3179
    %v3193 = vpack.c.b16 %v3182, %v3181
    %v3194 = vpack.c.b16 %v3184, %v3183
    %v3195 = vpack.c.b16 %v3186, %v3185
    %v3196 = vpack.c.b16 %v3188, %v3187
    %3205 = vmatprep.subr.bf16.mxu0 0
    %3206 = vmatpush1.bf16.msra.mxu0 %v3196
    %3207 = vmatprep.subr.bf16.mxu0 0
    %3208 = vmatpush1.bf16.msra.mxu0 %v3195
    %3209 = vmatprep.subr.bf16.mxu0 0
    %3210 = vmatpush1.bf16.msra.mxu0 %v3194
    %3211 = vmatprep.subr.bf16.mxu0 0
    %3212 = vmatpush1.bf16.msra.mxu0 %v3193
    %3213 = vmatprep.subr.bf16.mxu0 0
    %3214 = vmatpush1.bf16.msra.mxu0 %v3192
    %3215 = vmatprep.subr.bf16.mxu0 0
    %3216 = vmatpush1.bf16.msra.mxu0 %v3191
    %3217 = vmatprep.subr.bf16.mxu0 0
    %3218 = vmatpush1.bf16.msra.mxu0 %v3190
    %3219 = vmatprep.subr.bf16.mxu0 0
    %3220 = vmatpush1.bf16.msra.mxu0 %v3189
    %3221 = vmatprep.subr.bf16.mxu0 0
    %3222 = vmatpush2.bf16.msra.mxu0 0
    %3223 = vmatprep.subr.bf16.mxu0 0
    %3224 = vmatpush2.bf16.msra.mxu0 0
    %3225 = vmatprep.subr.bf16.mxu0 0
    %3226 = vmatpush2.bf16.msra.mxu0 0
    %3227 = vmatprep.subr.bf16.mxu0 0
    %3228 = vmatpush2.bf16.msra.mxu0 0
    %3229 = vmatprep.subr.bf16.mxu0 0
    %3230 = vmatpush2.bf16.msra.mxu0 0
    %3231 = vmatprep.subr.bf16.mxu0 0
    %3232 = vmatpush2.bf16.msra.mxu0 0
    %3233 = vmatprep.subr.bf16.mxu0 0
    %3234 = vmatpush2.bf16.msra.mxu0 0
    %3235 = vmatprep.subr.bf16.mxu0 0
    %3236 = vmatpush2.bf16.msra.mxu0 0
    %3237 = vmatprep.mubr.bf16.mxu0 0
    %3238 = vmatmul.mubr.bf16.gmra.mxu0 %v3060
    %v3239 = vpop.f32.mrf.mxu0
    %v3240 = vadd.f32 %v3155, %v3239
    %v3241 = vpop.f32.mrf.mxu0
    %v3242 = vpop.f32.mrf.mxu0
    %v3243 = vadd.f32 %v3155, %v3242
    %v3244 = vpop.f32.mrf.mxu0
    %3245 = vmatprep.mubr.bf16.mxu0 0
    %3246 = vmatmul.mubr.bf16.gmra.mxu0 %v3061
    %v3247 = vpop.f32.mrf.mxu0
    %v3248 = vadd.f32 %v3155, %v3247
    %v3249 = vpop.f32.mrf.mxu0
    %v3250 = vpop.f32.mrf.mxu0
    %v3251 = vadd.f32 %v3155, %v3250
    %v3252 = vpop.f32.mrf.mxu0
    %3253 = vmatprep.mubr.bf16.mxu0 0
    %3254 = vmatmul.mubr.bf16.gmra.mxu0 %v3062
    %v3255 = vpop.f32.mrf.mxu0
    %v3256 = vadd.f32 %v3155, %v3255
    %v3257 = vpop.f32.mrf.mxu0
    %v3258 = vpop.f32.mrf.mxu0
    %v3259 = vadd.f32 %v3155, %v3258
    %v3260 = vpop.f32.mrf.mxu0
    %3261 = vmatprep.mubr.bf16.mxu0 0
    %3262 = vmatmul.mubr.bf16.gmra.mxu0 %v3063
    %v3263 = vpop.f32.mrf.mxu0
    %v3264 = vadd.f32 %v3155, %v3263
    %v3265 = vpop.f32.mrf.mxu0
    %v3266 = vpop.f32.mrf.mxu0
    %v3267 = vadd.f32 %v3155, %v3266
    %v3268 = vpop.f32.mrf.mxu0
    %3269 = vmatprep.mubr.bf16.mxu0 0
    %3270 = vmatmul.mubr.bf16.gmra.mxu0 %v3064
    %v3271 = vpop.f32.mrf.mxu0
    %v3272 = vadd.f32 %v3155, %v3271
    %v3273 = vpop.f32.mrf.mxu0
    %v3274 = vpop.f32.mrf.mxu0
    %v3275 = vadd.f32 %v3155, %v3274
    %v3276 = vpop.f32.mrf.mxu0
    %3277 = vmatprep.mubr.bf16.mxu0 0
    %3278 = vmatmul.mubr.bf16.gmra.mxu0 %v3065
    %v3279 = vpop.f32.mrf.mxu0
    %v3280 = vadd.f32 %v3155, %v3279
    %v3281 = vpop.f32.mrf.mxu0
    %v3282 = vpop.f32.mrf.mxu0
    %v3283 = vadd.f32 %v3155, %v3282
    %v3284 = vpop.f32.mrf.mxu0
    %3285 = vmatprep.mubr.bf16.mxu0 0
    %3286 = vmatmul.mubr.bf16.gmra.mxu0 %v3066
    %v3287 = vpop.f32.mrf.mxu0
    %v3288 = vadd.f32 %v3155, %v3287
    %v3289 = vpop.f32.mrf.mxu0
    %v3290 = vpop.f32.mrf.mxu0
    %v3291 = vadd.f32 %v3155, %v3290
    %v3292 = vpop.f32.mrf.mxu0
    %3293 = vmatprep.mubr.bf16.mxu0 0
    %3294 = vmatmul.mubr.bf16.gmra.mxu0 %v3067
    %v3295 = vpop.f32.mrf.mxu0
    %v3296 = vadd.f32 %v3155, %v3295
    %v3297 = vpop.f32.mrf.mxu0
    %v3298 = vpop.f32.mrf.mxu0
    %v3299 = vadd.f32 %v3155, %v3298
    %v3300 = vpop.f32.mrf.mxu0
    %3301 = vmatprep.mubr.bf16.mxu0 0
    %3302 = vmatmul.mubr.bf16.gmra.mxu0 %v3068
    %v3303 = vpop.f32.mrf.mxu0
    %v3304 = vadd.f32 %v3155, %v3303
    %v3305 = vpop.f32.mrf.mxu0
    %v3306 = vpop.f32.mrf.mxu0
    %v3307 = vadd.f32 %v3155, %v3306
    %v3308 = vpop.f32.mrf.mxu0
    %3309 = vmatprep.mubr.bf16.mxu0 0
    %3310 = vmatmul.mubr.bf16.gmra.mxu0 %v3069
    %v3311 = vpop.f32.mrf.mxu0
    %v3312 = vadd.f32 %v3155, %v3311
    %v3313 = vpop.f32.mrf.mxu0
    %v3314 = vpop.f32.mrf.mxu0
    %v3315 = vadd.f32 %v3155, %v3314
    %v3316 = vpop.f32.mrf.mxu0
    %3317 = vmatprep.mubr.bf16.mxu0 0
    %3318 = vmatmul.mubr.bf16.gmra.mxu0 %v3070
    %v3319 = vpop.f32.mrf.mxu0
    %v3320 = vadd.f32 %v3155, %v3319
    %v3321 = vpop.f32.mrf.mxu0
    %v3322 = vpop.f32.mrf.mxu0
    %v3323 = vadd.f32 %v3155, %v3322
    %v3324 = vpop.f32.mrf.mxu0
    %3325 = vmatprep.mubr.bf16.mxu0 0
    %3326 = vmatmul.mubr.bf16.gmra.mxu0 %v3071
    %v3327 = vpop.f32.mrf.mxu0
    %v3328 = vadd.f32 %v3155, %v3327
    %v3329 = vpop.f32.mrf.mxu0
    %v3330 = vpop.f32.mrf.mxu0
    %v3331 = vadd.f32 %v3155, %v3330
    %v3332 = vpop.f32.mrf.mxu0
    %3333 = vmatprep.mubr.bf16.mxu0 0
    %3334 = vmatmul.mubr.bf16.gmra.mxu0 %v3072
    %v3335 = vpop.f32.mrf.mxu0
    %v3336 = vadd.f32 %v3155, %v3335
    %v3337 = vpop.f32.mrf.mxu0
    %v3338 = vpop.f32.mrf.mxu0
    %v3339 = vadd.f32 %v3155, %v3338
    %v3340 = vpop.f32.mrf.mxu0
    %3341 = vmatprep.mubr.bf16.mxu0 0
    %3342 = vmatmul.mubr.bf16.gmra.mxu0 %v3073
    %v3343 = vpop.f32.mrf.mxu0
    %v3344 = vadd.f32 %v3155, %v3343
    %v3345 = vpop.f32.mrf.mxu0
    %v3346 = vpop.f32.mrf.mxu0
    %v3347 = vadd.f32 %v3155, %v3346
    %v3348 = vpop.f32.mrf.mxu0
    %3349 = vmatprep.mubr.bf16.mxu0 0
    %3350 = vmatmul.mubr.bf16.gmra.mxu0 %v3074
    %v3351 = vpop.f32.mrf.mxu0
    %v3352 = vadd.f32 %v3155, %v3351
    %v3353 = vpop.f32.mrf.mxu0
    %v3354 = vpop.f32.mrf.mxu0
    %v3355 = vadd.f32 %v3155, %v3354
    %v3356 = vpop.f32.mrf.mxu0
    %3357 = vmatprep.mubr.bf16.mxu0 0
    %3358 = vmatmul.mubr.bf16.gmra.mxu0 %v3075
    %v3359 = vpop.f32.mrf.mxu0
    %v3360 = vadd.f32 %v3155, %v3359
    %v3361 = vpop.f32.mrf.mxu0
    %v3362 = vpop.f32.mrf.mxu0
    %v3363 = vadd.f32 %v3155, %v3362
    %v3364 = vpop.f32.mrf.mxu0
    %3365 = vmatprep.mubr.bf16.mxu0 0
    %3366 = vmatmul.mubr.bf16.gmra.mxu0 %v3076
    %v3367 = vpop.f32.mrf.mxu0
    %v3368 = vadd.f32 %v3155, %v3367
    %v3369 = vpop.f32.mrf.mxu0
    %v3370 = vpop.f32.mrf.mxu0
    %v3371 = vadd.f32 %v3155, %v3370
    %v3372 = vpop.f32.mrf.mxu0
    %3373 = vmatprep.mubr.bf16.mxu0 0
    %3374 = vmatmul.mubr.bf16.gmra.mxu0 %v3077
    %v3375 = vpop.f32.mrf.mxu0
    %v3376 = vadd.f32 %v3155, %v3375
    %v3377 = vpop.f32.mrf.mxu0
    %v3378 = vpop.f32.mrf.mxu0
    %v3379 = vadd.f32 %v3155, %v3378
    %v3380 = vpop.f32.mrf.mxu0
    %3381 = vmatprep.mubr.bf16.mxu0 0
    %3382 = vmatmul.mubr.bf16.gmra.mxu0 %v3078
    %v3383 = vpop.f32.mrf.mxu0
    %v3384 = vadd.f32 %v3155, %v3383
    %v3385 = vpop.f32.mrf.mxu0
    %v3386 = vpop.f32.mrf.mxu0
    %v3387 = vadd.f32 %v3155, %v3386
    %v3388 = vpop.f32.mrf.mxu0
    %3389 = vmatprep.mubr.bf16.mxu0 0
    %3390 = vmatmul.mubr.bf16.gmra.mxu0 %v3079
    %v3391 = vpop.f32.mrf.mxu0
    %v3392 = vadd.f32 %v3155, %v3391
    %v3393 = vpop.f32.mrf.mxu0
    %v3394 = vpop.f32.mrf.mxu0
    %v3395 = vadd.f32 %v3155, %v3394
    %v3396 = vpop.f32.mrf.mxu0
    %3397 = vmatprep.mubr.bf16.mxu0 0
    %3398 = vmatmul.mubr.bf16.gmra.mxu0 %v3080
    %v3399 = vpop.f32.mrf.mxu0
    %v3400 = vadd.f32 %v3155, %v3399
    %v3401 = vpop.f32.mrf.mxu0
    %v3402 = vpop.f32.mrf.mxu0
    %v3403 = vadd.f32 %v3155, %v3402
    %v3404 = vpop.f32.mrf.mxu0
    %3405 = vmatprep.mubr.bf16.mxu0 0
    %3406 = vmatmul.mubr.bf16.gmra.mxu0 %v3081
    %v3407 = vpop.f32.mrf.mxu0
    %v3408 = vadd.f32 %v3155, %v3407
    %v3409 = vpop.f32.mrf.mxu0
    %v3410 = vpop.f32.mrf.mxu0
    %v3411 = vadd.f32 %v3155, %v3410
    %v3412 = vpop.f32.mrf.mxu0
    %3413 = vmatprep.mubr.bf16.mxu0 0
    %3414 = vmatmul.mubr.bf16.gmra.mxu0 %v3082
    %v3415 = vpop.f32.mrf.mxu0
    %v3416 = vadd.f32 %v3155, %v3415
    %v3417 = vpop.f32.mrf.mxu0
    %v3418 = vpop.f32.mrf.mxu0
    %v3419 = vadd.f32 %v3155, %v3418
    %v3420 = vpop.f32.mrf.mxu0
    %3421 = vmatprep.mubr.bf16.mxu0 0
    %3422 = vmatmul.mubr.bf16.gmra.mxu0 %v3083
    %v3423 = vpop.f32.mrf.mxu0
    %v3424 = vadd.f32 %v3155, %v3423
    %v3425 = vpop.f32.mrf.mxu0
    %v3426 = vpop.f32.mrf.mxu0
    %v3427 = vadd.f32 %v3155, %v3426
    %v3428 = vpop.f32.mrf.mxu0
    %3429 = vmatprep.mubr.bf16.mxu0 0
    %3430 = vmatmul.mubr.bf16.gmra.mxu0 %v3084
    %v3431 = vpop.f32.mrf.mxu0
    %v3432 = vadd.f32 %v3155, %v3431
    %v3433 = vpop.f32.mrf.mxu0
    %v3434 = vpop.f32.mrf.mxu0
    %v3435 = vadd.f32 %v3155, %v3434
    %v3436 = vpop.f32.mrf.mxu0
    %3437 = vmatprep.mubr.bf16.mxu0 0
    %3438 = vmatmul.mubr.bf16.gmra.mxu0 %v3085
    %v3439 = vpop.f32.mrf.mxu0
    %v3440 = vadd.f32 %v3155, %v3439
    %v3441 = vpop.f32.mrf.mxu0
    %v3442 = vpop.f32.mrf.mxu0
    %v3443 = vadd.f32 %v3155, %v3442
    %v3444 = vpop.f32.mrf.mxu0
    %3445 = vmatprep.mubr.bf16.mxu0 0
    %3446 = vmatmul.mubr.bf16.gmra.mxu0 %v3086
    %v3447 = vpop.f32.mrf.mxu0
    %v3448 = vadd.f32 %v3155, %v3447
    %v3449 = vpop.f32.mrf.mxu0
    %v3450 = vpop.f32.mrf.mxu0
    %v3451 = vadd.f32 %v3155, %v3450
    %v3452 = vpop.f32.mrf.mxu0
    %3453 = vmatprep.mubr.bf16.mxu0 0
    %3454 = vmatmul.mubr.bf16.gmra.mxu0 %v3087
    %v3455 = vpop.f32.mrf.mxu0
    %v3456 = vadd.f32 %v3155, %v3455
    %v3457 = vpop.f32.mrf.mxu0
    %v3458 = vpop.f32.mrf.mxu0
    %v3459 = vadd.f32 %v3155, %v3458
    %v3460 = vpop.f32.mrf.mxu0
    %3461 = vmatprep.mubr.bf16.mxu0 0
    %3462 = vmatmul.mubr.bf16.gmra.mxu0 %v3088
    %v3463 = vpop.f32.mrf.mxu0
    %v3464 = vadd.f32 %v3155, %v3463
    %v3465 = vpop.f32.mrf.mxu0
    %v3466 = vpop.f32.mrf.mxu0
    %v3467 = vadd.f32 %v3155, %v3466
    %v3468 = vpop.f32.mrf.mxu0
    %3469 = vmatprep.mubr.bf16.mxu0 0
    %3470 = vmatmul.mubr.bf16.gmra.mxu0 %v3089
    %v3471 = vpop.f32.mrf.mxu0
    %v3472 = vadd.f32 %v3155, %v3471
    %v3473 = vpop.f32.mrf.mxu0
    %v3474 = vpop.f32.mrf.mxu0
    %v3475 = vadd.f32 %v3155, %v3474
    %v3476 = vpop.f32.mrf.mxu0
    %3477 = vmatprep.mubr.bf16.mxu0 0
    %3478 = vmatmul.mubr.bf16.gmra.mxu0 %v3090
    %v3479 = vpop.f32.mrf.mxu0
    %v3480 = vadd.f32 %v3155, %v3479
    %v3481 = vpop.f32.mrf.mxu0
    %v3482 = vpop.f32.mrf.mxu0
    %v3483 = vadd.f32 %v3155, %v3482
    %v3484 = vpop.f32.mrf.mxu0
    %3485 = vmatprep.mubr.bf16.mxu0 0
    %3486 = vmatmul.mubr.bf16.gmra.mxu0 %v3091
    %v3487 = vpop.f32.mrf.mxu0
    %v3488 = vadd.f32 %v3155, %v3487
    %v3489 = vpop.f32.mrf.mxu0
    %v3490 = vpop.f32.mrf.mxu0
    %v3491 = vadd.f32 %v3155, %v3490
    %v3492 = vpop.f32.mrf.mxu0
    %3493 = vmatprep.mubr.bf16.mxu0 0
    %3494 = vmatmul.mubr.bf16.gmra.mxu0 %v3092
    %v3495 = vpop.f32.mrf.mxu0
    %v3496 = vadd.f32 %v3155, %v3495
    %v3497 = vpop.f32.mrf.mxu0
    %v3498 = vpop.f32.mrf.mxu0
    %v3499 = vadd.f32 %v3155, %v3498
    %v3500 = vpop.f32.mrf.mxu0
    %3501 = vmatprep.mubr.bf16.mxu0 0
    %3502 = vmatmul.mubr.bf16.gmra.mxu0 %v3093
    %v3503 = vpop.f32.mrf.mxu0
    %v3504 = vadd.f32 %v3155, %v3503
    %v3505 = vpop.f32.mrf.mxu0
    %v3506 = vpop.f32.mrf.mxu0
    %v3507 = vadd.f32 %v3155, %v3506
    %v3508 = vpop.f32.mrf.mxu0
    %3509 = vmatprep.mubr.bf16.mxu0 0
    %3510 = vmatmul.mubr.bf16.gmra.mxu0 %v3094
    %v3511 = vpop.f32.mrf.mxu0
    %v3512 = vadd.f32 %v3155, %v3511
    %v3513 = vpop.f32.mrf.mxu0
    %v3514 = vpop.f32.mrf.mxu0
    %v3515 = vadd.f32 %v3155, %v3514
    %v3516 = vpop.f32.mrf.mxu0
    %3517 = vmatprep.mubr.bf16.mxu0 0
    %3518 = vmatmul.mubr.bf16.gmra.mxu0 %v3095
    %v3519 = vpop.f32.mrf.mxu0
    %v3520 = vadd.f32 %v3155, %v3519
    %v3521 = vpop.f32.mrf.mxu0
    %v3522 = vpop.f32.mrf.mxu0
    %v3523 = vadd.f32 %v3155, %v3522
    %v3524 = vpop.f32.mrf.mxu0
    %3525 = vmatprep.mubr.bf16.mxu0 0
    %3526 = vmatmul.mubr.bf16.gmra.mxu0 %v3096
    %v3527 = vpop.f32.mrf.mxu0
    %v3528 = vadd.f32 %v3155, %v3527
    %v3529 = vpop.f32.mrf.mxu0
    %v3530 = vpop.f32.mrf.mxu0
    %v3531 = vadd.f32 %v3155, %v3530
    %v3532 = vpop.f32.mrf.mxu0
    %3533 = vmatprep.mubr.bf16.mxu0 0
    %3534 = vmatmul.mubr.bf16.gmra.mxu0 %v3097
    %v3535 = vpop.f32.mrf.mxu0
    %v3536 = vadd.f32 %v3155, %v3535
    %v3537 = vpop.f32.mrf.mxu0
    %v3538 = vpop.f32.mrf.mxu0
    %v3539 = vadd.f32 %v3155, %v3538
    %v3540 = vpop.f32.mrf.mxu0
    %3541 = vmatprep.mubr.bf16.mxu0 0
    %3542 = vmatmul.mubr.bf16.gmra.mxu0 %v3098
    %v3543 = vpop.f32.mrf.mxu0
    %v3544 = vadd.f32 %v3155, %v3543
    %v3545 = vpop.f32.mrf.mxu0
    %v3546 = vpop.f32.mrf.mxu0
    %v3547 = vadd.f32 %v3155, %v3546
    %v3548 = vpop.f32.mrf.mxu0
    %3549 = vmatprep.mubr.bf16.mxu0 0
    %3550 = vmatmul.mubr.bf16.gmra.mxu0 %v3099
    %v3551 = vpop.f32.mrf.mxu0
    %v3552 = vadd.f32 %v3155, %v3551
    %v3553 = vpop.f32.mrf.mxu0
    %v3554 = vpop.f32.mrf.mxu0
    %v3555 = vadd.f32 %v3155, %v3554
    %v3556 = vpop.f32.mrf.mxu0
    %3557 = vmatprep.mubr.bf16.mxu0 0
    %3558 = vmatmul.mubr.bf16.gmra.mxu0 %v3100
    %v3559 = vpop.f32.mrf.mxu0
    %v3560 = vadd.f32 %v3155, %v3559
    %v3561 = vpop.f32.mrf.mxu0
    %v3562 = vpop.f32.mrf.mxu0
    %v3563 = vadd.f32 %v3155, %v3562
    %v3564 = vpop.f32.mrf.mxu0
    %3565 = vmatprep.mubr.bf16.mxu0 0
    %3566 = vmatmul.mubr.bf16.gmra.mxu0 %v3101
    %v3567 = vpop.f32.mrf.mxu0
    %v3568 = vadd.f32 %v3155, %v3567
    %v3569 = vpop.f32.mrf.mxu0
    %v3570 = vpop.f32.mrf.mxu0
    %v3571 = vadd.f32 %v3155, %v3570
    %v3572 = vpop.f32.mrf.mxu0
    %3573 = vmatprep.mubr.bf16.mxu0 0
    %3574 = vmatmul.mubr.bf16.gmra.mxu0 %v3102
    %v3575 = vpop.f32.mrf.mxu0
    %v3576 = vadd.f32 %v3155, %v3575
    %v3577 = vpop.f32.mrf.mxu0
    %v3578 = vpop.f32.mrf.mxu0
    %v3579 = vadd.f32 %v3155, %v3578
    %v3580 = vpop.f32.mrf.mxu0
    %3581 = vmatprep.mubr.bf16.mxu0 0
    %3582 = vmatmul.mubr.bf16.gmra.mxu0 %v3103
    %v3583 = vpop.f32.mrf.mxu0
    %v3584 = vadd.f32 %v3155, %v3583
    %v3585 = vpop.f32.mrf.mxu0
    %v3586 = vpop.f32.mrf.mxu0
    %v3587 = vadd.f32 %v3155, %v3586
    %v3588 = vpop.f32.mrf.mxu0
    %3589 = vmatprep.mubr.bf16.mxu0 0
    %3590 = vmatmul.mubr.bf16.gmra.mxu0 %v3104
    %v3591 = vpop.f32.mrf.mxu0
    %v3592 = vadd.f32 %v3155, %v3591
    %v3593 = vpop.f32.mrf.mxu0
    %v3594 = vpop.f32.mrf.mxu0
    %v3595 = vadd.f32 %v3155, %v3594
    %v3596 = vpop.f32.mrf.mxu0
    %3597 = vmatprep.mubr.bf16.mxu0 0
    %3598 = vmatmul.mubr.bf16.gmra.mxu0 %v3105
    %v3599 = vpop.f32.mrf.mxu0
    %v3600 = vadd.f32 %v3155, %v3599
    %v3601 = vpop.f32.mrf.mxu0
    %v3602 = vpop.f32.mrf.mxu0
    %v3603 = vadd.f32 %v3155, %v3602
    %v3604 = vpop.f32.mrf.mxu0
    %3605 = vmatprep.mubr.bf16.mxu0 0
    %3606 = vmatmul.mubr.bf16.gmra.mxu0 %v3106
    %v3607 = vpop.f32.mrf.mxu0
    %v3608 = vadd.f32 %v3155, %v3607
    %v3609 = vpop.f32.mrf.mxu0
    %v3610 = vpop.f32.mrf.mxu0
    %v3611 = vadd.f32 %v3155, %v3610
    %v3612 = vpop.f32.mrf.mxu0
    %3613 = vmatprep.mubr.bf16.mxu0 0
    %3614 = vmatmul.mubr.bf16.gmra.mxu0 %v3107
    %v3615 = vpop.f32.mrf.mxu0
    %v3616 = vadd.f32 %v3155, %v3615
    %v3617 = vpop.f32.mrf.mxu0
    %v3618 = vpop.f32.mrf.mxu0
    %v3619 = vadd.f32 %v3155, %v3618
    %v3620 = vpop.f32.mrf.mxu0
    %3621 = vmatprep.mubr.bf16.mxu0 0
    %3622 = vmatmul.mubr.bf16.gmra.mxu0 %v3108
    %v3623 = vpop.f32.mrf.mxu0
    %v3624 = vadd.f32 %v3155, %v3623
    %v3625 = vpop.f32.mrf.mxu0
    %v3626 = vpop.f32.mrf.mxu0
    %v3627 = vadd.f32 %v3155, %v3626
    %v3628 = vpop.f32.mrf.mxu0
    %3629 = vmatprep.mubr.bf16.mxu0 0
    %3630 = vmatmul.mubr.bf16.gmra.mxu0 %v3109
    %v3631 = vpop.f32.mrf.mxu0
    %v3632 = vadd.f32 %v3155, %v3631
    %v3633 = vpop.f32.mrf.mxu0
    %v3634 = vpop.f32.mrf.mxu0
    %v3635 = vadd.f32 %v3155, %v3634
    %v3636 = vpop.f32.mrf.mxu0
    %3637 = vmatprep.mubr.bf16.mxu0 0
    %3638 = vmatmul.mubr.bf16.gmra.mxu0 %v3110
    %v3639 = vpop.f32.mrf.mxu0
    %v3640 = vadd.f32 %v3155, %v3639
    %v3641 = vpop.f32.mrf.mxu0
    %v3642 = vpop.f32.mrf.mxu0
    %v3643 = vadd.f32 %v3155, %v3642
    %v3644 = vpop.f32.mrf.mxu0
    %3645 = vmatprep.mubr.bf16.mxu0 0
    %3646 = vmatmul.mubr.bf16.gmra.mxu0 %v3111
    %v3647 = vpop.f32.mrf.mxu0
    %v3648 = vadd.f32 %v3155, %v3647
    %v3649 = vpop.f32.mrf.mxu0
    %v3650 = vpop.f32.mrf.mxu0
    %v3651 = vadd.f32 %v3155, %v3650
    %v3652 = vpop.f32.mrf.mxu0
    %3653 = vmatprep.mubr.bf16.mxu0 0
    %3654 = vmatmul.mubr.bf16.gmra.mxu0 %v3112
    %v3655 = vpop.f32.mrf.mxu0
    %v3656 = vadd.f32 %v3155, %v3655
    %v3657 = vpop.f32.mrf.mxu0
    %v3658 = vpop.f32.mrf.mxu0
    %v3659 = vadd.f32 %v3155, %v3658
    %v3660 = vpop.f32.mrf.mxu0
    %3661 = vmatprep.mubr.bf16.mxu0 0
    %3662 = vmatmul.mubr.bf16.gmra.mxu0 %v3113
    %v3663 = vpop.f32.mrf.mxu0
    %v3664 = vadd.f32 %v3155, %v3663
    %v3665 = vpop.f32.mrf.mxu0
    %v3666 = vpop.f32.mrf.mxu0
    %v3667 = vadd.f32 %v3155, %v3666
    %v3668 = vpop.f32.mrf.mxu0
    %3669 = vmatprep.mubr.bf16.mxu0 0
    %3670 = vmatmul.mubr.bf16.gmra.mxu0 %v3114
    %v3671 = vpop.f32.mrf.mxu0
    %v3672 = vadd.f32 %v3155, %v3671
    %v3673 = vpop.f32.mrf.mxu0
    %v3674 = vpop.f32.mrf.mxu0
    %v3675 = vadd.f32 %v3155, %v3674
    %v3676 = vpop.f32.mrf.mxu0
    %3677 = vmatprep.mubr.bf16.mxu0 0
    %3678 = vmatmul.mubr.bf16.gmra.mxu0 %v3115
    %v3679 = vpop.f32.mrf.mxu0
    %v3680 = vadd.f32 %v3155, %v3679
    %v3681 = vpop.f32.mrf.mxu0
    %v3682 = vpop.f32.mrf.mxu0
    %v3683 = vadd.f32 %v3155, %v3682
    %v3684 = vpop.f32.mrf.mxu0
    %3685 = vmatprep.mubr.bf16.mxu0 0
    %3686 = vmatmul.mubr.bf16.gmra.mxu0 %v3116
    %v3687 = vpop.f32.mrf.mxu0
    %v3688 = vadd.f32 %v3155, %v3687
    %v3689 = vpop.f32.mrf.mxu0
    %v3690 = vpop.f32.mrf.mxu0
    %v3691 = vadd.f32 %v3155, %v3690
    %v3692 = vpop.f32.mrf.mxu0
    %3693 = vmatprep.mubr.bf16.mxu0 0
    %3694 = vmatmul.mubr.bf16.gmra.mxu0 %v3117
    %v3695 = vpop.f32.mrf.mxu0
    %v3696 = vadd.f32 %v3155, %v3695
    %v3697 = vpop.f32.mrf.mxu0
    %v3698 = vpop.f32.mrf.mxu0
    %v3699 = vadd.f32 %v3155, %v3698
    %v3700 = vpop.f32.mrf.mxu0
    %3701 = vmatprep.mubr.bf16.mxu0 0
    %3702 = vmatmul.mubr.bf16.gmra.mxu0 %v3118
    %v3703 = vpop.f32.mrf.mxu0
    %v3704 = vadd.f32 %v3155, %v3703
    %v3705 = vpop.f32.mrf.mxu0
    %v3706 = vpop.f32.mrf.mxu0
    %v3707 = vadd.f32 %v3155, %v3706
    %v3708 = vpop.f32.mrf.mxu0
    %3709 = vmatprep.mubr.bf16.mxu0 0
    %3710 = vmatmul.mubr.bf16.gmra.mxu0 %v3119
    %v3711 = vpop.f32.mrf.mxu0
    %v3712 = vadd.f32 %v3155, %v3711
    %v3713 = vpop.f32.mrf.mxu0
    %v3714 = vpop.f32.mrf.mxu0
    %v3715 = vadd.f32 %v3155, %v3714
    %v3716 = vpop.f32.mrf.mxu0
    %3717 = vmatprep.mubr.bf16.mxu0 0
    %3718 = vmatmul.mubr.bf16.gmra.mxu0 %v3120
    %v3719 = vpop.f32.mrf.mxu0
    %v3720 = vadd.f32 %v3155, %v3719
    %v3721 = vpop.f32.mrf.mxu0
    %v3722 = vpop.f32.mrf.mxu0
    %v3723 = vadd.f32 %v3155, %v3722
    %v3724 = vpop.f32.mrf.mxu0
    %3725 = vmatprep.mubr.bf16.mxu0 0
    %3726 = vmatmul.mubr.bf16.gmra.mxu0 %v3121
    %v3727 = vpop.f32.mrf.mxu0
    %v3728 = vadd.f32 %v3155, %v3727
    %v3729 = vpop.f32.mrf.mxu0
    %v3730 = vpop.f32.mrf.mxu0
    %v3731 = vadd.f32 %v3155, %v3730
    %v3732 = vpop.f32.mrf.mxu0
    %3733 = vmatprep.mubr.bf16.mxu0 0
    %3734 = vmatmul.mubr.bf16.gmra.mxu0 %v3122
    %v3735 = vpop.f32.mrf.mxu0
    %v3736 = vadd.f32 %v3155, %v3735
    %v3737 = vpop.f32.mrf.mxu0
    %v3738 = vpop.f32.mrf.mxu0
    %v3739 = vadd.f32 %v3155, %v3738
    %v3740 = vpop.f32.mrf.mxu0
    %3741 = vmatprep.mubr.bf16.mxu0 0
    %3742 = vmatmul.mubr.bf16.gmra.mxu0 %v3123
    %v3743 = vpop.f32.mrf.mxu0
    %v3744 = vadd.f32 %v3155, %v3743
    %v3745 = vpop.f32.mrf.mxu0
    %v3746 = vpop.f32.mrf.mxu0
    %v3747 = vadd.f32 %v3155, %v3746
    %v3748 = vpop.f32.mrf.mxu0
    %3749 = vmatprep.mubr.bf16.mxu0 0
    %3750 = vmatmul.mubr.bf16.gmra.mxu0 %v3124
    %v3751 = vpop.f32.mrf.mxu0
    %v3752 = vadd.f32 %v3155, %v3751
    %v3753 = vpop.f32.mrf.mxu0
    %v3754 = vpop.f32.mrf.mxu0
    %v3755 = vadd.f32 %v3155, %v3754
    %v3756 = vpop.f32.mrf.mxu0
    %3757 = vmatprep.mubr.bf16.mxu0 0
    %3758 = vmatmul.mubr.bf16.gmra.mxu0 %v3125
    %v3759 = vpop.f32.mrf.mxu0
    %v3760 = vadd.f32 %v3155, %v3759
    %v3761 = vpop.f32.mrf.mxu0
    %v3762 = vpop.f32.mrf.mxu0
    %v3763 = vadd.f32 %v3155, %v3762
    %v3764 = vpop.f32.mrf.mxu0
    %3765 = vmatprep.mubr.bf16.mxu0 0
    %3766 = vmatmul.mubr.bf16.gmra.mxu0 %v3126
    %v3767 = vpop.f32.mrf.mxu0
    %v3768 = vadd.f32 %v3155, %v3767
    %v3769 = vpop.f32.mrf.mxu0
    %v3770 = vpop.f32.mrf.mxu0
    %v3771 = vadd.f32 %v3155, %v3770
    %v3772 = vpop.f32.mrf.mxu0
    %3773 = vmatprep.mubr.bf16.mxu0 0
    %3774 = vmatmul.mubr.bf16.gmra.mxu0 %v3127
    %v3775 = vpop.f32.mrf.mxu0
    %v3776 = vadd.f32 %v3155, %v3775
    %v3777 = vpop.f32.mrf.mxu0
    %v3778 = vpop.f32.mrf.mxu0
    %v3779 = vadd.f32 %v3155, %v3778
    %v3780 = vpop.f32.mrf.mxu0
    %3781 = vmatprep.mubr.bf16.mxu0 0
    %3782 = vmatmul.mubr.bf16.gmra.mxu0 %v3128
    %v3783 = vpop.f32.mrf.mxu0
    %v3784 = vadd.f32 %v3155, %v3783
    %v3785 = vpop.f32.mrf.mxu0
    %v3786 = vpop.f32.mrf.mxu0
    %v3787 = vadd.f32 %v3155, %v3786
    %v3788 = vpop.f32.mrf.mxu0
    %3789 = vmatprep.mubr.bf16.mxu0 0
    %3790 = vmatmul.mubr.bf16.gmra.mxu0 %v3129
    %v3791 = vpop.f32.mrf.mxu0
    %v3792 = vadd.f32 %v3155, %v3791
    %v3793 = vpop.f32.mrf.mxu0
    %v3794 = vpop.f32.mrf.mxu0
    %v3795 = vadd.f32 %v3155, %v3794
    %v3796 = vpop.f32.mrf.mxu0
    %3797 = vmatprep.mubr.bf16.mxu0 0
    %3798 = vmatmul.mubr.bf16.gmra.mxu0 %v3130
    %v3799 = vpop.f32.mrf.mxu0
    %v3800 = vadd.f32 %v3155, %v3799
    %v3801 = vpop.f32.mrf.mxu0
    %v3802 = vpop.f32.mrf.mxu0
    %v3803 = vadd.f32 %v3155, %v3802
    %v3804 = vpop.f32.mrf.mxu0
    %3805 = vmatprep.mubr.bf16.mxu0 0
    %3806 = vmatmul.mubr.bf16.gmra.mxu0 %v3131
    %v3807 = vpop.f32.mrf.mxu0
    %v3808 = vadd.f32 %v3155, %v3807
    %v3809 = vpop.f32.mrf.mxu0
    %v3810 = vpop.f32.mrf.mxu0
    %v3811 = vadd.f32 %v3155, %v3810
    %v3812 = vpop.f32.mrf.mxu0
    %3813 = vdwg.mxu0
    %v3814 = vmax.f32 %v3240, 0.0
    %v3815 = vmax.f32 %v3243, 0.0
    %v3816 = vmax.f32 %v3248, 0.0
    %v3817 = vmax.f32 %v3251, 0.0
    %v3818 = vmax.f32 %v3256, 0.0
    %v3819 = vmax.f32 %v3259, 0.0
    %v3820 = vmax.f32 %v3264, 0.0
    %v3821 = vmax.f32 %v3267, 0.0
    %v3822 = vmax.f32 %v3272, 0.0
    %v3823 = vmax.f32 %v3275, 0.0
    %v3824 = vmax.f32 %v3280, 0.0
    %v3825 = vmax.f32 %v3283, 0.0
    %v3826 = vmax.f32 %v3288, 0.0
    %v3827 = vmax.f32 %v3291, 0.0
    %v3828 = vmax.f32 %v3296, 0.0
    %v3829 = vmax.f32 %v3299, 0.0
    %v3830 = vmax.f32 %v3304, 0.0
    %v3831 = vmax.f32 %v3307, 0.0
    %v3832 = vmax.f32 %v3312, 0.0
    %v3833 = vmax.f32 %v3315, 0.0
    %v3834 = vmax.f32 %v3320, 0.0
    %v3835 = vmax.f32 %v3323, 0.0
    %v3836 = vmax.f32 %v3328, 0.0
    %v3837 = vmax.f32 %v3331, 0.0
    %v3838 = vmax.f32 %v3336, 0.0
    %v3839 = vmax.f32 %v3339, 0.0
    %v3840 = vmax.f32 %v3344, 0.0
    %v3841 = vmax.f32 %v3347, 0.0
    %v3842 = vmax.f32 %v3352, 0.0
    %v3843 = vmax.f32 %v3355, 0.0
    %v3844 = vmax.f32 %v3360, 0.0
    %v3845 = vmax.f32 %v3363, 0.0
    %v3846 = vmax.f32 %v3368, 0.0
    %v3847 = vmax.f32 %v3371, 0.0
    %v3848 = vmax.f32 %v3376, 0.0
    %v3849 = vmax.f32 %v3379, 0.0
    %v3850 = vmax.f32 %v3384, 0.0
    %v3851 = vmax.f32 %v3387, 0.0
    %v3852 = vmax.f32 %v3392, 0.0
    %v3853 = vmax.f32 %v3395, 0.0
    %v3854 = vmax.f32 %v3400, 0.0
    %v3855 = vmax.f32 %v3403, 0.0
    %v3856 = vmax.f32 %v3408, 0.0
    %v3857 = vmax.f32 %v3411, 0.0
    %v3858 = vmax.f32 %v3416, 0.0
    %v3859 = vmax.f32 %v3419, 0.0
    %v3860 = vmax.f32 %v3424, 0.0
    %v3861 = vmax.f32 %v3427, 0.0
    %v3862 = vmax.f32 %v3432, 0.0
    %v3863 = vmax.f32 %v3435, 0.0
    %v3864 = vmax.f32 %v3440, 0.0
    %v3865 = vmax.f32 %v3443, 0.0
    %v3866 = vmax.f32 %v3448, 0.0
    %v3867 = vmax.f32 %v3451, 0.0
    %v3868 = vmax.f32 %v3456, 0.0
    %v3869 = vmax.f32 %v3459, 0.0
    %v3870 = vmax.f32 %v3464, 0.0
    %v3871 = vmax.f32 %v3467, 0.0
    %v3872 = vmax.f32 %v3472, 0.0
    %v3873 = vmax.f32 %v3475, 0.0
    %v3874 = vmax.f32 %v3480, 0.0
    %v3875 = vmax.f32 %v3483, 0.0
    %v3876 = vmax.f32 %v3488, 0.0
    %v3877 = vmax.f32 %v3491, 0.0
    %v3878 = vmax.f32 %v3496, 0.0
    %v3879 = vmax.f32 %v3499, 0.0
    %v3880 = vmax.f32 %v3504, 0.0
    %v3881 = vmax.f32 %v3507, 0.0
    %v3882 = vmax.f32 %v3512, 0.0
    %v3883 = vmax.f32 %v3515, 0.0
    %v3884 = vmax.f32 %v3520, 0.0
    %v3885 = vmax.f32 %v3523, 0.0
    %v3886 = vmax.f32 %v3528, 0.0
    %v3887 = vmax.f32 %v3531, 0.0
    %v3888 = vmax.f32 %v3536, 0.0
    %v3889 = vmax.f32 %v3539, 0.0
    %v3890 = vmax.f32 %v3544, 0.0
    %v3891 = vmax.f32 %v3547, 0.0
    %v3892 = vmax.f32 %v3552, 0.0
    %v3893 = vmax.f32 %v3555, 0.0
    %v3894 = vmax.f32 %v3560, 0.0
    %v3895 = vmax.f32 %v3563, 0.0
    %v3896 = vmax.f32 %v3568, 0.0
    %v3897 = vmax.f32 %v3571, 0.0
    %v3898 = vmax.f32 %v3576, 0.0
    %v3899 = vmax.f32 %v3579, 0.0
    %v3900 = vmax.f32 %v3584, 0.0
    %v3901 = vmax.f32 %v3587, 0.0
    %v3902 = vmax.f32 %v3592, 0.0
    %v3903 = vmax.f32 %v3595, 0.0
    %v3904 = vmax.f32 %v3600, 0.0
    %v3905 = vmax.f32 %v3603, 0.0
    %v3906 = vmax.f32 %v3608, 0.0
    %v3907 = vmax.f32 %v3611, 0.0
    %v3908 = vmax.f32 %v3616, 0.0
    %v3909 = vmax.f32 %v3619, 0.0
    %v3910 = vmax.f32 %v3624, 0.0
    %v3911 = vmax.f32 %v3627, 0.0
    %v3912 = vmax.f32 %v3632, 0.0
    %v3913 = vmax.f32 %v3635, 0.0
    %v3914 = vmax.f32 %v3640, 0.0
    %v3915 = vmax.f32 %v3643, 0.0
    %v3916 = vmax.f32 %v3648, 0.0
    %v3917 = vmax.f32 %v3651, 0.0
    %v3918 = vmax.f32 %v3656, 0.0
    %v3919 = vmax.f32 %v3659, 0.0
    %v3920 = vmax.f32 %v3664, 0.0
    %v3921 = vmax.f32 %v3667, 0.0
    %v3922 = vmax.f32 %v3672, 0.0
    %v3923 = vmax.f32 %v3675, 0.0
    %v3924 = vmax.f32 %v3680, 0.0
    %v3925 = vmax.f32 %v3683, 0.0
    %v3926 = vmax.f32 %v3688, 0.0
    %v3927 = vmax.f32 %v3691, 0.0
    %v3928 = vmax.f32 %v3696, 0.0
    %v3929 = vmax.f32 %v3699, 0.0
    %v3930 = vmax.f32 %v3704, 0.0
    %v3931 = vmax.f32 %v3707, 0.0
    %v3932 = vmax.f32 %v3712, 0.0
    %v3933 = vmax.f32 %v3715, 0.0
    %v3934 = vmax.f32 %v3720, 0.0
    %v3935 = vmax.f32 %v3723, 0.0
    %v3936 = vmax.f32 %v3728, 0.0
    %v3937 = vmax.f32 %v3731, 0.0
    %v3938 = vmax.f32 %v3736, 0.0
    %v3939 = vmax.f32 %v3739, 0.0
    %v3940 = vmax.f32 %v3744, 0.0
    %v3941 = vmax.f32 %v3747, 0.0
    %v3942 = vmax.f32 %v3752, 0.0
    %v3943 = vmax.f32 %v3755, 0.0
    %v3944 = vmax.f32 %v3760, 0.0
    %v3945 = vmax.f32 %v3763, 0.0
    %v3946 = vmax.f32 %v3768, 0.0
    %v3947 = vmax.f32 %v3771, 0.0
    %v3948 = vmax.f32 %v3776, 0.0
    %v3949 = vmax.f32 %v3779, 0.0
    %v3950 = vmax.f32 %v3784, 0.0
    %v3951 = vmax.f32 %v3787, 0.0
    %v3952 = vmax.f32 %v3792, 0.0
    %v3953 = vmax.f32 %v3795, 0.0
    %v3954 = vmax.f32 %v3800, 0.0
    %v3955 = vmax.f32 %v3803, 0.0
    %v3956 = vmax.f32 %v3808, 0.0
    %v3957 = vmax.f32 %v3811, 0.0
    %v3958 = vpack.c.bf16 %v3815, %v3814
    %v3959 = vpack.c.bf16 %v3817, %v3816
    %v3960 = vpack.c.bf16 %v3819, %v3818
    %v3961 = vpack.c.bf16 %v3821, %v3820
    %v3962 = vpack.c.bf16 %v3823, %v3822
    %v3963 = vpack.c.bf16 %v3825, %v3824
    %v3964 = vpack.c.bf16 %v3827, %v3826
    %v3965 = vpack.c.bf16 %v3829, %v3828
    %v3966 = vpack.c.bf16 %v3831, %v3830
    %v3967 = vpack.c.bf16 %v3833, %v3832
    %v3968 = vpack.c.bf16 %v3835, %v3834
    %v3969 = vpack.c.bf16 %v3837, %v3836
    %v3970 = vpack.c.bf16 %v3839, %v3838
    %v3971 = vpack.c.bf16 %v3841, %v3840
    %v3972 = vpack.c.bf16 %v3843, %v3842
    %v3973 = vpack.c.bf16 %v3845, %v3844
    %v3974 = vpack.c.bf16 %v3847, %v3846
    %v3975 = vpack.c.bf16 %v3849, %v3848
    %v3976 = vpack.c.bf16 %v3851, %v3850
    %v3977 = vpack.c.bf16 %v3853, %v3852
    %v3978 = vpack.c.bf16 %v3855, %v3854
    %v3979 = vpack.c.bf16 %v3857, %v3856
    %v3980 = vpack.c.bf16 %v3859, %v3858
    %v3981 = vpack.c.bf16 %v3861, %v3860
    %v3982 = vpack.c.bf16 %v3863, %v3862
    %v3983 = vpack.c.bf16 %v3865, %v3864
    %v3984 = vpack.c.bf16 %v3867, %v3866
    %v3985 = vpack.c.bf16 %v3869, %v3868
    %v3986 = vpack.c.bf16 %v3871, %v3870
    %v3987 = vpack.c.bf16 %v3873, %v3872
    %v3988 = vpack.c.bf16 %v3875, %v3874
    %v3989 = vpack.c.bf16 %v3877, %v3876
    %v3990 = vpack.c.bf16 %v3879, %v3878
    %v3991 = vpack.c.bf16 %v3881, %v3880
    %v3992 = vpack.c.bf16 %v3883, %v3882
    %v3993 = vpack.c.bf16 %v3885, %v3884
    %v3994 = vpack.c.bf16 %v3887, %v3886
    %v3995 = vpack.c.bf16 %v3889, %v3888
    %v3996 = vpack.c.bf16 %v3891, %v3890
    %v3997 = vpack.c.bf16 %v3893, %v3892
    %v3998 = vpack.c.bf16 %v3895, %v3894
    %v3999 = vpack.c.bf16 %v3897, %v3896
    %v4000 = vpack.c.bf16 %v3899, %v3898
    %v4001 = vpack.c.bf16 %v3901, %v3900
    %v4002 = vpack.c.bf16 %v3903, %v3902
    %v4003 = vpack.c.bf16 %v3905, %v3904
    %v4004 = vpack.c.bf16 %v3907, %v3906
    %v4005 = vpack.c.bf16 %v3909, %v3908
    %v4006 = vpack.c.bf16 %v3911, %v3910
    %v4007 = vpack.c.bf16 %v3913, %v3912
    %v4008 = vpack.c.bf16 %v3915, %v3914
    %v4009 = vpack.c.bf16 %v3917, %v3916
    %v4010 = vpack.c.bf16 %v3919, %v3918
    %v4011 = vpack.c.bf16 %v3921, %v3920
    %v4012 = vpack.c.bf16 %v3923, %v3922
    %v4013 = vpack.c.bf16 %v3925, %v3924
    %v4014 = vpack.c.bf16 %v3927, %v3926
    %v4015 = vpack.c.bf16 %v3929, %v3928
    %v4016 = vpack.c.bf16 %v3931, %v3930
    %v4017 = vpack.c.bf16 %v3933, %v3932
    %v4018 = vpack.c.bf16 %v3935, %v3934
    %v4019 = vpack.c.bf16 %v3937, %v3936
    %v4020 = vpack.c.bf16 %v3939, %v3938
    %v4021 = vpack.c.bf16 %v3941, %v3940
    %v4022 = vpack.c.bf16 %v3943, %v3942
    %v4023 = vpack.c.bf16 %v3945, %v3944
    %v4024 = vpack.c.bf16 %v3947, %v3946
    %v4025 = vpack.c.bf16 %v3949, %v3948
    %v4026 = vpack.c.bf16 %v3951, %v3950
    %v4027 = vpack.c.bf16 %v3953, %v3952
    %v4028 = vpack.c.bf16 %v3955, %v3954
    %v4029 = vpack.c.bf16 %v3957, %v3956
    %s4030 = scalar_lea.vmem [#allocation4], 704
    %v4031 = vld [vmem:[%s4030] sm:$0xf]
    %v4032 = vld [vmem:[%s4030 + $0x4] sm:$0xf]
    %v4033 = vld [vmem:[%s4030 + $0x8] sm:$0xf]
    %v4034 = vld [vmem:[%s4030 + $0xc] sm:$0xf]
    %v4035 = vld [vmem:[%s4030 + $0x10] sm:$0xf]
    %v4036 = vld [vmem:[%s4030 + $0x14] sm:$0xf]
    %v4037 = vld [vmem:[%s4030 + $0x18] sm:$0xf]
    %v4038 = vld [vmem:[%s4030 + $0x1c] sm:$0xf]
    %v4039 = vld [vmem:[%s4030 + $0x20] sm:$0xf]
    %v4040 = vld [vmem:[%s4030 + $0x24] sm:$0xf]
    %v4041 = vld [vmem:[%s4030 + $0x28] sm:$0xf]
    %v4042 = vld [vmem:[%s4030 + $0x2c] sm:$0xf]
    %v4043 = vld [vmem:[%s4030 + $0x30] sm:$0xf]
    %v4044 = vld [vmem:[%s4030 + $0x34] sm:$0xf]
    %v4045 = vld [vmem:[%s4030 + $0x38] sm:$0xf]
    %v4046 = vld [vmem:[%s4030 + $0x3c] sm:$0xf]
    %s4047 = scalar_lea.vmem [#allocation6], 11
    %v4048 = vld [vmem:[%s4047] sm:$0x1]
    %v4050 = vlaneseq
    %v4051 = vshrl.u32 %v4050, 7
    %v4052 = vsub.s32 0, %v4051
    %v4053 = vrot.slane %v4048, %v4052
    %v4071 = vunpack.c.l.b16 %v4031
    %v4072 = vunpack.c.l.b16 %v4032
    %v4073 = vunpack.c.l.b16 %v4033
    %v4074 = vunpack.c.l.b16 %v4034
    %v4075 = vunpack.c.l.b16 %v4035
    %v4076 = vunpack.c.l.b16 %v4036
    %v4077 = vunpack.c.l.b16 %v4037
    %v4078 = vunpack.c.l.b16 %v4038
    %v4079 = vunpack.c.l.b16 %v4039
    %v4080 = vunpack.c.l.b16 %v4040
    %v4081 = vunpack.c.l.b16 %v4041
    %v4082 = vunpack.c.l.b16 %v4042
    %v4083 = vunpack.c.l.b16 %v4043
    %v4084 = vunpack.c.l.b16 %v4044
    %v4085 = vunpack.c.l.b16 %v4045
    %v4086 = vunpack.c.l.b16 %v4046
    %v4087 = vpack.c.b16 %v4072, %v4071
    %v4088 = vpack.c.b16 %v4074, %v4073
    %v4089 = vpack.c.b16 %v4076, %v4075
    %v4090 = vpack.c.b16 %v4078, %v4077
    %v4091 = vpack.c.b16 %v4080, %v4079
    %v4092 = vpack.c.b16 %v4082, %v4081
    %v4093 = vpack.c.b16 %v4084, %v4083
    %v4094 = vpack.c.b16 %v4086, %v4085
    %4103 = vmatprep.subr.bf16.mxu0 0
    %4104 = vmatpush1.bf16.msra.mxu0 %v4094
    %4105 = vmatprep.subr.bf16.mxu0 0
    %4106 = vmatpush1.bf16.msra.mxu0 %v4093
    %4107 = vmatprep.subr.bf16.mxu0 0
    %4108 = vmatpush1.bf16.msra.mxu0 %v4092
    %4109 = vmatprep.subr.bf16.mxu0 0
    %4110 = vmatpush1.bf16.msra.mxu0 %v4091
    %4111 = vmatprep.subr.bf16.mxu0 0
    %4112 = vmatpush1.bf16.msra.mxu0 %v4090
    %4113 = vmatprep.subr.bf16.mxu0 0
    %4114 = vmatpush1.bf16.msra.mxu0 %v4089
    %4115 = vmatprep.subr.bf16.mxu0 0
    %4116 = vmatpush1.bf16.msra.mxu0 %v4088
    %4117 = vmatprep.subr.bf16.mxu0 0
    %4118 = vmatpush1.bf16.msra.mxu0 %v4087
    %4119 = vmatprep.subr.bf16.mxu0 0
    %4120 = vmatpush2.bf16.msra.mxu0 0
    %4121 = vmatprep.subr.bf16.mxu0 0
    %4122 = vmatpush2.bf16.msra.mxu0 0
    %4123 = vmatprep.subr.bf16.mxu0 0
    %4124 = vmatpush2.bf16.msra.mxu0 0
    %4125 = vmatprep.subr.bf16.mxu0 0
    %4126 = vmatpush2.bf16.msra.mxu0 0
    %4127 = vmatprep.subr.bf16.mxu0 0
    %4128 = vmatpush2.bf16.msra.mxu0 0
    %4129 = vmatprep.subr.bf16.mxu0 0
    %4130 = vmatpush2.bf16.msra.mxu0 0
    %4131 = vmatprep.subr.bf16.mxu0 0
    %4132 = vmatpush2.bf16.msra.mxu0 0
    %4133 = vmatprep.subr.bf16.mxu0 0
    %4134 = vmatpush2.bf16.msra.mxu0 0
    %4135 = vmatprep.mubr.bf16.mxu0 0
    %4136 = vmatmul.mubr.bf16.gmra.mxu0 %v3958
    %v4137 = vpop.f32.mrf.mxu0
    %v4138 = vadd.f32 %v4053, %v4137
    %v4139 = vpop.f32.mrf.mxu0
    %v4140 = vpop.f32.mrf.mxu0
    %v4141 = vadd.f32 %v4053, %v4140
    %v4142 = vpop.f32.mrf.mxu0
    %4143 = vmatprep.mubr.bf16.mxu0 0
    %4144 = vmatmul.mubr.bf16.gmra.mxu0 %v3959
    %v4145 = vpop.f32.mrf.mxu0
    %v4146 = vadd.f32 %v4053, %v4145
    %v4147 = vpop.f32.mrf.mxu0
    %v4148 = vpop.f32.mrf.mxu0
    %v4149 = vadd.f32 %v4053, %v4148
    %v4150 = vpop.f32.mrf.mxu0
    %4151 = vmatprep.mubr.bf16.mxu0 0
    %4152 = vmatmul.mubr.bf16.gmra.mxu0 %v3960
    %v4153 = vpop.f32.mrf.mxu0
    %v4154 = vadd.f32 %v4053, %v4153
    %v4155 = vpop.f32.mrf.mxu0
    %v4156 = vpop.f32.mrf.mxu0
    %v4157 = vadd.f32 %v4053, %v4156
    %v4158 = vpop.f32.mrf.mxu0
    %4159 = vmatprep.mubr.bf16.mxu0 0
    %4160 = vmatmul.mubr.bf16.gmra.mxu0 %v3961
    %v4161 = vpop.f32.mrf.mxu0
    %v4162 = vadd.f32 %v4053, %v4161
    %v4163 = vpop.f32.mrf.mxu0
    %v4164 = vpop.f32.mrf.mxu0
    %v4165 = vadd.f32 %v4053, %v4164
    %v4166 = vpop.f32.mrf.mxu0
    %4167 = vmatprep.mubr.bf16.mxu0 0
    %4168 = vmatmul.mubr.bf16.gmra.mxu0 %v3962
    %v4169 = vpop.f32.mrf.mxu0
    %v4170 = vadd.f32 %v4053, %v4169
    %v4171 = vpop.f32.mrf.mxu0
    %v4172 = vpop.f32.mrf.mxu0
    %v4173 = vadd.f32 %v4053, %v4172
    %v4174 = vpop.f32.mrf.mxu0
    %4175 = vmatprep.mubr.bf16.mxu0 0
    %4176 = vmatmul.mubr.bf16.gmra.mxu0 %v3963
    %v4177 = vpop.f32.mrf.mxu0
    %v4178 = vadd.f32 %v4053, %v4177
    %v4179 = vpop.f32.mrf.mxu0
    %v4180 = vpop.f32.mrf.mxu0
    %v4181 = vadd.f32 %v4053, %v4180
    %v4182 = vpop.f32.mrf.mxu0
    %4183 = vmatprep.mubr.bf16.mxu0 0
    %4184 = vmatmul.mubr.bf16.gmra.mxu0 %v3964
    %v4185 = vpop.f32.mrf.mxu0
    %v4186 = vadd.f32 %v4053, %v4185
    %v4187 = vpop.f32.mrf.mxu0
    %v4188 = vpop.f32.mrf.mxu0
    %v4189 = vadd.f32 %v4053, %v4188
    %v4190 = vpop.f32.mrf.mxu0
    %4191 = vmatprep.mubr.bf16.mxu0 0
    %4192 = vmatmul.mubr.bf16.gmra.mxu0 %v3965
    %v4193 = vpop.f32.mrf.mxu0
    %v4194 = vadd.f32 %v4053, %v4193
    %v4195 = vpop.f32.mrf.mxu0
    %v4196 = vpop.f32.mrf.mxu0
    %v4197 = vadd.f32 %v4053, %v4196
    %v4198 = vpop.f32.mrf.mxu0
    %4199 = vmatprep.mubr.bf16.mxu0 0
    %4200 = vmatmul.mubr.bf16.gmra.mxu0 %v3966
    %v4201 = vpop.f32.mrf.mxu0
    %v4202 = vadd.f32 %v4053, %v4201
    %v4203 = vpop.f32.mrf.mxu0
    %v4204 = vpop.f32.mrf.mxu0
    %v4205 = vadd.f32 %v4053, %v4204
    %v4206 = vpop.f32.mrf.mxu0
    %4207 = vmatprep.mubr.bf16.mxu0 0
    %4208 = vmatmul.mubr.bf16.gmra.mxu0 %v3967
    %v4209 = vpop.f32.mrf.mxu0
    %v4210 = vadd.f32 %v4053, %v4209
    %v4211 = vpop.f32.mrf.mxu0
    %v4212 = vpop.f32.mrf.mxu0
    %v4213 = vadd.f32 %v4053, %v4212
    %v4214 = vpop.f32.mrf.mxu0
    %4215 = vmatprep.mubr.bf16.mxu0 0
    %4216 = vmatmul.mubr.bf16.gmra.mxu0 %v3968
    %v4217 = vpop.f32.mrf.mxu0
    %v4218 = vadd.f32 %v4053, %v4217
    %v4219 = vpop.f32.mrf.mxu0
    %v4220 = vpop.f32.mrf.mxu0
    %v4221 = vadd.f32 %v4053, %v4220
    %v4222 = vpop.f32.mrf.mxu0
    %4223 = vmatprep.mubr.bf16.mxu0 0
    %4224 = vmatmul.mubr.bf16.gmra.mxu0 %v3969
    %v4225 = vpop.f32.mrf.mxu0
    %v4226 = vadd.f32 %v4053, %v4225
    %v4227 = vpop.f32.mrf.mxu0
    %v4228 = vpop.f32.mrf.mxu0
    %v4229 = vadd.f32 %v4053, %v4228
    %v4230 = vpop.f32.mrf.mxu0
    %4231 = vmatprep.mubr.bf16.mxu0 0
    %4232 = vmatmul.mubr.bf16.gmra.mxu0 %v3970
    %v4233 = vpop.f32.mrf.mxu0
    %v4234 = vadd.f32 %v4053, %v4233
    %v4235 = vpop.f32.mrf.mxu0
    %v4236 = vpop.f32.mrf.mxu0
    %v4237 = vadd.f32 %v4053, %v4236
    %v4238 = vpop.f32.mrf.mxu0
    %4239 = vmatprep.mubr.bf16.mxu0 0
    %4240 = vmatmul.mubr.bf16.gmra.mxu0 %v3971
    %v4241 = vpop.f32.mrf.mxu0
    %v4242 = vadd.f32 %v4053, %v4241
    %v4243 = vpop.f32.mrf.mxu0
    %v4244 = vpop.f32.mrf.mxu0
    %v4245 = vadd.f32 %v4053, %v4244
    %v4246 = vpop.f32.mrf.mxu0
    %4247 = vmatprep.mubr.bf16.mxu0 0
    %4248 = vmatmul.mubr.bf16.gmra.mxu0 %v3972
    %v4249 = vpop.f32.mrf.mxu0
    %v4250 = vadd.f32 %v4053, %v4249
    %v4251 = vpop.f32.mrf.mxu0
    %v4252 = vpop.f32.mrf.mxu0
    %v4253 = vadd.f32 %v4053, %v4252
    %v4254 = vpop.f32.mrf.mxu0
    %4255 = vmatprep.mubr.bf16.mxu0 0
    %4256 = vmatmul.mubr.bf16.gmra.mxu0 %v3973
    %v4257 = vpop.f32.mrf.mxu0
    %v4258 = vadd.f32 %v4053, %v4257
    %v4259 = vpop.f32.mrf.mxu0
    %v4260 = vpop.f32.mrf.mxu0
    %v4261 = vadd.f32 %v4053, %v4260
    %v4262 = vpop.f32.mrf.mxu0
    %4263 = vmatprep.mubr.bf16.mxu0 0
    %4264 = vmatmul.mubr.bf16.gmra.mxu0 %v3974
    %v4265 = vpop.f32.mrf.mxu0
    %v4266 = vadd.f32 %v4053, %v4265
    %v4267 = vpop.f32.mrf.mxu0
    %v4268 = vpop.f32.mrf.mxu0
    %v4269 = vadd.f32 %v4053, %v4268
    %v4270 = vpop.f32.mrf.mxu0
    %4271 = vmatprep.mubr.bf16.mxu0 0
    %4272 = vmatmul.mubr.bf16.gmra.mxu0 %v3975
    %v4273 = vpop.f32.mrf.mxu0
    %v4274 = vadd.f32 %v4053, %v4273
    %v4275 = vpop.f32.mrf.mxu0
    %v4276 = vpop.f32.mrf.mxu0
    %v4277 = vadd.f32 %v4053, %v4276
    %v4278 = vpop.f32.mrf.mxu0
    %4279 = vmatprep.mubr.bf16.mxu0 0
    %4280 = vmatmul.mubr.bf16.gmra.mxu0 %v3976
    %v4281 = vpop.f32.mrf.mxu0
    %v4282 = vadd.f32 %v4053, %v4281
    %v4283 = vpop.f32.mrf.mxu0
    %v4284 = vpop.f32.mrf.mxu0
    %v4285 = vadd.f32 %v4053, %v4284
    %v4286 = vpop.f32.mrf.mxu0
    %4287 = vmatprep.mubr.bf16.mxu0 0
    %4288 = vmatmul.mubr.bf16.gmra.mxu0 %v3977
    %v4289 = vpop.f32.mrf.mxu0
    %v4290 = vadd.f32 %v4053, %v4289
    %v4291 = vpop.f32.mrf.mxu0
    %v4292 = vpop.f32.mrf.mxu0
    %v4293 = vadd.f32 %v4053, %v4292
    %v4294 = vpop.f32.mrf.mxu0
    %4295 = vmatprep.mubr.bf16.mxu0 0
    %4296 = vmatmul.mubr.bf16.gmra.mxu0 %v3978
    %v4297 = vpop.f32.mrf.mxu0
    %v4298 = vadd.f32 %v4053, %v4297
    %v4299 = vpop.f32.mrf.mxu0
    %v4300 = vpop.f32.mrf.mxu0
    %v4301 = vadd.f32 %v4053, %v4300
    %v4302 = vpop.f32.mrf.mxu0
    %4303 = vmatprep.mubr.bf16.mxu0 0
    %4304 = vmatmul.mubr.bf16.gmra.mxu0 %v3979
    %v4305 = vpop.f32.mrf.mxu0
    %v4306 = vadd.f32 %v4053, %v4305
    %v4307 = vpop.f32.mrf.mxu0
    %v4308 = vpop.f32.mrf.mxu0
    %v4309 = vadd.f32 %v4053, %v4308
    %v4310 = vpop.f32.mrf.mxu0
    %4311 = vmatprep.mubr.bf16.mxu0 0
    %4312 = vmatmul.mubr.bf16.gmra.mxu0 %v3980
    %v4313 = vpop.f32.mrf.mxu0
    %v4314 = vadd.f32 %v4053, %v4313
    %v4315 = vpop.f32.mrf.mxu0
    %v4316 = vpop.f32.mrf.mxu0
    %v4317 = vadd.f32 %v4053, %v4316
    %v4318 = vpop.f32.mrf.mxu0
    %4319 = vmatprep.mubr.bf16.mxu0 0
    %4320 = vmatmul.mubr.bf16.gmra.mxu0 %v3981
    %v4321 = vpop.f32.mrf.mxu0
    %v4322 = vadd.f32 %v4053, %v4321
    %v4323 = vpop.f32.mrf.mxu0
    %v4324 = vpop.f32.mrf.mxu0
    %v4325 = vadd.f32 %v4053, %v4324
    %v4326 = vpop.f32.mrf.mxu0
    %4327 = vmatprep.mubr.bf16.mxu0 0
    %4328 = vmatmul.mubr.bf16.gmra.mxu0 %v3982
    %v4329 = vpop.f32.mrf.mxu0
    %v4330 = vadd.f32 %v4053, %v4329
    %v4331 = vpop.f32.mrf.mxu0
    %v4332 = vpop.f32.mrf.mxu0
    %v4333 = vadd.f32 %v4053, %v4332
    %v4334 = vpop.f32.mrf.mxu0
    %4335 = vmatprep.mubr.bf16.mxu0 0
    %4336 = vmatmul.mubr.bf16.gmra.mxu0 %v3983
    %v4337 = vpop.f32.mrf.mxu0
    %v4338 = vadd.f32 %v4053, %v4337
    %v4339 = vpop.f32.mrf.mxu0
    %v4340 = vpop.f32.mrf.mxu0
    %v4341 = vadd.f32 %v4053, %v4340
    %v4342 = vpop.f32.mrf.mxu0
    %4343 = vmatprep.mubr.bf16.mxu0 0
    %4344 = vmatmul.mubr.bf16.gmra.mxu0 %v3984
    %v4345 = vpop.f32.mrf.mxu0
    %v4346 = vadd.f32 %v4053, %v4345
    %v4347 = vpop.f32.mrf.mxu0
    %v4348 = vpop.f32.mrf.mxu0
    %v4349 = vadd.f32 %v4053, %v4348
    %v4350 = vpop.f32.mrf.mxu0
    %4351 = vmatprep.mubr.bf16.mxu0 0
    %4352 = vmatmul.mubr.bf16.gmra.mxu0 %v3985
    %v4353 = vpop.f32.mrf.mxu0
    %v4354 = vadd.f32 %v4053, %v4353
    %v4355 = vpop.f32.mrf.mxu0
    %v4356 = vpop.f32.mrf.mxu0
    %v4357 = vadd.f32 %v4053, %v4356
    %v4358 = vpop.f32.mrf.mxu0
    %4359 = vmatprep.mubr.bf16.mxu0 0
    %4360 = vmatmul.mubr.bf16.gmra.mxu0 %v3986
    %v4361 = vpop.f32.mrf.mxu0
    %v4362 = vadd.f32 %v4053, %v4361
    %v4363 = vpop.f32.mrf.mxu0
    %v4364 = vpop.f32.mrf.mxu0
    %v4365 = vadd.f32 %v4053, %v4364
    %v4366 = vpop.f32.mrf.mxu0
    %4367 = vmatprep.mubr.bf16.mxu0 0
    %4368 = vmatmul.mubr.bf16.gmra.mxu0 %v3987
    %v4369 = vpop.f32.mrf.mxu0
    %v4370 = vadd.f32 %v4053, %v4369
    %v4371 = vpop.f32.mrf.mxu0
    %v4372 = vpop.f32.mrf.mxu0
    %v4373 = vadd.f32 %v4053, %v4372
    %v4374 = vpop.f32.mrf.mxu0
    %4375 = vmatprep.mubr.bf16.mxu0 0
    %4376 = vmatmul.mubr.bf16.gmra.mxu0 %v3988
    %v4377 = vpop.f32.mrf.mxu0
    %v4378 = vadd.f32 %v4053, %v4377
    %v4379 = vpop.f32.mrf.mxu0
    %v4380 = vpop.f32.mrf.mxu0
    %v4381 = vadd.f32 %v4053, %v4380
    %v4382 = vpop.f32.mrf.mxu0
    %4383 = vmatprep.mubr.bf16.mxu0 0
    %4384 = vmatmul.mubr.bf16.gmra.mxu0 %v3989
    %v4385 = vpop.f32.mrf.mxu0
    %v4386 = vadd.f32 %v4053, %v4385
    %v4387 = vpop.f32.mrf.mxu0
    %v4388 = vpop.f32.mrf.mxu0
    %v4389 = vadd.f32 %v4053, %v4388
    %v4390 = vpop.f32.mrf.mxu0
    %4391 = vmatprep.mubr.bf16.mxu0 0
    %4392 = vmatmul.mubr.bf16.gmra.mxu0 %v3990
    %v4393 = vpop.f32.mrf.mxu0
    %v4394 = vadd.f32 %v4053, %v4393
    %v4395 = vpop.f32.mrf.mxu0
    %v4396 = vpop.f32.mrf.mxu0
    %v4397 = vadd.f32 %v4053, %v4396
    %v4398 = vpop.f32.mrf.mxu0
    %4399 = vmatprep.mubr.bf16.mxu0 0
    %4400 = vmatmul.mubr.bf16.gmra.mxu0 %v3991
    %v4401 = vpop.f32.mrf.mxu0
    %v4402 = vadd.f32 %v4053, %v4401
    %v4403 = vpop.f32.mrf.mxu0
    %v4404 = vpop.f32.mrf.mxu0
    %v4405 = vadd.f32 %v4053, %v4404
    %v4406 = vpop.f32.mrf.mxu0
    %4407 = vmatprep.mubr.bf16.mxu0 0
    %4408 = vmatmul.mubr.bf16.gmra.mxu0 %v3992
    %v4409 = vpop.f32.mrf.mxu0
    %v4410 = vadd.f32 %v4053, %v4409
    %v4411 = vpop.f32.mrf.mxu0
    %v4412 = vpop.f32.mrf.mxu0
    %v4413 = vadd.f32 %v4053, %v4412
    %v4414 = vpop.f32.mrf.mxu0
    %4415 = vmatprep.mubr.bf16.mxu0 0
    %4416 = vmatmul.mubr.bf16.gmra.mxu0 %v3993
    %v4417 = vpop.f32.mrf.mxu0
    %v4418 = vadd.f32 %v4053, %v4417
    %v4419 = vpop.f32.mrf.mxu0
    %v4420 = vpop.f32.mrf.mxu0
    %v4421 = vadd.f32 %v4053, %v4420
    %v4422 = vpop.f32.mrf.mxu0
    %4423 = vmatprep.mubr.bf16.mxu0 0
    %4424 = vmatmul.mubr.bf16.gmra.mxu0 %v3994
    %v4425 = vpop.f32.mrf.mxu0
    %v4426 = vadd.f32 %v4053, %v4425
    %v4427 = vpop.f32.mrf.mxu0
    %v4428 = vpop.f32.mrf.mxu0
    %v4429 = vadd.f32 %v4053, %v4428
    %v4430 = vpop.f32.mrf.mxu0
    %4431 = vmatprep.mubr.bf16.mxu0 0
    %4432 = vmatmul.mubr.bf16.gmra.mxu0 %v3995
    %v4433 = vpop.f32.mrf.mxu0
    %v4434 = vadd.f32 %v4053, %v4433
    %v4435 = vpop.f32.mrf.mxu0
    %v4436 = vpop.f32.mrf.mxu0
    %v4437 = vadd.f32 %v4053, %v4436
    %v4438 = vpop.f32.mrf.mxu0
    %4439 = vmatprep.mubr.bf16.mxu0 0
    %4440 = vmatmul.mubr.bf16.gmra.mxu0 %v3996
    %v4441 = vpop.f32.mrf.mxu0
    %v4442 = vadd.f32 %v4053, %v4441
    %v4443 = vpop.f32.mrf.mxu0
    %v4444 = vpop.f32.mrf.mxu0
    %v4445 = vadd.f32 %v4053, %v4444
    %v4446 = vpop.f32.mrf.mxu0
    %4447 = vmatprep.mubr.bf16.mxu0 0
    %4448 = vmatmul.mubr.bf16.gmra.mxu0 %v3997
    %v4449 = vpop.f32.mrf.mxu0
    %v4450 = vadd.f32 %v4053, %v4449
    %v4451 = vpop.f32.mrf.mxu0
    %v4452 = vpop.f32.mrf.mxu0
    %v4453 = vadd.f32 %v4053, %v4452
    %v4454 = vpop.f32.mrf.mxu0
    %4455 = vmatprep.mubr.bf16.mxu0 0
    %4456 = vmatmul.mubr.bf16.gmra.mxu0 %v3998
    %v4457 = vpop.f32.mrf.mxu0
    %v4458 = vadd.f32 %v4053, %v4457
    %v4459 = vpop.f32.mrf.mxu0
    %v4460 = vpop.f32.mrf.mxu0
    %v4461 = vadd.f32 %v4053, %v4460
    %v4462 = vpop.f32.mrf.mxu0
    %4463 = vmatprep.mubr.bf16.mxu0 0
    %4464 = vmatmul.mubr.bf16.gmra.mxu0 %v3999
    %v4465 = vpop.f32.mrf.mxu0
    %v4466 = vadd.f32 %v4053, %v4465
    %v4467 = vpop.f32.mrf.mxu0
    %v4468 = vpop.f32.mrf.mxu0
    %v4469 = vadd.f32 %v4053, %v4468
    %v4470 = vpop.f32.mrf.mxu0
    %4471 = vmatprep.mubr.bf16.mxu0 0
    %4472 = vmatmul.mubr.bf16.gmra.mxu0 %v4000
    %v4473 = vpop.f32.mrf.mxu0
    %v4474 = vadd.f32 %v4053, %v4473
    %v4475 = vpop.f32.mrf.mxu0
    %v4476 = vpop.f32.mrf.mxu0
    %v4477 = vadd.f32 %v4053, %v4476
    %v4478 = vpop.f32.mrf.mxu0
    %4479 = vmatprep.mubr.bf16.mxu0 0
    %4480 = vmatmul.mubr.bf16.gmra.mxu0 %v4001
    %v4481 = vpop.f32.mrf.mxu0
    %v4482 = vadd.f32 %v4053, %v4481
    %v4483 = vpop.f32.mrf.mxu0
    %v4484 = vpop.f32.mrf.mxu0
    %v4485 = vadd.f32 %v4053, %v4484
    %v4486 = vpop.f32.mrf.mxu0
    %4487 = vmatprep.mubr.bf16.mxu0 0
    %4488 = vmatmul.mubr.bf16.gmra.mxu0 %v4002
    %v4489 = vpop.f32.mrf.mxu0
    %v4490 = vadd.f32 %v4053, %v4489
    %v4491 = vpop.f32.mrf.mxu0
    %v4492 = vpop.f32.mrf.mxu0
    %v4493 = vadd.f32 %v4053, %v4492
    %v4494 = vpop.f32.mrf.mxu0
    %4495 = vmatprep.mubr.bf16.mxu0 0
    %4496 = vmatmul.mubr.bf16.gmra.mxu0 %v4003
    %v4497 = vpop.f32.mrf.mxu0
    %v4498 = vadd.f32 %v4053, %v4497
    %v4499 = vpop.f32.mrf.mxu0
    %v4500 = vpop.f32.mrf.mxu0
    %v4501 = vadd.f32 %v4053, %v4500
    %v4502 = vpop.f32.mrf.mxu0
    %4503 = vmatprep.mubr.bf16.mxu0 0
    %4504 = vmatmul.mubr.bf16.gmra.mxu0 %v4004
    %v4505 = vpop.f32.mrf.mxu0
    %v4506 = vadd.f32 %v4053, %v4505
    %v4507 = vpop.f32.mrf.mxu0
    %v4508 = vpop.f32.mrf.mxu0
    %v4509 = vadd.f32 %v4053, %v4508
    %v4510 = vpop.f32.mrf.mxu0
    %4511 = vmatprep.mubr.bf16.mxu0 0
    %4512 = vmatmul.mubr.bf16.gmra.mxu0 %v4005
    %v4513 = vpop.f32.mrf.mxu0
    %v4514 = vadd.f32 %v4053, %v4513
    %v4515 = vpop.f32.mrf.mxu0
    %v4516 = vpop.f32.mrf.mxu0
    %v4517 = vadd.f32 %v4053, %v4516
    %v4518 = vpop.f32.mrf.mxu0
    %4519 = vmatprep.mubr.bf16.mxu0 0
    %4520 = vmatmul.mubr.bf16.gmra.mxu0 %v4006
    %v4521 = vpop.f32.mrf.mxu0
    %v4522 = vadd.f32 %v4053, %v4521
    %v4523 = vpop.f32.mrf.mxu0
    %v4524 = vpop.f32.mrf.mxu0
    %v4525 = vadd.f32 %v4053, %v4524
    %v4526 = vpop.f32.mrf.mxu0
    %4527 = vmatprep.mubr.bf16.mxu0 0
    %4528 = vmatmul.mubr.bf16.gmra.mxu0 %v4007
    %v4529 = vpop.f32.mrf.mxu0
    %v4530 = vadd.f32 %v4053, %v4529
    %v4531 = vpop.f32.mrf.mxu0
    %v4532 = vpop.f32.mrf.mxu0
    %v4533 = vadd.f32 %v4053, %v4532
    %v4534 = vpop.f32.mrf.mxu0
    %4535 = vmatprep.mubr.bf16.mxu0 0
    %4536 = vmatmul.mubr.bf16.gmra.mxu0 %v4008
    %v4537 = vpop.f32.mrf.mxu0
    %v4538 = vadd.f32 %v4053, %v4537
    %v4539 = vpop.f32.mrf.mxu0
    %v4540 = vpop.f32.mrf.mxu0
    %v4541 = vadd.f32 %v4053, %v4540
    %v4542 = vpop.f32.mrf.mxu0
    %4543 = vmatprep.mubr.bf16.mxu0 0
    %4544 = vmatmul.mubr.bf16.gmra.mxu0 %v4009
    %v4545 = vpop.f32.mrf.mxu0
    %v4546 = vadd.f32 %v4053, %v4545
    %v4547 = vpop.f32.mrf.mxu0
    %v4548 = vpop.f32.mrf.mxu0
    %v4549 = vadd.f32 %v4053, %v4548
    %v4550 = vpop.f32.mrf.mxu0
    %4551 = vmatprep.mubr.bf16.mxu0 0
    %4552 = vmatmul.mubr.bf16.gmra.mxu0 %v4010
    %v4553 = vpop.f32.mrf.mxu0
    %v4554 = vadd.f32 %v4053, %v4553
    %v4555 = vpop.f32.mrf.mxu0
    %v4556 = vpop.f32.mrf.mxu0
    %v4557 = vadd.f32 %v4053, %v4556
    %v4558 = vpop.f32.mrf.mxu0
    %4559 = vmatprep.mubr.bf16.mxu0 0
    %4560 = vmatmul.mubr.bf16.gmra.mxu0 %v4011
    %v4561 = vpop.f32.mrf.mxu0
    %v4562 = vadd.f32 %v4053, %v4561
    %v4563 = vpop.f32.mrf.mxu0
    %v4564 = vpop.f32.mrf.mxu0
    %v4565 = vadd.f32 %v4053, %v4564
    %v4566 = vpop.f32.mrf.mxu0
    %4567 = vmatprep.mubr.bf16.mxu0 0
    %4568 = vmatmul.mubr.bf16.gmra.mxu0 %v4012
    %v4569 = vpop.f32.mrf.mxu0
    %v4570 = vadd.f32 %v4053, %v4569
    %v4571 = vpop.f32.mrf.mxu0
    %v4572 = vpop.f32.mrf.mxu0
    %v4573 = vadd.f32 %v4053, %v4572
    %v4574 = vpop.f32.mrf.mxu0
    %4575 = vmatprep.mubr.bf16.mxu0 0
    %4576 = vmatmul.mubr.bf16.gmra.mxu0 %v4013
    %v4577 = vpop.f32.mrf.mxu0
    %v4578 = vadd.f32 %v4053, %v4577
    %v4579 = vpop.f32.mrf.mxu0
    %v4580 = vpop.f32.mrf.mxu0
    %v4581 = vadd.f32 %v4053, %v4580
    %v4582 = vpop.f32.mrf.mxu0
    %4583 = vmatprep.mubr.bf16.mxu0 0
    %4584 = vmatmul.mubr.bf16.gmra.mxu0 %v4014
    %v4585 = vpop.f32.mrf.mxu0
    %v4586 = vadd.f32 %v4053, %v4585
    %v4587 = vpop.f32.mrf.mxu0
    %v4588 = vpop.f32.mrf.mxu0
    %v4589 = vadd.f32 %v4053, %v4588
    %v4590 = vpop.f32.mrf.mxu0
    %4591 = vmatprep.mubr.bf16.mxu0 0
    %4592 = vmatmul.mubr.bf16.gmra.mxu0 %v4015
    %v4593 = vpop.f32.mrf.mxu0
    %v4594 = vadd.f32 %v4053, %v4593
    %v4595 = vpop.f32.mrf.mxu0
    %v4596 = vpop.f32.mrf.mxu0
    %v4597 = vadd.f32 %v4053, %v4596
    %v4598 = vpop.f32.mrf.mxu0
    %4599 = vmatprep.mubr.bf16.mxu0 0
    %4600 = vmatmul.mubr.bf16.gmra.mxu0 %v4016
    %v4601 = vpop.f32.mrf.mxu0
    %v4602 = vadd.f32 %v4053, %v4601
    %v4603 = vpop.f32.mrf.mxu0
    %v4604 = vpop.f32.mrf.mxu0
    %v4605 = vadd.f32 %v4053, %v4604
    %v4606 = vpop.f32.mrf.mxu0
    %4607 = vmatprep.mubr.bf16.mxu0 0
    %4608 = vmatmul.mubr.bf16.gmra.mxu0 %v4017
    %v4609 = vpop.f32.mrf.mxu0
    %v4610 = vadd.f32 %v4053, %v4609
    %v4611 = vpop.f32.mrf.mxu0
    %v4612 = vpop.f32.mrf.mxu0
    %v4613 = vadd.f32 %v4053, %v4612
    %v4614 = vpop.f32.mrf.mxu0
    %4615 = vmatprep.mubr.bf16.mxu0 0
    %4616 = vmatmul.mubr.bf16.gmra.mxu0 %v4018
    %v4617 = vpop.f32.mrf.mxu0
    %v4618 = vadd.f32 %v4053, %v4617
    %v4619 = vpop.f32.mrf.mxu0
    %v4620 = vpop.f32.mrf.mxu0
    %v4621 = vadd.f32 %v4053, %v4620
    %v4622 = vpop.f32.mrf.mxu0
    %4623 = vmatprep.mubr.bf16.mxu0 0
    %4624 = vmatmul.mubr.bf16.gmra.mxu0 %v4019
    %v4625 = vpop.f32.mrf.mxu0
    %v4626 = vadd.f32 %v4053, %v4625
    %v4627 = vpop.f32.mrf.mxu0
    %v4628 = vpop.f32.mrf.mxu0
    %v4629 = vadd.f32 %v4053, %v4628
    %v4630 = vpop.f32.mrf.mxu0
    %4631 = vmatprep.mubr.bf16.mxu0 0
    %4632 = vmatmul.mubr.bf16.gmra.mxu0 %v4020
    %v4633 = vpop.f32.mrf.mxu0
    %v4634 = vadd.f32 %v4053, %v4633
    %v4635 = vpop.f32.mrf.mxu0
    %v4636 = vpop.f32.mrf.mxu0
    %v4637 = vadd.f32 %v4053, %v4636
    %v4638 = vpop.f32.mrf.mxu0
    %4639 = vmatprep.mubr.bf16.mxu0 0
    %4640 = vmatmul.mubr.bf16.gmra.mxu0 %v4021
    %v4641 = vpop.f32.mrf.mxu0
    %v4642 = vadd.f32 %v4053, %v4641
    %v4643 = vpop.f32.mrf.mxu0
    %v4644 = vpop.f32.mrf.mxu0
    %v4645 = vadd.f32 %v4053, %v4644
    %v4646 = vpop.f32.mrf.mxu0
    %4647 = vmatprep.mubr.bf16.mxu0 0
    %4648 = vmatmul.mubr.bf16.gmra.mxu0 %v4022
    %v4649 = vpop.f32.mrf.mxu0
    %v4650 = vadd.f32 %v4053, %v4649
    %v4651 = vpop.f32.mrf.mxu0
    %v4652 = vpop.f32.mrf.mxu0
    %v4653 = vadd.f32 %v4053, %v4652
    %v4654 = vpop.f32.mrf.mxu0
    %4655 = vmatprep.mubr.bf16.mxu0 0
    %4656 = vmatmul.mubr.bf16.gmra.mxu0 %v4023
    %v4657 = vpop.f32.mrf.mxu0
    %v4658 = vadd.f32 %v4053, %v4657
    %v4659 = vpop.f32.mrf.mxu0
    %v4660 = vpop.f32.mrf.mxu0
    %v4661 = vadd.f32 %v4053, %v4660
    %v4662 = vpop.f32.mrf.mxu0
    %4663 = vmatprep.mubr.bf16.mxu0 0
    %4664 = vmatmul.mubr.bf16.gmra.mxu0 %v4024
    %v4665 = vpop.f32.mrf.mxu0
    %v4666 = vadd.f32 %v4053, %v4665
    %v4667 = vpop.f32.mrf.mxu0
    %v4668 = vpop.f32.mrf.mxu0
    %v4669 = vadd.f32 %v4053, %v4668
    %v4670 = vpop.f32.mrf.mxu0
    %4671 = vmatprep.mubr.bf16.mxu0 0
    %4672 = vmatmul.mubr.bf16.gmra.mxu0 %v4025
    %v4673 = vpop.f32.mrf.mxu0
    %v4674 = vadd.f32 %v4053, %v4673
    %v4675 = vpop.f32.mrf.mxu0
    %v4676 = vpop.f32.mrf.mxu0
    %v4677 = vadd.f32 %v4053, %v4676
    %v4678 = vpop.f32.mrf.mxu0
    %4679 = vmatprep.mubr.bf16.mxu0 0
    %4680 = vmatmul.mubr.bf16.gmra.mxu0 %v4026
    %v4681 = vpop.f32.mrf.mxu0
    %v4682 = vadd.f32 %v4053, %v4681
    %v4683 = vpop.f32.mrf.mxu0
    %v4684 = vpop.f32.mrf.mxu0
    %v4685 = vadd.f32 %v4053, %v4684
    %v4686 = vpop.f32.mrf.mxu0
    %4687 = vmatprep.mubr.bf16.mxu0 0
    %4688 = vmatmul.mubr.bf16.gmra.mxu0 %v4027
    %v4689 = vpop.f32.mrf.mxu0
    %v4690 = vadd.f32 %v4053, %v4689
    %v4691 = vpop.f32.mrf.mxu0
    %v4692 = vpop.f32.mrf.mxu0
    %v4693 = vadd.f32 %v4053, %v4692
    %v4694 = vpop.f32.mrf.mxu0
    %4695 = vmatprep.mubr.bf16.mxu0 0
    %4696 = vmatmul.mubr.bf16.gmra.mxu0 %v4028
    %v4697 = vpop.f32.mrf.mxu0
    %v4698 = vadd.f32 %v4053, %v4697
    %v4699 = vpop.f32.mrf.mxu0
    %v4700 = vpop.f32.mrf.mxu0
    %v4701 = vadd.f32 %v4053, %v4700
    %v4702 = vpop.f32.mrf.mxu0
    %4703 = vmatprep.mubr.bf16.mxu0 0
    %4704 = vmatmul.mubr.bf16.gmra.mxu0 %v4029
    %v4705 = vpop.f32.mrf.mxu0
    %v4706 = vadd.f32 %v4053, %v4705
    %v4707 = vpop.f32.mrf.mxu0
    %v4708 = vpop.f32.mrf.mxu0
    %v4709 = vadd.f32 %v4053, %v4708
    %v4710 = vpop.f32.mrf.mxu0
    %4711 = vdwg.mxu0
    %v4712 = vmax.f32 %v4138, 0.0
    %v4713 = vmax.f32 %v4141, 0.0
    %v4714 = vmax.f32 %v4146, 0.0
    %v4715 = vmax.f32 %v4149, 0.0
    %v4716 = vmax.f32 %v4154, 0.0
    %v4717 = vmax.f32 %v4157, 0.0
    %v4718 = vmax.f32 %v4162, 0.0
    %v4719 = vmax.f32 %v4165, 0.0
    %v4720 = vmax.f32 %v4170, 0.0
    %v4721 = vmax.f32 %v4173, 0.0
    %v4722 = vmax.f32 %v4178, 0.0
    %v4723 = vmax.f32 %v4181, 0.0
    %v4724 = vmax.f32 %v4186, 0.0
    %v4725 = vmax.f32 %v4189, 0.0
    %v4726 = vmax.f32 %v4194, 0.0
    %v4727 = vmax.f32 %v4197, 0.0
    %v4728 = vmax.f32 %v4202, 0.0
    %v4729 = vmax.f32 %v4205, 0.0
    %v4730 = vmax.f32 %v4210, 0.0
    %v4731 = vmax.f32 %v4213, 0.0
    %v4732 = vmax.f32 %v4218, 0.0
    %v4733 = vmax.f32 %v4221, 0.0
    %v4734 = vmax.f32 %v4226, 0.0
    %v4735 = vmax.f32 %v4229, 0.0
    %v4736 = vmax.f32 %v4234, 0.0
    %v4737 = vmax.f32 %v4237, 0.0
    %v4738 = vmax.f32 %v4242, 0.0
    %v4739 = vmax.f32 %v4245, 0.0
    %v4740 = vmax.f32 %v4250, 0.0
    %v4741 = vmax.f32 %v4253, 0.0
    %v4742 = vmax.f32 %v4258, 0.0
    %v4743 = vmax.f32 %v4261, 0.0
    %v4744 = vmax.f32 %v4266, 0.0
    %v4745 = vmax.f32 %v4269, 0.0
    %v4746 = vmax.f32 %v4274, 0.0
    %v4747 = vmax.f32 %v4277, 0.0
    %v4748 = vmax.f32 %v4282, 0.0
    %v4749 = vmax.f32 %v4285, 0.0
    %v4750 = vmax.f32 %v4290, 0.0
    %v4751 = vmax.f32 %v4293, 0.0
    %v4752 = vmax.f32 %v4298, 0.0
    %v4753 = vmax.f32 %v4301, 0.0
    %v4754 = vmax.f32 %v4306, 0.0
    %v4755 = vmax.f32 %v4309, 0.0
    %v4756 = vmax.f32 %v4314, 0.0
    %v4757 = vmax.f32 %v4317, 0.0
    %v4758 = vmax.f32 %v4322, 0.0
    %v4759 = vmax.f32 %v4325, 0.0
    %v4760 = vmax.f32 %v4330, 0.0
    %v4761 = vmax.f32 %v4333, 0.0
    %v4762 = vmax.f32 %v4338, 0.0
    %v4763 = vmax.f32 %v4341, 0.0
    %v4764 = vmax.f32 %v4346, 0.0
    %v4765 = vmax.f32 %v4349, 0.0
    %v4766 = vmax.f32 %v4354, 0.0
    %v4767 = vmax.f32 %v4357, 0.0
    %v4768 = vmax.f32 %v4362, 0.0
    %v4769 = vmax.f32 %v4365, 0.0
    %v4770 = vmax.f32 %v4370, 0.0
    %v4771 = vmax.f32 %v4373, 0.0
    %v4772 = vmax.f32 %v4378, 0.0
    %v4773 = vmax.f32 %v4381, 0.0
    %v4774 = vmax.f32 %v4386, 0.0
    %v4775 = vmax.f32 %v4389, 0.0
    %v4776 = vmax.f32 %v4394, 0.0
    %v4777 = vmax.f32 %v4397, 0.0
    %v4778 = vmax.f32 %v4402, 0.0
    %v4779 = vmax.f32 %v4405, 0.0
    %v4780 = vmax.f32 %v4410, 0.0
    %v4781 = vmax.f32 %v4413, 0.0
    %v4782 = vmax.f32 %v4418, 0.0
    %v4783 = vmax.f32 %v4421, 0.0
    %v4784 = vmax.f32 %v4426, 0.0
    %v4785 = vmax.f32 %v4429, 0.0
    %v4786 = vmax.f32 %v4434, 0.0
    %v4787 = vmax.f32 %v4437, 0.0
    %v4788 = vmax.f32 %v4442, 0.0
    %v4789 = vmax.f32 %v4445, 0.0
    %v4790 = vmax.f32 %v4450, 0.0
    %v4791 = vmax.f32 %v4453, 0.0
    %v4792 = vmax.f32 %v4458, 0.0
    %v4793 = vmax.f32 %v4461, 0.0
    %v4794 = vmax.f32 %v4466, 0.0
    %v4795 = vmax.f32 %v4469, 0.0
    %v4796 = vmax.f32 %v4474, 0.0
    %v4797 = vmax.f32 %v4477, 0.0
    %v4798 = vmax.f32 %v4482, 0.0
    %v4799 = vmax.f32 %v4485, 0.0
    %v4800 = vmax.f32 %v4490, 0.0
    %v4801 = vmax.f32 %v4493, 0.0
    %v4802 = vmax.f32 %v4498, 0.0
    %v4803 = vmax.f32 %v4501, 0.0
    %v4804 = vmax.f32 %v4506, 0.0
    %v4805 = vmax.f32 %v4509, 0.0
    %v4806 = vmax.f32 %v4514, 0.0
    %v4807 = vmax.f32 %v4517, 0.0
    %v4808 = vmax.f32 %v4522, 0.0
    %v4809 = vmax.f32 %v4525, 0.0
    %v4810 = vmax.f32 %v4530, 0.0
    %v4811 = vmax.f32 %v4533, 0.0
    %v4812 = vmax.f32 %v4538, 0.0
    %v4813 = vmax.f32 %v4541, 0.0
    %v4814 = vmax.f32 %v4546, 0.0
    %v4815 = vmax.f32 %v4549, 0.0
    %v4816 = vmax.f32 %v4554, 0.0
    %v4817 = vmax.f32 %v4557, 0.0
    %v4818 = vmax.f32 %v4562, 0.0
    %v4819 = vmax.f32 %v4565, 0.0
    %v4820 = vmax.f32 %v4570, 0.0
    %v4821 = vmax.f32 %v4573, 0.0
    %v4822 = vmax.f32 %v4578, 0.0
    %v4823 = vmax.f32 %v4581, 0.0
    %v4824 = vmax.f32 %v4586, 0.0
    %v4825 = vmax.f32 %v4589, 0.0
    %v4826 = vmax.f32 %v4594, 0.0
    %v4827 = vmax.f32 %v4597, 0.0
    %v4828 = vmax.f32 %v4602, 0.0
    %v4829 = vmax.f32 %v4605, 0.0
    %v4830 = vmax.f32 %v4610, 0.0
    %v4831 = vmax.f32 %v4613, 0.0
    %v4832 = vmax.f32 %v4618, 0.0
    %v4833 = vmax.f32 %v4621, 0.0
    %v4834 = vmax.f32 %v4626, 0.0
    %v4835 = vmax.f32 %v4629, 0.0
    %v4836 = vmax.f32 %v4634, 0.0
    %v4837 = vmax.f32 %v4637, 0.0
    %v4838 = vmax.f32 %v4642, 0.0
    %v4839 = vmax.f32 %v4645, 0.0
    %v4840 = vmax.f32 %v4650, 0.0
    %v4841 = vmax.f32 %v4653, 0.0
    %v4842 = vmax.f32 %v4658, 0.0
    %v4843 = vmax.f32 %v4661, 0.0
    %v4844 = vmax.f32 %v4666, 0.0
    %v4845 = vmax.f32 %v4669, 0.0
    %v4846 = vmax.f32 %v4674, 0.0
    %v4847 = vmax.f32 %v4677, 0.0
    %v4848 = vmax.f32 %v4682, 0.0
    %v4849 = vmax.f32 %v4685, 0.0
    %v4850 = vmax.f32 %v4690, 0.0
    %v4851 = vmax.f32 %v4693, 0.0
    %v4852 = vmax.f32 %v4698, 0.0
    %v4853 = vmax.f32 %v4701, 0.0
    %v4854 = vmax.f32 %v4706, 0.0
    %v4855 = vmax.f32 %v4709, 0.0
    %v4856 = vpack.c.bf16 %v4713, %v4712
    %v4857 = vpack.c.bf16 %v4715, %v4714
    %v4858 = vpack.c.bf16 %v4717, %v4716
    %v4859 = vpack.c.bf16 %v4719, %v4718
    %v4860 = vpack.c.bf16 %v4721, %v4720
    %v4861 = vpack.c.bf16 %v4723, %v4722
    %v4862 = vpack.c.bf16 %v4725, %v4724
    %v4863 = vpack.c.bf16 %v4727, %v4726
    %v4864 = vpack.c.bf16 %v4729, %v4728
    %v4865 = vpack.c.bf16 %v4731, %v4730
    %v4866 = vpack.c.bf16 %v4733, %v4732
    %v4867 = vpack.c.bf16 %v4735, %v4734
    %v4868 = vpack.c.bf16 %v4737, %v4736
    %v4869 = vpack.c.bf16 %v4739, %v4738
    %v4870 = vpack.c.bf16 %v4741, %v4740
    %v4871 = vpack.c.bf16 %v4743, %v4742
    %v4872 = vpack.c.bf16 %v4745, %v4744
    %v4873 = vpack.c.bf16 %v4747, %v4746
    %v4874 = vpack.c.bf16 %v4749, %v4748
    %v4875 = vpack.c.bf16 %v4751, %v4750
    %v4876 = vpack.c.bf16 %v4753, %v4752
    %v4877 = vpack.c.bf16 %v4755, %v4754
    %v4878 = vpack.c.bf16 %v4757, %v4756
    %v4879 = vpack.c.bf16 %v4759, %v4758
    %v4880 = vpack.c.bf16 %v4761, %v4760
    %v4881 = vpack.c.bf16 %v4763, %v4762
    %v4882 = vpack.c.bf16 %v4765, %v4764
    %v4883 = vpack.c.bf16 %v4767, %v4766
    %v4884 = vpack.c.bf16 %v4769, %v4768
    %v4885 = vpack.c.bf16 %v4771, %v4770
    %v4886 = vpack.c.bf16 %v4773, %v4772
    %v4887 = vpack.c.bf16 %v4775, %v4774
    %v4888 = vpack.c.bf16 %v4777, %v4776
    %v4889 = vpack.c.bf16 %v4779, %v4778
    %v4890 = vpack.c.bf16 %v4781, %v4780
    %v4891 = vpack.c.bf16 %v4783, %v4782
    %v4892 = vpack.c.bf16 %v4785, %v4784
    %v4893 = vpack.c.bf16 %v4787, %v4786
    %v4894 = vpack.c.bf16 %v4789, %v4788
    %v4895 = vpack.c.bf16 %v4791, %v4790
    %v4896 = vpack.c.bf16 %v4793, %v4792
    %v4897 = vpack.c.bf16 %v4795, %v4794
    %v4898 = vpack.c.bf16 %v4797, %v4796
    %v4899 = vpack.c.bf16 %v4799, %v4798
    %v4900 = vpack.c.bf16 %v4801, %v4800
    %v4901 = vpack.c.bf16 %v4803, %v4802
    %v4902 = vpack.c.bf16 %v4805, %v4804
    %v4903 = vpack.c.bf16 %v4807, %v4806
    %v4904 = vpack.c.bf16 %v4809, %v4808
    %v4905 = vpack.c.bf16 %v4811, %v4810
    %v4906 = vpack.c.bf16 %v4813, %v4812
    %v4907 = vpack.c.bf16 %v4815, %v4814
    %v4908 = vpack.c.bf16 %v4817, %v4816
    %v4909 = vpack.c.bf16 %v4819, %v4818
    %v4910 = vpack.c.bf16 %v4821, %v4820
    %v4911 = vpack.c.bf16 %v4823, %v4822
    %v4912 = vpack.c.bf16 %v4825, %v4824
    %v4913 = vpack.c.bf16 %v4827, %v4826
    %v4914 = vpack.c.bf16 %v4829, %v4828
    %v4915 = vpack.c.bf16 %v4831, %v4830
    %v4916 = vpack.c.bf16 %v4833, %v4832
    %v4917 = vpack.c.bf16 %v4835, %v4834
    %v4918 = vpack.c.bf16 %v4837, %v4836
    %v4919 = vpack.c.bf16 %v4839, %v4838
    %v4920 = vpack.c.bf16 %v4841, %v4840
    %v4921 = vpack.c.bf16 %v4843, %v4842
    %v4922 = vpack.c.bf16 %v4845, %v4844
    %v4923 = vpack.c.bf16 %v4847, %v4846
    %v4924 = vpack.c.bf16 %v4849, %v4848
    %v4925 = vpack.c.bf16 %v4851, %v4850
    %v4926 = vpack.c.bf16 %v4853, %v4852
    %v4927 = vpack.c.bf16 %v4855, %v4854
    %s4928 = scalar_lea.vmem [#allocation4], 768
    %v4929 = vld [vmem:[%s4928] sm:$0xf]
    %v4930 = vld [vmem:[%s4928 + $0x4] sm:$0xf]
    %v4931 = vld [vmem:[%s4928 + $0x8] sm:$0xf]
    %v4932 = vld [vmem:[%s4928 + $0xc] sm:$0xf]
    %v4933 = vld [vmem:[%s4928 + $0x10] sm:$0xf]
    %v4934 = vld [vmem:[%s4928 + $0x14] sm:$0xf]
    %v4935 = vld [vmem:[%s4928 + $0x18] sm:$0xf]
    %v4936 = vld [vmem:[%s4928 + $0x1c] sm:$0xf]
    %v4937 = vld [vmem:[%s4928 + $0x20] sm:$0xf]
    %v4938 = vld [vmem:[%s4928 + $0x24] sm:$0xf]
    %v4939 = vld [vmem:[%s4928 + $0x28] sm:$0xf]
    %v4940 = vld [vmem:[%s4928 + $0x2c] sm:$0xf]
    %v4941 = vld [vmem:[%s4928 + $0x30] sm:$0xf]
    %v4942 = vld [vmem:[%s4928 + $0x34] sm:$0xf]
    %v4943 = vld [vmem:[%s4928 + $0x38] sm:$0xf]
    %v4944 = vld [vmem:[%s4928 + $0x3c] sm:$0xf]
    %s4945 = scalar_lea.vmem [#allocation6], 12
    %v4946 = vld [vmem:[%s4945] sm:$0x1]
    %v4948 = vlaneseq
    %v4949 = vshrl.u32 %v4948, 7
    %v4950 = vsub.s32 0, %v4949
    %v4951 = vrot.slane %v4946, %v4950
    %v4969 = vunpack.c.l.b16 %v4929
    %v4970 = vunpack.c.l.b16 %v4930
    %v4971 = vunpack.c.l.b16 %v4931
    %v4972 = vunpack.c.l.b16 %v4932
    %v4973 = vunpack.c.l.b16 %v4933
    %v4974 = vunpack.c.l.b16 %v4934
    %v4975 = vunpack.c.l.b16 %v4935
    %v4976 = vunpack.c.l.b16 %v4936
    %v4977 = vunpack.c.l.b16 %v4937
    %v4978 = vunpack.c.l.b16 %v4938
    %v4979 = vunpack.c.l.b16 %v4939
    %v4980 = vunpack.c.l.b16 %v4940
    %v4981 = vunpack.c.l.b16 %v4941
    %v4982 = vunpack.c.l.b16 %v4942
    %v4983 = vunpack.c.l.b16 %v4943
    %v4984 = vunpack.c.l.b16 %v4944
    %v4985 = vpack.c.b16 %v4970, %v4969
    %v4986 = vpack.c.b16 %v4972, %v4971
    %v4987 = vpack.c.b16 %v4974, %v4973
    %v4988 = vpack.c.b16 %v4976, %v4975
    %v4989 = vpack.c.b16 %v4978, %v4977
    %v4990 = vpack.c.b16 %v4980, %v4979
    %v4991 = vpack.c.b16 %v4982, %v4981
    %v4992 = vpack.c.b16 %v4984, %v4983
    %5001 = vmatprep.subr.bf16.mxu0 0
    %5002 = vmatpush1.bf16.msra.mxu0 %v4992
    %5003 = vmatprep.subr.bf16.mxu0 0
    %5004 = vmatpush1.bf16.msra.mxu0 %v4991
    %5005 = vmatprep.subr.bf16.mxu0 0
    %5006 = vmatpush1.bf16.msra.mxu0 %v4990
    %5007 = vmatprep.subr.bf16.mxu0 0
    %5008 = vmatpush1.bf16.msra.mxu0 %v4989
    %5009 = vmatprep.subr.bf16.mxu0 0
    %5010 = vmatpush1.bf16.msra.mxu0 %v4988
    %5011 = vmatprep.subr.bf16.mxu0 0
    %5012 = vmatpush1.bf16.msra.mxu0 %v4987
    %5013 = vmatprep.subr.bf16.mxu0 0
    %5014 = vmatpush1.bf16.msra.mxu0 %v4986
    %5015 = vmatprep.subr.bf16.mxu0 0
    %5016 = vmatpush1.bf16.msra.mxu0 %v4985
    %5017 = vmatprep.subr.bf16.mxu0 0
    %5018 = vmatpush2.bf16.msra.mxu0 0
    %5019 = vmatprep.subr.bf16.mxu0 0
    %5020 = vmatpush2.bf16.msra.mxu0 0
    %5021 = vmatprep.subr.bf16.mxu0 0
    %5022 = vmatpush2.bf16.msra.mxu0 0
    %5023 = vmatprep.subr.bf16.mxu0 0
    %5024 = vmatpush2.bf16.msra.mxu0 0
    %5025 = vmatprep.subr.bf16.mxu0 0
    %5026 = vmatpush2.bf16.msra.mxu0 0
    %5027 = vmatprep.subr.bf16.mxu0 0
    %5028 = vmatpush2.bf16.msra.mxu0 0
    %5029 = vmatprep.subr.bf16.mxu0 0
    %5030 = vmatpush2.bf16.msra.mxu0 0
    %5031 = vmatprep.subr.bf16.mxu0 0
    %5032 = vmatpush2.bf16.msra.mxu0 0
    %5033 = vmatprep.mubr.bf16.mxu0 0
    %5034 = vmatmul.mubr.bf16.gmra.mxu0 %v4856
    %v5035 = vpop.f32.mrf.mxu0
    %v5036 = vadd.f32 %v4951, %v5035
    %v5037 = vpop.f32.mrf.mxu0
    %v5038 = vpop.f32.mrf.mxu0
    %v5039 = vadd.f32 %v4951, %v5038
    %v5040 = vpop.f32.mrf.mxu0
    %5041 = vmatprep.mubr.bf16.mxu0 0
    %5042 = vmatmul.mubr.bf16.gmra.mxu0 %v4857
    %v5043 = vpop.f32.mrf.mxu0
    %v5044 = vadd.f32 %v4951, %v5043
    %v5045 = vpop.f32.mrf.mxu0
    %v5046 = vpop.f32.mrf.mxu0
    %v5047 = vadd.f32 %v4951, %v5046
    %v5048 = vpop.f32.mrf.mxu0
    %5049 = vmatprep.mubr.bf16.mxu0 0
    %5050 = vmatmul.mubr.bf16.gmra.mxu0 %v4858
    %v5051 = vpop.f32.mrf.mxu0
    %v5052 = vadd.f32 %v4951, %v5051
    %v5053 = vpop.f32.mrf.mxu0
    %v5054 = vpop.f32.mrf.mxu0
    %v5055 = vadd.f32 %v4951, %v5054
    %v5056 = vpop.f32.mrf.mxu0
    %5057 = vmatprep.mubr.bf16.mxu0 0
    %5058 = vmatmul.mubr.bf16.gmra.mxu0 %v4859
    %v5059 = vpop.f32.mrf.mxu0
    %v5060 = vadd.f32 %v4951, %v5059
    %v5061 = vpop.f32.mrf.mxu0
    %v5062 = vpop.f32.mrf.mxu0
    %v5063 = vadd.f32 %v4951, %v5062
    %v5064 = vpop.f32.mrf.mxu0
    %5065 = vmatprep.mubr.bf16.mxu0 0
    %5066 = vmatmul.mubr.bf16.gmra.mxu0 %v4860
    %v5067 = vpop.f32.mrf.mxu0
    %v5068 = vadd.f32 %v4951, %v5067
    %v5069 = vpop.f32.mrf.mxu0
    %v5070 = vpop.f32.mrf.mxu0
    %v5071 = vadd.f32 %v4951, %v5070
    %v5072 = vpop.f32.mrf.mxu0
    %5073 = vmatprep.mubr.bf16.mxu0 0
    %5074 = vmatmul.mubr.bf16.gmra.mxu0 %v4861
    %v5075 = vpop.f32.mrf.mxu0
    %v5076 = vadd.f32 %v4951, %v5075
    %v5077 = vpop.f32.mrf.mxu0
    %v5078 = vpop.f32.mrf.mxu0
    %v5079 = vadd.f32 %v4951, %v5078
    %v5080 = vpop.f32.mrf.mxu0
    %5081 = vmatprep.mubr.bf16.mxu0 0
    %5082 = vmatmul.mubr.bf16.gmra.mxu0 %v4862
    %v5083 = vpop.f32.mrf.mxu0
    %v5084 = vadd.f32 %v4951, %v5083
    %v5085 = vpop.f32.mrf.mxu0
    %v5086 = vpop.f32.mrf.mxu0
    %v5087 = vadd.f32 %v4951, %v5086
    %v5088 = vpop.f32.mrf.mxu0
    %5089 = vmatprep.mubr.bf16.mxu0 0
    %5090 = vmatmul.mubr.bf16.gmra.mxu0 %v4863
    %v5091 = vpop.f32.mrf.mxu0
    %v5092 = vadd.f32 %v4951, %v5091
    %v5093 = vpop.f32.mrf.mxu0
    %v5094 = vpop.f32.mrf.mxu0
    %v5095 = vadd.f32 %v4951, %v5094
    %v5096 = vpop.f32.mrf.mxu0
    %5097 = vmatprep.mubr.bf16.mxu0 0
    %5098 = vmatmul.mubr.bf16.gmra.mxu0 %v4864
    %v5099 = vpop.f32.mrf.mxu0
    %v5100 = vadd.f32 %v4951, %v5099
    %v5101 = vpop.f32.mrf.mxu0
    %v5102 = vpop.f32.mrf.mxu0
    %v5103 = vadd.f32 %v4951, %v5102
    %v5104 = vpop.f32.mrf.mxu0
    %5105 = vmatprep.mubr.bf16.mxu0 0
    %5106 = vmatmul.mubr.bf16.gmra.mxu0 %v4865
    %v5107 = vpop.f32.mrf.mxu0
    %v5108 = vadd.f32 %v4951, %v5107
    %v5109 = vpop.f32.mrf.mxu0
    %v5110 = vpop.f32.mrf.mxu0
    %v5111 = vadd.f32 %v4951, %v5110
    %v5112 = vpop.f32.mrf.mxu0
    %5113 = vmatprep.mubr.bf16.mxu0 0
    %5114 = vmatmul.mubr.bf16.gmra.mxu0 %v4866
    %v5115 = vpop.f32.mrf.mxu0
    %v5116 = vadd.f32 %v4951, %v5115
    %v5117 = vpop.f32.mrf.mxu0
    %v5118 = vpop.f32.mrf.mxu0
    %v5119 = vadd.f32 %v4951, %v5118
    %v5120 = vpop.f32.mrf.mxu0
    %5121 = vmatprep.mubr.bf16.mxu0 0
    %5122 = vmatmul.mubr.bf16.gmra.mxu0 %v4867
    %v5123 = vpop.f32.mrf.mxu0
    %v5124 = vadd.f32 %v4951, %v5123
    %v5125 = vpop.f32.mrf.mxu0
    %v5126 = vpop.f32.mrf.mxu0
    %v5127 = vadd.f32 %v4951, %v5126
    %v5128 = vpop.f32.mrf.mxu0
    %5129 = vmatprep.mubr.bf16.mxu0 0
    %5130 = vmatmul.mubr.bf16.gmra.mxu0 %v4868
    %v5131 = vpop.f32.mrf.mxu0
    %v5132 = vadd.f32 %v4951, %v5131
    %v5133 = vpop.f32.mrf.mxu0
    %v5134 = vpop.f32.mrf.mxu0
    %v5135 = vadd.f32 %v4951, %v5134
    %v5136 = vpop.f32.mrf.mxu0
    %5137 = vmatprep.mubr.bf16.mxu0 0
    %5138 = vmatmul.mubr.bf16.gmra.mxu0 %v4869
    %v5139 = vpop.f32.mrf.mxu0
    %v5140 = vadd.f32 %v4951, %v5139
    %v5141 = vpop.f32.mrf.mxu0
    %v5142 = vpop.f32.mrf.mxu0
    %v5143 = vadd.f32 %v4951, %v5142
    %v5144 = vpop.f32.mrf.mxu0
    %5145 = vmatprep.mubr.bf16.mxu0 0
    %5146 = vmatmul.mubr.bf16.gmra.mxu0 %v4870
    %v5147 = vpop.f32.mrf.mxu0
    %v5148 = vadd.f32 %v4951, %v5147
    %v5149 = vpop.f32.mrf.mxu0
    %v5150 = vpop.f32.mrf.mxu0
    %v5151 = vadd.f32 %v4951, %v5150
    %v5152 = vpop.f32.mrf.mxu0
    %5153 = vmatprep.mubr.bf16.mxu0 0
    %5154 = vmatmul.mubr.bf16.gmra.mxu0 %v4871
    %v5155 = vpop.f32.mrf.mxu0
    %v5156 = vadd.f32 %v4951, %v5155
    %v5157 = vpop.f32.mrf.mxu0
    %v5158 = vpop.f32.mrf.mxu0
    %v5159 = vadd.f32 %v4951, %v5158
    %v5160 = vpop.f32.mrf.mxu0
    %5161 = vmatprep.mubr.bf16.mxu0 0
    %5162 = vmatmul.mubr.bf16.gmra.mxu0 %v4872
    %v5163 = vpop.f32.mrf.mxu0
    %v5164 = vadd.f32 %v4951, %v5163
    %v5165 = vpop.f32.mrf.mxu0
    %v5166 = vpop.f32.mrf.mxu0
    %v5167 = vadd.f32 %v4951, %v5166
    %v5168 = vpop.f32.mrf.mxu0
    %5169 = vmatprep.mubr.bf16.mxu0 0
    %5170 = vmatmul.mubr.bf16.gmra.mxu0 %v4873
    %v5171 = vpop.f32.mrf.mxu0
    %v5172 = vadd.f32 %v4951, %v5171
    %v5173 = vpop.f32.mrf.mxu0
    %v5174 = vpop.f32.mrf.mxu0
    %v5175 = vadd.f32 %v4951, %v5174
    %v5176 = vpop.f32.mrf.mxu0
    %5177 = vmatprep.mubr.bf16.mxu0 0
    %5178 = vmatmul.mubr.bf16.gmra.mxu0 %v4874
    %v5179 = vpop.f32.mrf.mxu0
    %v5180 = vadd.f32 %v4951, %v5179
    %v5181 = vpop.f32.mrf.mxu0
    %v5182 = vpop.f32.mrf.mxu0
    %v5183 = vadd.f32 %v4951, %v5182
    %v5184 = vpop.f32.mrf.mxu0
    %5185 = vmatprep.mubr.bf16.mxu0 0
    %5186 = vmatmul.mubr.bf16.gmra.mxu0 %v4875
    %v5187 = vpop.f32.mrf.mxu0
    %v5188 = vadd.f32 %v4951, %v5187
    %v5189 = vpop.f32.mrf.mxu0
    %v5190 = vpop.f32.mrf.mxu0
    %v5191 = vadd.f32 %v4951, %v5190
    %v5192 = vpop.f32.mrf.mxu0
    %5193 = vmatprep.mubr.bf16.mxu0 0
    %5194 = vmatmul.mubr.bf16.gmra.mxu0 %v4876
    %v5195 = vpop.f32.mrf.mxu0
    %v5196 = vadd.f32 %v4951, %v5195
    %v5197 = vpop.f32.mrf.mxu0
    %v5198 = vpop.f32.mrf.mxu0
    %v5199 = vadd.f32 %v4951, %v5198
    %v5200 = vpop.f32.mrf.mxu0
    %5201 = vmatprep.mubr.bf16.mxu0 0
    %5202 = vmatmul.mubr.bf16.gmra.mxu0 %v4877
    %v5203 = vpop.f32.mrf.mxu0
    %v5204 = vadd.f32 %v4951, %v5203
    %v5205 = vpop.f32.mrf.mxu0
    %v5206 = vpop.f32.mrf.mxu0
    %v5207 = vadd.f32 %v4951, %v5206
    %v5208 = vpop.f32.mrf.mxu0
    %5209 = vmatprep.mubr.bf16.mxu0 0
    %5210 = vmatmul.mubr.bf16.gmra.mxu0 %v4878
    %v5211 = vpop.f32.mrf.mxu0
    %v5212 = vadd.f32 %v4951, %v5211
    %v5213 = vpop.f32.mrf.mxu0
    %v5214 = vpop.f32.mrf.mxu0
    %v5215 = vadd.f32 %v4951, %v5214
    %v5216 = vpop.f32.mrf.mxu0
    %5217 = vmatprep.mubr.bf16.mxu0 0
    %5218 = vmatmul.mubr.bf16.gmra.mxu0 %v4879
    %v5219 = vpop.f32.mrf.mxu0
    %v5220 = vadd.f32 %v4951, %v5219
    %v5221 = vpop.f32.mrf.mxu0
    %v5222 = vpop.f32.mrf.mxu0
    %v5223 = vadd.f32 %v4951, %v5222
    %v5224 = vpop.f32.mrf.mxu0
    %5225 = vmatprep.mubr.bf16.mxu0 0
    %5226 = vmatmul.mubr.bf16.gmra.mxu0 %v4880
    %v5227 = vpop.f32.mrf.mxu0
    %v5228 = vadd.f32 %v4951, %v5227
    %v5229 = vpop.f32.mrf.mxu0
    %v5230 = vpop.f32.mrf.mxu0
    %v5231 = vadd.f32 %v4951, %v5230
    %v5232 = vpop.f32.mrf.mxu0
    %5233 = vmatprep.mubr.bf16.mxu0 0
    %5234 = vmatmul.mubr.bf16.gmra.mxu0 %v4881
    %v5235 = vpop.f32.mrf.mxu0
    %v5236 = vadd.f32 %v4951, %v5235
    %v5237 = vpop.f32.mrf.mxu0
    %v5238 = vpop.f32.mrf.mxu0
    %v5239 = vadd.f32 %v4951, %v5238
    %v5240 = vpop.f32.mrf.mxu0
    %5241 = vmatprep.mubr.bf16.mxu0 0
    %5242 = vmatmul.mubr.bf16.gmra.mxu0 %v4882
    %v5243 = vpop.f32.mrf.mxu0
    %v5244 = vadd.f32 %v4951, %v5243
    %v5245 = vpop.f32.mrf.mxu0
    %v5246 = vpop.f32.mrf.mxu0
    %v5247 = vadd.f32 %v4951, %v5246
    %v5248 = vpop.f32.mrf.mxu0
    %5249 = vmatprep.mubr.bf16.mxu0 0
    %5250 = vmatmul.mubr.bf16.gmra.mxu0 %v4883
    %v5251 = vpop.f32.mrf.mxu0
    %v5252 = vadd.f32 %v4951, %v5251
    %v5253 = vpop.f32.mrf.mxu0
    %v5254 = vpop.f32.mrf.mxu0
    %v5255 = vadd.f32 %v4951, %v5254
    %v5256 = vpop.f32.mrf.mxu0
    %5257 = vmatprep.mubr.bf16.mxu0 0
    %5258 = vmatmul.mubr.bf16.gmra.mxu0 %v4884
    %v5259 = vpop.f32.mrf.mxu0
    %v5260 = vadd.f32 %v4951, %v5259
    %v5261 = vpop.f32.mrf.mxu0
    %v5262 = vpop.f32.mrf.mxu0
    %v5263 = vadd.f32 %v4951, %v5262
    %v5264 = vpop.f32.mrf.mxu0
    %5265 = vmatprep.mubr.bf16.mxu0 0
    %5266 = vmatmul.mubr.bf16.gmra.mxu0 %v4885
    %v5267 = vpop.f32.mrf.mxu0
    %v5268 = vadd.f32 %v4951, %v5267
    %v5269 = vpop.f32.mrf.mxu0
    %v5270 = vpop.f32.mrf.mxu0
    %v5271 = vadd.f32 %v4951, %v5270
    %v5272 = vpop.f32.mrf.mxu0
    %5273 = vmatprep.mubr.bf16.mxu0 0
    %5274 = vmatmul.mubr.bf16.gmra.mxu0 %v4886
    %v5275 = vpop.f32.mrf.mxu0
    %v5276 = vadd.f32 %v4951, %v5275
    %v5277 = vpop.f32.mrf.mxu0
    %v5278 = vpop.f32.mrf.mxu0
    %v5279 = vadd.f32 %v4951, %v5278
    %v5280 = vpop.f32.mrf.mxu0
    %5281 = vmatprep.mubr.bf16.mxu0 0
    %5282 = vmatmul.mubr.bf16.gmra.mxu0 %v4887
    %v5283 = vpop.f32.mrf.mxu0
    %v5284 = vadd.f32 %v4951, %v5283
    %v5285 = vpop.f32.mrf.mxu0
    %v5286 = vpop.f32.mrf.mxu0
    %v5287 = vadd.f32 %v4951, %v5286
    %v5288 = vpop.f32.mrf.mxu0
    %5289 = vmatprep.mubr.bf16.mxu0 0
    %5290 = vmatmul.mubr.bf16.gmra.mxu0 %v4888
    %v5291 = vpop.f32.mrf.mxu0
    %v5292 = vadd.f32 %v4951, %v5291
    %v5293 = vpop.f32.mrf.mxu0
    %v5294 = vpop.f32.mrf.mxu0
    %v5295 = vadd.f32 %v4951, %v5294
    %v5296 = vpop.f32.mrf.mxu0
    %5297 = vmatprep.mubr.bf16.mxu0 0
    %5298 = vmatmul.mubr.bf16.gmra.mxu0 %v4889
    %v5299 = vpop.f32.mrf.mxu0
    %v5300 = vadd.f32 %v4951, %v5299
    %v5301 = vpop.f32.mrf.mxu0
    %v5302 = vpop.f32.mrf.mxu0
    %v5303 = vadd.f32 %v4951, %v5302
    %v5304 = vpop.f32.mrf.mxu0
    %5305 = vmatprep.mubr.bf16.mxu0 0
    %5306 = vmatmul.mubr.bf16.gmra.mxu0 %v4890
    %v5307 = vpop.f32.mrf.mxu0
    %v5308 = vadd.f32 %v4951, %v5307
    %v5309 = vpop.f32.mrf.mxu0
    %v5310 = vpop.f32.mrf.mxu0
    %v5311 = vadd.f32 %v4951, %v5310
    %v5312 = vpop.f32.mrf.mxu0
    %5313 = vmatprep.mubr.bf16.mxu0 0
    %5314 = vmatmul.mubr.bf16.gmra.mxu0 %v4891
    %v5315 = vpop.f32.mrf.mxu0
    %v5316 = vadd.f32 %v4951, %v5315
    %v5317 = vpop.f32.mrf.mxu0
    %v5318 = vpop.f32.mrf.mxu0
    %v5319 = vadd.f32 %v4951, %v5318
    %v5320 = vpop.f32.mrf.mxu0
    %5321 = vmatprep.mubr.bf16.mxu0 0
    %5322 = vmatmul.mubr.bf16.gmra.mxu0 %v4892
    %v5323 = vpop.f32.mrf.mxu0
    %v5324 = vadd.f32 %v4951, %v5323
    %v5325 = vpop.f32.mrf.mxu0
    %v5326 = vpop.f32.mrf.mxu0
    %v5327 = vadd.f32 %v4951, %v5326
    %v5328 = vpop.f32.mrf.mxu0
    %5329 = vmatprep.mubr.bf16.mxu0 0
    %5330 = vmatmul.mubr.bf16.gmra.mxu0 %v4893
    %v5331 = vpop.f32.mrf.mxu0
    %v5332 = vadd.f32 %v4951, %v5331
    %v5333 = vpop.f32.mrf.mxu0
    %v5334 = vpop.f32.mrf.mxu0
    %v5335 = vadd.f32 %v4951, %v5334
    %v5336 = vpop.f32.mrf.mxu0
    %5337 = vmatprep.mubr.bf16.mxu0 0
    %5338 = vmatmul.mubr.bf16.gmra.mxu0 %v4894
    %v5339 = vpop.f32.mrf.mxu0
    %v5340 = vadd.f32 %v4951, %v5339
    %v5341 = vpop.f32.mrf.mxu0
    %v5342 = vpop.f32.mrf.mxu0
    %v5343 = vadd.f32 %v4951, %v5342
    %v5344 = vpop.f32.mrf.mxu0
    %5345 = vmatprep.mubr.bf16.mxu0 0
    %5346 = vmatmul.mubr.bf16.gmra.mxu0 %v4895
    %v5347 = vpop.f32.mrf.mxu0
    %v5348 = vadd.f32 %v4951, %v5347
    %v5349 = vpop.f32.mrf.mxu0
    %v5350 = vpop.f32.mrf.mxu0
    %v5351 = vadd.f32 %v4951, %v5350
    %v5352 = vpop.f32.mrf.mxu0
    %5353 = vmatprep.mubr.bf16.mxu0 0
    %5354 = vmatmul.mubr.bf16.gmra.mxu0 %v4896
    %v5355 = vpop.f32.mrf.mxu0
    %v5356 = vadd.f32 %v4951, %v5355
    %v5357 = vpop.f32.mrf.mxu0
    %v5358 = vpop.f32.mrf.mxu0
    %v5359 = vadd.f32 %v4951, %v5358
    %v5360 = vpop.f32.mrf.mxu0
    %5361 = vmatprep.mubr.bf16.mxu0 0
    %5362 = vmatmul.mubr.bf16.gmra.mxu0 %v4897
    %v5363 = vpop.f32.mrf.mxu0
    %v5364 = vadd.f32 %v4951, %v5363
    %v5365 = vpop.f32.mrf.mxu0
    %v5366 = vpop.f32.mrf.mxu0
    %v5367 = vadd.f32 %v4951, %v5366
    %v5368 = vpop.f32.mrf.mxu0
    %5369 = vmatprep.mubr.bf16.mxu0 0
    %5370 = vmatmul.mubr.bf16.gmra.mxu0 %v4898
    %v5371 = vpop.f32.mrf.mxu0
    %v5372 = vadd.f32 %v4951, %v5371
    %v5373 = vpop.f32.mrf.mxu0
    %v5374 = vpop.f32.mrf.mxu0
    %v5375 = vadd.f32 %v4951, %v5374
    %v5376 = vpop.f32.mrf.mxu0
    %5377 = vmatprep.mubr.bf16.mxu0 0
    %5378 = vmatmul.mubr.bf16.gmra.mxu0 %v4899
    %v5379 = vpop.f32.mrf.mxu0
    %v5380 = vadd.f32 %v4951, %v5379
    %v5381 = vpop.f32.mrf.mxu0
    %v5382 = vpop.f32.mrf.mxu0
    %v5383 = vadd.f32 %v4951, %v5382
    %v5384 = vpop.f32.mrf.mxu0
    %5385 = vmatprep.mubr.bf16.mxu0 0
    %5386 = vmatmul.mubr.bf16.gmra.mxu0 %v4900
    %v5387 = vpop.f32.mrf.mxu0
    %v5388 = vadd.f32 %v4951, %v5387
    %v5389 = vpop.f32.mrf.mxu0
    %v5390 = vpop.f32.mrf.mxu0
    %v5391 = vadd.f32 %v4951, %v5390
    %v5392 = vpop.f32.mrf.mxu0
    %5393 = vmatprep.mubr.bf16.mxu0 0
    %5394 = vmatmul.mubr.bf16.gmra.mxu0 %v4901
    %v5395 = vpop.f32.mrf.mxu0
    %v5396 = vadd.f32 %v4951, %v5395
    %v5397 = vpop.f32.mrf.mxu0
    %v5398 = vpop.f32.mrf.mxu0
    %v5399 = vadd.f32 %v4951, %v5398
    %v5400 = vpop.f32.mrf.mxu0
    %5401 = vmatprep.mubr.bf16.mxu0 0
    %5402 = vmatmul.mubr.bf16.gmra.mxu0 %v4902
    %v5403 = vpop.f32.mrf.mxu0
    %v5404 = vadd.f32 %v4951, %v5403
    %v5405 = vpop.f32.mrf.mxu0
    %v5406 = vpop.f32.mrf.mxu0
    %v5407 = vadd.f32 %v4951, %v5406
    %v5408 = vpop.f32.mrf.mxu0
    %5409 = vmatprep.mubr.bf16.mxu0 0
    %5410 = vmatmul.mubr.bf16.gmra.mxu0 %v4903
    %v5411 = vpop.f32.mrf.mxu0
    %v5412 = vadd.f32 %v4951, %v5411
    %v5413 = vpop.f32.mrf.mxu0
    %v5414 = vpop.f32.mrf.mxu0
    %v5415 = vadd.f32 %v4951, %v5414
    %v5416 = vpop.f32.mrf.mxu0
    %5417 = vmatprep.mubr.bf16.mxu0 0
    %5418 = vmatmul.mubr.bf16.gmra.mxu0 %v4904
    %v5419 = vpop.f32.mrf.mxu0
    %v5420 = vadd.f32 %v4951, %v5419
    %v5421 = vpop.f32.mrf.mxu0
    %v5422 = vpop.f32.mrf.mxu0
    %v5423 = vadd.f32 %v4951, %v5422
    %v5424 = vpop.f32.mrf.mxu0
    %5425 = vmatprep.mubr.bf16.mxu0 0
    %5426 = vmatmul.mubr.bf16.gmra.mxu0 %v4905
    %v5427 = vpop.f32.mrf.mxu0
    %v5428 = vadd.f32 %v4951, %v5427
    %v5429 = vpop.f32.mrf.mxu0
    %v5430 = vpop.f32.mrf.mxu0
    %v5431 = vadd.f32 %v4951, %v5430
    %v5432 = vpop.f32.mrf.mxu0
    %5433 = vmatprep.mubr.bf16.mxu0 0
    %5434 = vmatmul.mubr.bf16.gmra.mxu0 %v4906
    %v5435 = vpop.f32.mrf.mxu0
    %v5436 = vadd.f32 %v4951, %v5435
    %v5437 = vpop.f32.mrf.mxu0
    %v5438 = vpop.f32.mrf.mxu0
    %v5439 = vadd.f32 %v4951, %v5438
    %v5440 = vpop.f32.mrf.mxu0
    %5441 = vmatprep.mubr.bf16.mxu0 0
    %5442 = vmatmul.mubr.bf16.gmra.mxu0 %v4907
    %v5443 = vpop.f32.mrf.mxu0
    %v5444 = vadd.f32 %v4951, %v5443
    %v5445 = vpop.f32.mrf.mxu0
    %v5446 = vpop.f32.mrf.mxu0
    %v5447 = vadd.f32 %v4951, %v5446
    %v5448 = vpop.f32.mrf.mxu0
    %5449 = vmatprep.mubr.bf16.mxu0 0
    %5450 = vmatmul.mubr.bf16.gmra.mxu0 %v4908
    %v5451 = vpop.f32.mrf.mxu0
    %v5452 = vadd.f32 %v4951, %v5451
    %v5453 = vpop.f32.mrf.mxu0
    %v5454 = vpop.f32.mrf.mxu0
    %v5455 = vadd.f32 %v4951, %v5454
    %v5456 = vpop.f32.mrf.mxu0
    %5457 = vmatprep.mubr.bf16.mxu0 0
    %5458 = vmatmul.mubr.bf16.gmra.mxu0 %v4909
    %v5459 = vpop.f32.mrf.mxu0
    %v5460 = vadd.f32 %v4951, %v5459
    %v5461 = vpop.f32.mrf.mxu0
    %v5462 = vpop.f32.mrf.mxu0
    %v5463 = vadd.f32 %v4951, %v5462
    %v5464 = vpop.f32.mrf.mxu0
    %5465 = vmatprep.mubr.bf16.mxu0 0
    %5466 = vmatmul.mubr.bf16.gmra.mxu0 %v4910
    %v5467 = vpop.f32.mrf.mxu0
    %v5468 = vadd.f32 %v4951, %v5467
    %v5469 = vpop.f32.mrf.mxu0
    %v5470 = vpop.f32.mrf.mxu0
    %v5471 = vadd.f32 %v4951, %v5470
    %v5472 = vpop.f32.mrf.mxu0
    %5473 = vmatprep.mubr.bf16.mxu0 0
    %5474 = vmatmul.mubr.bf16.gmra.mxu0 %v4911
    %v5475 = vpop.f32.mrf.mxu0
    %v5476 = vadd.f32 %v4951, %v5475
    %v5477 = vpop.f32.mrf.mxu0
    %v5478 = vpop.f32.mrf.mxu0
    %v5479 = vadd.f32 %v4951, %v5478
    %v5480 = vpop.f32.mrf.mxu0
    %5481 = vmatprep.mubr.bf16.mxu0 0
    %5482 = vmatmul.mubr.bf16.gmra.mxu0 %v4912
    %v5483 = vpop.f32.mrf.mxu0
    %v5484 = vadd.f32 %v4951, %v5483
    %v5485 = vpop.f32.mrf.mxu0
    %v5486 = vpop.f32.mrf.mxu0
    %v5487 = vadd.f32 %v4951, %v5486
    %v5488 = vpop.f32.mrf.mxu0
    %5489 = vmatprep.mubr.bf16.mxu0 0
    %5490 = vmatmul.mubr.bf16.gmra.mxu0 %v4913
    %v5491 = vpop.f32.mrf.mxu0
    %v5492 = vadd.f32 %v4951, %v5491
    %v5493 = vpop.f32.mrf.mxu0
    %v5494 = vpop.f32.mrf.mxu0
    %v5495 = vadd.f32 %v4951, %v5494
    %v5496 = vpop.f32.mrf.mxu0
    %5497 = vmatprep.mubr.bf16.mxu0 0
    %5498 = vmatmul.mubr.bf16.gmra.mxu0 %v4914
    %v5499 = vpop.f32.mrf.mxu0
    %v5500 = vadd.f32 %v4951, %v5499
    %v5501 = vpop.f32.mrf.mxu0
    %v5502 = vpop.f32.mrf.mxu0
    %v5503 = vadd.f32 %v4951, %v5502
    %v5504 = vpop.f32.mrf.mxu0
    %5505 = vmatprep.mubr.bf16.mxu0 0
    %5506 = vmatmul.mubr.bf16.gmra.mxu0 %v4915
    %v5507 = vpop.f32.mrf.mxu0
    %v5508 = vadd.f32 %v4951, %v5507
    %v5509 = vpop.f32.mrf.mxu0
    %v5510 = vpop.f32.mrf.mxu0
    %v5511 = vadd.f32 %v4951, %v5510
    %v5512 = vpop.f32.mrf.mxu0
    %5513 = vmatprep.mubr.bf16.mxu0 0
    %5514 = vmatmul.mubr.bf16.gmra.mxu0 %v4916
    %v5515 = vpop.f32.mrf.mxu0
    %v5516 = vadd.f32 %v4951, %v5515
    %v5517 = vpop.f32.mrf.mxu0
    %v5518 = vpop.f32.mrf.mxu0
    %v5519 = vadd.f32 %v4951, %v5518
    %v5520 = vpop.f32.mrf.mxu0
    %5521 = vmatprep.mubr.bf16.mxu0 0
    %5522 = vmatmul.mubr.bf16.gmra.mxu0 %v4917
    %v5523 = vpop.f32.mrf.mxu0
    %v5524 = vadd.f32 %v4951, %v5523
    %v5525 = vpop.f32.mrf.mxu0
    %v5526 = vpop.f32.mrf.mxu0
    %v5527 = vadd.f32 %v4951, %v5526
    %v5528 = vpop.f32.mrf.mxu0
    %5529 = vmatprep.mubr.bf16.mxu0 0
    %5530 = vmatmul.mubr.bf16.gmra.mxu0 %v4918
    %v5531 = vpop.f32.mrf.mxu0
    %v5532 = vadd.f32 %v4951, %v5531
    %v5533 = vpop.f32.mrf.mxu0
    %v5534 = vpop.f32.mrf.mxu0
    %v5535 = vadd.f32 %v4951, %v5534
    %v5536 = vpop.f32.mrf.mxu0
    %5537 = vmatprep.mubr.bf16.mxu0 0
    %5538 = vmatmul.mubr.bf16.gmra.mxu0 %v4919
    %v5539 = vpop.f32.mrf.mxu0
    %v5540 = vadd.f32 %v4951, %v5539
    %v5541 = vpop.f32.mrf.mxu0
    %v5542 = vpop.f32.mrf.mxu0
    %v5543 = vadd.f32 %v4951, %v5542
    %v5544 = vpop.f32.mrf.mxu0
    %5545 = vmatprep.mubr.bf16.mxu0 0
    %5546 = vmatmul.mubr.bf16.gmra.mxu0 %v4920
    %v5547 = vpop.f32.mrf.mxu0
    %v5548 = vadd.f32 %v4951, %v5547
    %v5549 = vpop.f32.mrf.mxu0
    %v5550 = vpop.f32.mrf.mxu0
    %v5551 = vadd.f32 %v4951, %v5550
    %v5552 = vpop.f32.mrf.mxu0
    %5553 = vmatprep.mubr.bf16.mxu0 0
    %5554 = vmatmul.mubr.bf16.gmra.mxu0 %v4921
    %v5555 = vpop.f32.mrf.mxu0
    %v5556 = vadd.f32 %v4951, %v5555
    %v5557 = vpop.f32.mrf.mxu0
    %v5558 = vpop.f32.mrf.mxu0
    %v5559 = vadd.f32 %v4951, %v5558
    %v5560 = vpop.f32.mrf.mxu0
    %5561 = vmatprep.mubr.bf16.mxu0 0
    %5562 = vmatmul.mubr.bf16.gmra.mxu0 %v4922
    %v5563 = vpop.f32.mrf.mxu0
    %v5564 = vadd.f32 %v4951, %v5563
    %v5565 = vpop.f32.mrf.mxu0
    %v5566 = vpop.f32.mrf.mxu0
    %v5567 = vadd.f32 %v4951, %v5566
    %v5568 = vpop.f32.mrf.mxu0
    %5569 = vmatprep.mubr.bf16.mxu0 0
    %5570 = vmatmul.mubr.bf16.gmra.mxu0 %v4923
    %v5571 = vpop.f32.mrf.mxu0
    %v5572 = vadd.f32 %v4951, %v5571
    %v5573 = vpop.f32.mrf.mxu0
    %v5574 = vpop.f32.mrf.mxu0
    %v5575 = vadd.f32 %v4951, %v5574
    %v5576 = vpop.f32.mrf.mxu0
    %5577 = vmatprep.mubr.bf16.mxu0 0
    %5578 = vmatmul.mubr.bf16.gmra.mxu0 %v4924
    %v5579 = vpop.f32.mrf.mxu0
    %v5580 = vadd.f32 %v4951, %v5579
    %v5581 = vpop.f32.mrf.mxu0
    %v5582 = vpop.f32.mrf.mxu0
    %v5583 = vadd.f32 %v4951, %v5582
    %v5584 = vpop.f32.mrf.mxu0
    %5585 = vmatprep.mubr.bf16.mxu0 0
    %5586 = vmatmul.mubr.bf16.gmra.mxu0 %v4925
    %v5587 = vpop.f32.mrf.mxu0
    %v5588 = vadd.f32 %v4951, %v5587
    %v5589 = vpop.f32.mrf.mxu0
    %v5590 = vpop.f32.mrf.mxu0
    %v5591 = vadd.f32 %v4951, %v5590
    %v5592 = vpop.f32.mrf.mxu0
    %5593 = vmatprep.mubr.bf16.mxu0 0
    %5594 = vmatmul.mubr.bf16.gmra.mxu0 %v4926
    %v5595 = vpop.f32.mrf.mxu0
    %v5596 = vadd.f32 %v4951, %v5595
    %v5597 = vpop.f32.mrf.mxu0
    %v5598 = vpop.f32.mrf.mxu0
    %v5599 = vadd.f32 %v4951, %v5598
    %v5600 = vpop.f32.mrf.mxu0
    %5601 = vmatprep.mubr.bf16.mxu0 0
    %5602 = vmatmul.mubr.bf16.gmra.mxu0 %v4927
    %v5603 = vpop.f32.mrf.mxu0
    %v5604 = vadd.f32 %v4951, %v5603
    %v5605 = vpop.f32.mrf.mxu0
    %v5606 = vpop.f32.mrf.mxu0
    %v5607 = vadd.f32 %v4951, %v5606
    %v5608 = vpop.f32.mrf.mxu0
    %5609 = vdwg.mxu0
    %v5610 = vtanh.pop %v5036
    %v5611 = vtanh.pop %v5039
    %v5612 = vtanh.pop %v5044
    %v5613 = vtanh.pop %v5047
    %v5614 = vtanh.pop %v5052
    %v5615 = vtanh.pop %v5055
    %v5616 = vtanh.pop %v5060
    %v5617 = vtanh.pop %v5063
    %v5618 = vtanh.pop %v5068
    %v5619 = vtanh.pop %v5071
    %v5620 = vtanh.pop %v5076
    %v5621 = vtanh.pop %v5079
    %v5622 = vtanh.pop %v5084
    %v5623 = vtanh.pop %v5087
    %v5624 = vtanh.pop %v5092
    %v5625 = vtanh.pop %v5095
    %v5626 = vtanh.pop %v5100
    %v5627 = vtanh.pop %v5103
    %v5628 = vtanh.pop %v5108
    %v5629 = vtanh.pop %v5111
    %v5630 = vtanh.pop %v5116
    %v5631 = vtanh.pop %v5119
    %v5632 = vtanh.pop %v5124
    %v5633 = vtanh.pop %v5127
    %v5634 = vtanh.pop %v5132
    %v5635 = vtanh.pop %v5135
    %v5636 = vtanh.pop %v5140
    %v5637 = vtanh.pop %v5143
    %v5638 = vtanh.pop %v5148
    %v5639 = vtanh.pop %v5151
    %v5640 = vtanh.pop %v5156
    %v5641 = vtanh.pop %v5159
    %v5642 = vtanh.pop %v5164
    %v5643 = vtanh.pop %v5167
    %v5644 = vtanh.pop %v5172
    %v5645 = vtanh.pop %v5175
    %v5646 = vtanh.pop %v5180
    %v5647 = vtanh.pop %v5183
    %v5648 = vtanh.pop %v5188
    %v5649 = vtanh.pop %v5191
    %v5650 = vtanh.pop %v5196
    %v5651 = vtanh.pop %v5199
    %v5652 = vtanh.pop %v5204
    %v5653 = vtanh.pop %v5207
    %v5654 = vtanh.pop %v5212
    %v5655 = vtanh.pop %v5215
    %v5656 = vtanh.pop %v5220
    %v5657 = vtanh.pop %v5223
    %v5658 = vtanh.pop %v5228
    %v5659 = vtanh.pop %v5231
    %v5660 = vtanh.pop %v5236
    %v5661 = vtanh.pop %v5239
    %v5662 = vtanh.pop %v5244
    %v5663 = vtanh.pop %v5247
    %v5664 = vtanh.pop %v5252
    %v5665 = vtanh.pop %v5255
    %v5666 = vtanh.pop %v5260
    %v5667 = vtanh.pop %v5263
    %v5668 = vtanh.pop %v5268
    %v5669 = vtanh.pop %v5271
    %v5670 = vtanh.pop %v5276
    %v5671 = vtanh.pop %v5279
    %v5672 = vtanh.pop %v5284
    %v5673 = vtanh.pop %v5287
    %v5674 = vtanh.pop %v5292
    %v5675 = vtanh.pop %v5295
    %v5676 = vtanh.pop %v5300
    %v5677 = vtanh.pop %v5303
    %v5678 = vtanh.pop %v5308
    %v5679 = vtanh.pop %v5311
    %v5680 = vtanh.pop %v5316
    %v5681 = vtanh.pop %v5319
    %v5682 = vtanh.pop %v5324
    %v5683 = vtanh.pop %v5327
    %v5684 = vtanh.pop %v5332
    %v5685 = vtanh.pop %v5335
    %v5686 = vtanh.pop %v5340
    %v5687 = vtanh.pop %v5343
    %v5688 = vtanh.pop %v5348
    %v5689 = vtanh.pop %v5351
    %v5690 = vtanh.pop %v5356
    %v5691 = vtanh.pop %v5359
    %v5692 = vtanh.pop %v5364
    %v5693 = vtanh.pop %v5367
    %v5694 = vtanh.pop %v5372
    %v5695 = vtanh.pop %v5375
    %v5696 = vtanh.pop %v5380
    %v5697 = vtanh.pop %v5383
    %v5698 = vtanh.pop %v5388
    %v5699 = vtanh.pop %v5391
    %v5700 = vtanh.pop %v5396
    %v5701 = vtanh.pop %v5399
    %v5702 = vtanh.pop %v5404
    %v5703 = vtanh.pop %v5407
    %v5704 = vtanh.pop %v5412
    %v5705 = vtanh.pop %v5415
    %v5706 = vtanh.pop %v5420
    %v5707 = vtanh.pop %v5423
    %v5708 = vtanh.pop %v5428
    %v5709 = vtanh.pop %v5431
    %v5710 = vtanh.pop %v5436
    %v5711 = vtanh.pop %v5439
    %v5712 = vtanh.pop %v5444
    %v5713 = vtanh.pop %v5447
    %v5714 = vtanh.pop %v5452
    %v5715 = vtanh.pop %v5455
    %v5716 = vtanh.pop %v5460
    %v5717 = vtanh.pop %v5463
    %v5718 = vtanh.pop %v5468
    %v5719 = vtanh.pop %v5471
    %v5720 = vtanh.pop %v5476
    %v5721 = vtanh.pop %v5479
    %v5722 = vtanh.pop %v5484
    %v5723 = vtanh.pop %v5487
    %v5724 = vtanh.pop %v5492
    %v5725 = vtanh.pop %v5495
    %v5726 = vtanh.pop %v5500
    %v5727 = vtanh.pop %v5503
    %v5728 = vtanh.pop %v5508
    %v5729 = vtanh.pop %v5511
    %v5730 = vtanh.pop %v5516
    %v5731 = vtanh.pop %v5519
    %v5732 = vtanh.pop %v5524
    %v5733 = vtanh.pop %v5527
    %v5734 = vtanh.pop %v5532
    %v5735 = vtanh.pop %v5535
    %v5736 = vtanh.pop %v5540
    %v5737 = vtanh.pop %v5543
    %v5738 = vtanh.pop %v5548
    %v5739 = vtanh.pop %v5551
    %v5740 = vtanh.pop %v5556
    %v5741 = vtanh.pop %v5559
    %v5742 = vtanh.pop %v5564
    %v5743 = vtanh.pop %v5567
    %v5744 = vtanh.pop %v5572
    %v5745 = vtanh.pop %v5575
    %v5746 = vtanh.pop %v5580
    %v5747 = vtanh.pop %v5583
    %v5748 = vtanh.pop %v5588
    %v5749 = vtanh.pop %v5591
    %v5750 = vtanh.pop %v5596
    %v5751 = vtanh.pop %v5599
    %v5752 = vtanh.pop %v5604
    %v5753 = vtanh.pop %v5607
    %5754 = vst [vmem:[%s5] sm:$0xff] %v5610
    %5755 = vst [vmem:[%s5 + $0x8] sm:$0xff] %v5611
    %5756 = vst [vmem:[%s5 + $0x10] sm:$0xff] %v5612
    %5757 = vst [vmem:[%s5 + $0x18] sm:$0xff] %v5613
    %5758 = vst [vmem:[%s5 + $0x20] sm:$0xff] %v5614
    %5759 = vst [vmem:[%s5 + $0x28] sm:$0xff] %v5615
    %5760 = vst [vmem:[%s5 + $0x30] sm:$0xff] %v5616
    %5761 = vst [vmem:[%s5 + $0x38] sm:$0xff] %v5617
    %5762 = vst [vmem:[%s5 + $0x40] sm:$0xff] %v5618
    %5763 = vst [vmem:[%s5 + $0x48] sm:$0xff] %v5619
    %5764 = vst [vmem:[%s5 + $0x50] sm:$0xff] %v5620
    %5765 = vst [vmem:[%s5 + $0x58] sm:$0xff] %v5621
    %5766 = vst [vmem:[%s5 + $0x60] sm:$0xff] %v5622
    %5767 = vst [vmem:[%s5 + $0x68] sm:$0xff] %v5623
    %5768 = vst [vmem:[%s5 + $0x70] sm:$0xff] %v5624
    %5769 = vst [vmem:[%s5 + $0x78] sm:$0xff] %v5625
    %5770 = vst [vmem:[%s5 + $0x80] sm:$0xff] %v5626
    %5771 = vst [vmem:[%s5 + $0x88] sm:$0xff] %v5627
    %5772 = vst [vmem:[%s5 + $0x90] sm:$0xff] %v5628
    %5773 = vst [vmem:[%s5 + $0x98] sm:$0xff] %v5629
    %5774 = vst [vmem:[%s5 + $0xa0] sm:$0xff] %v5630
    %5775 = vst [vmem:[%s5 + $0xa8] sm:$0xff] %v5631
    %5776 = vst [vmem:[%s5 + $0xb0] sm:$0xff] %v5632
    %5777 = vst [vmem:[%s5 + $0xb8] sm:$0xff] %v5633
    %5778 = vst [vmem:[%s5 + $0xc0] sm:$0xff] %v5634
    %5779 = vst [vmem:[%s5 + $0xc8] sm:$0xff] %v5635
    %5780 = vst [vmem:[%s5 + $0xd0] sm:$0xff] %v5636
    %5781 = vst [vmem:[%s5 + $0xd8] sm:$0xff] %v5637
    %5782 = vst [vmem:[%s5 + $0xe0] sm:$0xff] %v5638
    %5783 = vst [vmem:[%s5 + $0xe8] sm:$0xff] %v5639
    %5784 = vst [vmem:[%s5 + $0xf0] sm:$0xff] %v5640
    %5785 = vst [vmem:[%s5 + $0xf8] sm:$0xff] %v5641
    %5786 = vst [vmem:[%s5 + $0x100] sm:$0xff] %v5642
    %5787 = vst [vmem:[%s5 + $0x108] sm:$0xff] %v5643
    %5788 = vst [vmem:[%s5 + $0x110] sm:$0xff] %v5644
    %5789 = vst [vmem:[%s5 + $0x118] sm:$0xff] %v5645
    %5790 = vst [vmem:[%s5 + $0x120] sm:$0xff] %v5646
    %5791 = vst [vmem:[%s5 + $0x128] sm:$0xff] %v5647
    %5792 = vst [vmem:[%s5 + $0x130] sm:$0xff] %v5648
    %5793 = vst [vmem:[%s5 + $0x138] sm:$0xff] %v5649
    %5794 = vst [vmem:[%s5 + $0x140] sm:$0xff] %v5650
    %5795 = vst [vmem:[%s5 + $0x148] sm:$0xff] %v5651
    %5796 = vst [vmem:[%s5 + $0x150] sm:$0xff] %v5652
    %5797 = vst [vmem:[%s5 + $0x158] sm:$0xff] %v5653
    %5798 = vst [vmem:[%s5 + $0x160] sm:$0xff] %v5654
    %5799 = vst [vmem:[%s5 + $0x168] sm:$0xff] %v5655
    %5800 = vst [vmem:[%s5 + $0x170] sm:$0xff] %v5656
    %5801 = vst [vmem:[%s5 + $0x178] sm:$0xff] %v5657
    %5802 = vst [vmem:[%s5 + $0x180] sm:$0xff] %v5658
    %5803 = vst [vmem:[%s5 + $0x188] sm:$0xff] %v5659
    %5804 = vst [vmem:[%s5 + $0x190] sm:$0xff] %v5660
    %5805 = vst [vmem:[%s5 + $0x198] sm:$0xff] %v5661
    %5806 = vst [vmem:[%s5 + $0x1a0] sm:$0xff] %v5662
    %5807 = vst [vmem:[%s5 + $0x1a8] sm:$0xff] %v5663
    %5808 = vst [vmem:[%s5 + $0x1b0] sm:$0xff] %v5664
    %5809 = vst [vmem:[%s5 + $0x1b8] sm:$0xff] %v5665
    %5810 = vst [vmem:[%s5 + $0x1c0] sm:$0xff] %v5666
    %5811 = vst [vmem:[%s5 + $0x1c8] sm:$0xff] %v5667
    %5812 = vst [vmem:[%s5 + $0x1d0] sm:$0xff] %v5668
    %5813 = vst [vmem:[%s5 + $0x1d8] sm:$0xff] %v5669
    %5814 = vst [vmem:[%s5 + $0x1e0] sm:$0xff] %v5670
    %5815 = vst [vmem:[%s5 + $0x1e8] sm:$0xff] %v5671
    %5816 = vst [vmem:[%s5 + $0x1f0] sm:$0xff] %v5672
    %5817 = vst [vmem:[%s5 + $0x1f8] sm:$0xff] %v5673
    %5818 = vst [vmem:[%s5 + $0x200] sm:$0xff] %v5674
    %5819 = vst [vmem:[%s5 + $0x208] sm:$0xff] %v5675
    %5820 = vst [vmem:[%s5 + $0x210] sm:$0xff] %v5676
    %5821 = vst [vmem:[%s5 + $0x218] sm:$0xff] %v5677
    %5822 = vst [vmem:[%s5 + $0x220] sm:$0xff] %v5678
    %5823 = vst [vmem:[%s5 + $0x228] sm:$0xff] %v5679
    %5824 = vst [vmem:[%s5 + $0x230] sm:$0xff] %v5680
    %5825 = vst [vmem:[%s5 + $0x238] sm:$0xff] %v5681
    %5826 = vst [vmem:[%s5 + $0x240] sm:$0xff] %v5682
    %5827 = vst [vmem:[%s5 + $0x248] sm:$0xff] %v5683
    %5828 = vst [vmem:[%s5 + $0x250] sm:$0xff] %v5684
    %5829 = vst [vmem:[%s5 + $0x258] sm:$0xff] %v5685
    %5830 = vst [vmem:[%s5 + $0x260] sm:$0xff] %v5686
    %5831 = vst [vmem:[%s5 + $0x268] sm:$0xff] %v5687
    %5832 = vst [vmem:[%s5 + $0x270] sm:$0xff] %v5688
    %5833 = vst [vmem:[%s5 + $0x278] sm:$0xff] %v5689
    %5834 = vst [vmem:[%s5 + $0x280] sm:$0xff] %v5690
    %5835 = vst [vmem:[%s5 + $0x288] sm:$0xff] %v5691
    %5836 = vst [vmem:[%s5 + $0x290] sm:$0xff] %v5692
    %5837 = vst [vmem:[%s5 + $0x298] sm:$0xff] %v5693
    %5838 = vst [vmem:[%s5 + $0x2a0] sm:$0xff] %v5694
    %5839 = vst [vmem:[%s5 + $0x2a8] sm:$0xff] %v5695
    %5840 = vst [vmem:[%s5 + $0x2b0] sm:$0xff] %v5696
    %5841 = vst [vmem:[%s5 + $0x2b8] sm:$0xff] %v5697
    %5842 = vst [vmem:[%s5 + $0x2c0] sm:$0xff] %v5698
    %5843 = vst [vmem:[%s5 + $0x2c8] sm:$0xff] %v5699
    %5844 = vst [vmem:[%s5 + $0x2d0] sm:$0xff] %v5700
    %5845 = vst [vmem:[%s5 + $0x2d8] sm:$0xff] %v5701
    %5846 = vst [vmem:[%s5 + $0x2e0] sm:$0xff] %v5702
    %5847 = vst [vmem:[%s5 + $0x2e8] sm:$0xff] %v5703
    %5848 = vst [vmem:[%s5 + $0x2f0] sm:$0xff] %v5704
    %5849 = vst [vmem:[%s5 + $0x2f8] sm:$0xff] %v5705
    %5850 = vst [vmem:[%s5 + $0x300] sm:$0xff] %v5706
    %5851 = vst [vmem:[%s5 + $0x308] sm:$0xff] %v5707
    %5852 = vst [vmem:[%s5 + $0x310] sm:$0xff] %v5708
    %5853 = vst [vmem:[%s5 + $0x318] sm:$0xff] %v5709
    %5854 = vst [vmem:[%s5 + $0x320] sm:$0xff] %v5710
    %5855 = vst [vmem:[%s5 + $0x328] sm:$0xff] %v5711
    %5856 = vst [vmem:[%s5 + $0x330] sm:$0xff] %v5712
    %5857 = vst [vmem:[%s5 + $0x338] sm:$0xff] %v5713
    %5858 = vst [vmem:[%s5 + $0x340] sm:$0xff] %v5714
    %5859 = vst [vmem:[%s5 + $0x348] sm:$0xff] %v5715
    %5860 = vst [vmem:[%s5 + $0x350] sm:$0xff] %v5716
    %5861 = vst [vmem:[%s5 + $0x358] sm:$0xff] %v5717
    %5862 = vst [vmem:[%s5 + $0x360] sm:$0xff] %v5718
    %5863 = vst [vmem:[%s5 + $0x368] sm:$0xff] %v5719
    %5864 = vst [vmem:[%s5 + $0x370] sm:$0xff] %v5720
    %5865 = vst [vmem:[%s5 + $0x378] sm:$0xff] %v5721
    %5866 = vst [vmem:[%s5 + $0x380] sm:$0xff] %v5722
    %5867 = vst [vmem:[%s5 + $0x388] sm:$0xff] %v5723
    %5868 = vst [vmem:[%s5 + $0x390] sm:$0xff] %v5724
    %5869 = vst [vmem:[%s5 + $0x398] sm:$0xff] %v5725
    %5870 = vst [vmem:[%s5 + $0x3a0] sm:$0xff] %v5726
    %5871 = vst [vmem:[%s5 + $0x3a8] sm:$0xff] %v5727
    %5872 = vst [vmem:[%s5 + $0x3b0] sm:$0xff] %v5728
    %5873 = vst [vmem:[%s5 + $0x3b8] sm:$0xff] %v5729
    %5874 = vst [vmem:[%s5 + $0x3c0] sm:$0xff] %v5730
    %5875 = vst [vmem:[%s5 + $0x3c8] sm:$0xff] %v5731
    %5876 = vst [vmem:[%s5 + $0x3d0] sm:$0xff] %v5732
    %5877 = vst [vmem:[%s5 + $0x3d8] sm:$0xff] %v5733
    %5878 = vst [vmem:[%s5 + $0x3e0] sm:$0xff] %v5734
    %5879 = vst [vmem:[%s5 + $0x3e8] sm:$0xff] %v5735
    %5880 = vst [vmem:[%s5 + $0x3f0] sm:$0xff] %v5736
    %5881 = vst [vmem:[%s5 + $0x3f8] sm:$0xff] %v5737
    %5882 = vst [vmem:[%s5 + $0x400] sm:$0xff] %v5738
    %5883 = vst [vmem:[%s5 + $0x408] sm:$0xff] %v5739
    %5884 = vst [vmem:[%s5 + $0x410] sm:$0xff] %v5740
    %5885 = vst [vmem:[%s5 + $0x418] sm:$0xff] %v5741
    %5886 = vst [vmem:[%s5 + $0x420] sm:$0xff] %v5742
    %5887 = vst [vmem:[%s5 + $0x428] sm:$0xff] %v5743
    %5888 = vst [vmem:[%s5 + $0x430] sm:$0xff] %v5744
    %5889 = vst [vmem:[%s5 + $0x438] sm:$0xff] %v5745
    %5890 = vst [vmem:[%s5 + $0x440] sm:$0xff] %v5746
    %5891 = vst [vmem:[%s5 + $0x448] sm:$0xff] %v5747
    %5892 = vst [vmem:[%s5 + $0x450] sm:$0xff] %v5748
    %5893 = vst [vmem:[%s5 + $0x458] sm:$0xff] %v5749
    %5894 = vst [vmem:[%s5 + $0x460] sm:$0xff] %v5750
    %5895 = vst [vmem:[%s5 + $0x468] sm:$0xff] %v5751
    %5896 = vst [vmem:[%s5 + $0x470] sm:$0xff] %v5752
    %5897 = vst [vmem:[%s5 + $0x478] sm:$0xff] %v5753
    // Predicated region
    $region22: #{full_decoder_forward.1} parent=1 // pred_check
      _
    $region23: #{full_decoder_forward.1} parent=1 // pred_check_branch
      %5899 = sbr.rel (0) target = $region25
    $region24: #{full_decoder_forward.1} parent=1 // pred_region
      _
    $region25: #{full_decoder_forward.1} parent=1 // pred_fallthru
      _
    // Predicated region
    $region26: #{full_decoder_forward.1} parent=1 // pred_check
      _
    $region27: #{full_decoder_forward.1} parent=1 // pred_check_branch
      %5901 = sbr.rel (0) target = $region29
    $region28: #{full_decoder_forward.1} parent=1 // pred_region
      _
    $region29: #{full_decoder_forward.1} parent=1 // pred_fallthru
      _
    // Predicated region
    $region30: #{full_decoder_forward.1} parent=1 // pred_check
      _
    $region31: #{full_decoder_forward.1} parent=1 // pred_check_branch
      %5903 = sbr.rel (0) target = $region33
    $region32: #{full_decoder_forward.1} parent=1 // pred_region
      _
    $region33: #{full_decoder_forward.1} parent=1 // pred_fallthru
      _
    // Predicated region
    $region34: #{full_decoder_forward.1} parent=1 // pred_check
      _
    $region35: #{full_decoder_forward.1} parent=1 // pred_check_branch
      %5905 = sbr.rel (0) target = $region37
    $region36: #{full_decoder_forward.1} parent=1 // pred_region
      _
    $region37: #{full_decoder_forward.1} parent=1 // pred_fallthru
      _
    // Predicated region
    $region38: #{full_decoder_forward.1} parent=1 // pred_check
      _
    $region39: #{full_decoder_forward.1} parent=1 // pred_check_branch
      %5907 = sbr.rel (0) target = $region41
    $region40: #{full_decoder_forward.1} parent=1 // pred_region
      _
    $region41: #{full_decoder_forward.1} parent=1 // pred_fallthru
      _
    // Predicated region
    $region42: #{full_decoder_forward.1} parent=1 // pred_check
      _
    $region43: #{full_decoder_forward.1} parent=1 // pred_check_branch
      %5909 = sbr.rel (0) target = $region45
    $region44: #{full_decoder_forward.1} parent=1 // pred_region
      _
    $region45: #{full_decoder_forward.1} parent=1 // pred_fallthru
      _
    %5910 = vsyncpa [#allocation5], 1
    %5911 = vsyncpa [#allocation7], 1

</llo_original>
